<compile_context>
chip_gen: v7x
topology: tpu7x:2x2x1
jax: 0.10.0
libtpu: 0.0.40
codegen_flags: <defaults>
</compile_context>

<pallas_src>
import functools

import jax
import jax.numpy as jnp
from jax import lax
from jax.experimental import pallas as pl
from jax.experimental.pallas import tpu as pltpu

ATROUS_RATES = (2, 4, 6)
PMAX = max(ATROUS_RATES)   # spatial zero-padding applied once in the wrapper
BN_EPS = 1e-5
CIN_PACK = 16              # bf16 sublane packing: keep im2col pieces tile-aligned


def _round_up(x, m):
    return (x + m - 1) // m * m


# --------------------------------------------------------------------------
# Pallas kernel
# --------------------------------------------------------------------------
def _aspp_kernel(x_ref,                      # (1, Cin_p, W_big)  bf16 halo'd flat image
                 wc_ref,                     # (4*Cout, Cin_p)    bf16 [1x1 ; 3 center taps]
                 wd1_ref, wd2_ref, wd3_ref,  # (Cout, 8*Cin_p)    bf16 non-center taps
                 s_br_ref, b_br_ref,         # (4*Cout, 1)        f32  folded branch BN
                 wp_ref,                     # (Cout, Cin_p)      bf16 pooling 1x1
                 wproj_ref,                  # (5, Cout, Cout)    bf16 projection chunks
                 sproj_ref, bproj_ref,       # (Cout, 1)          f32  folded projection BN
                 o_ref,                      # (1, Cout, L)       f32
                 *, HW, Wp, L, halo, rates):
    cout = o_ref.shape[1]

    def window(s):
        # window(s)[c, p] == zero-padded-image-flat[c, p + s].
        # Contiguous static lane-offset view: aligned vector loads + XLU lane
        # rotates (the roll the perf review asked for); the halo's zeros
        # provide the border masking.
        return x_ref[0, :, halo + s:halo + s + L]

    def bn_relu(y, i):
        lo, hi = i * cout, (i + 1) * cout
        return jnp.maximum(y * s_br_ref[lo:hi] + b_br_ref[lo:hi], 0.0)

    # One fused matmul for the 1x1 branch + the center tap of all three
    # dilated branches (shares the single lane-aligned center window).
    x_center = window(0)                                            # (Cin_p, L)
    y_center = jnp.dot(wc_ref[...], x_center,
                       preferred_element_type=jnp.float32)          # (4*Cout, L)

    # Branch 0 (1x1 conv) -> folded BN -> ReLU, accumulated straight into the
    # projection (the 5*Cout channel concat is never materialized).
    act = bn_relu(y_center[:cout], 0)
    acc = jnp.dot(wproj_ref[0], act.astype(jnp.bfloat16),
                  preferred_element_type=jnp.float32)                # (Cout, L)

    # Branches 1-3: dilated 3x3 conv as ONE matmul with K = 8*Cin over an
    # im2col stack of the 8 non-center taps (center tap came from y_center).
    for i, (wd_ref, d) in enumerate(zip((wd1_ref, wd2_ref, wd3_ref), rates),
                                    start=1):
        taps = []
        for k in range(9):
            if k == 4:               # center tap handled by the fused matmul
                continue
            ky, kx = divmod(k, 3)
            taps.append(window((ky - 1) * d * Wp + (kx - 1) * d))
        stack = jnp.concatenate(taps, axis=0)                        # (8*Cin_p, L)
        y = y_center[i * cout:(i + 1) * cout] + jnp.dot(
            wd_ref[...], stack, preferred_element_type=jnp.float32)
        act = bn_relu(y, i)
        acc = acc + jnp.dot(wproj_ref[i], act.astype(jnp.bfloat16),
                            preferred_element_type=jnp.float32)

    # Pooling branch: global mean -> 1x1 conv -> ReLU.  The bilinear upsample
    # of a 1x1 map with align_corners=True is a broadcast, so its projection
    # contribution is a rank-1 update of the accumulator.
    xm = jnp.sum(x_center.astype(jnp.float32), axis=1,
                 keepdims=True) * (1.0 / HW)    # halo / ring zeros don't perturb the sum
    yp = jnp.maximum(
        jnp.dot(wp_ref[...].astype(jnp.float32), xm,
                preferred_element_type=jnp.float32), 0.0)            # (Cout, 1)
    acc = acc + jnp.dot(wproj_ref[4].astype(jnp.float32), yp,
                        preferred_element_type=jnp.float32)          # rank-1 add

    # Projection folded-BN + ReLU.
    # TODO(synk): nn.Dropout(p=0.5) is identity in eval mode; training-mode
    # dropout and training-mode BatchNorm statistics are not modeled.
    o_ref[0] = jnp.maximum(acc * sproj_ref[...] + bproj_ref[...], 0.0)


# --------------------------------------------------------------------------
# Wrapper
# --------------------------------------------------------------------------
def aspp_forward(x, kp, rates=ATROUS_RATES):
    """x: (N, Cin, H, W) float32 NCHW.  Returns (N, Cout, H, W) float32."""
    N, Cin, H, W = x.shape
    Cout = kp["wproj"].shape[1]
    Cin_p = kp["w_center"].shape[1]
    assert max(rates) <= PMAX

    Hp, Wp = H + 2 * PMAX, W + 2 * PMAX
    L = _round_up(Hp * Wp, 128)          # lane-dense compute / output width
    smax = PMAX * Wp + PMAX              # largest |flat tap offset|
    halo = _round_up(smax, 128)          # left halo (lane aligned -> center window aligned)
    W_big = _round_up(halo + L + smax, 128)

    # Wrapper-side layout plumbing (cheap XLA ops on HBM): channel pad to the
    # bf16 sublane packing, spatial zero-pad, flatten, halo, cast to bf16.
    x_c = jnp.pad(x, ((0, 0), (0, Cin_p - Cin), (0, 0), (0, 0)))
    x_pad = jnp.pad(x_c, ((0, 0), (0, 0), (PMAX, PMAX), (PMAX, PMAX)))
    x_flat = x_pad.reshape(N, Cin_p, Hp * Wp)
    x_big = jnp.pad(
        x_flat, ((0, 0), (0, 0), (halo, W_big - halo - Hp * Wp))
    ).astype(jnp.bfloat16)

    param_order = ("w_center", "wd1", "wd2", "wd3", "s_br", "b_br",
                   "wp", "wproj", "sproj", "bproj")
    operands = [x_big]
    in_specs = [pl.BlockSpec((1, Cin_p, W_big), lambda n: (n, 0, 0))]
    param_bytes = 0
    for name in param_order:
        arr = kp[name]
        operands.append(arr)
        # Whole-array, grid-invariant blocks (tiny here; see header note about
        # single-buffering them at production channel counts).
        in_specs.append(
            pl.BlockSpec(arr.shape, lambda n, _nd=arr.ndim: (0,) * _nd))
        param_bytes += arr.size * arr.dtype.itemsize

    kernel = functools.partial(_aspp_kernel, HW=H * W, Wp=Wp, L=L, halo=halo,
                               rates=tuple(rates))

    # Advisory cost estimate + explicit VMEM budget derived from the working set.
    flops = 2 * N * L * (4 * Cout * Cin_p + 3 * Cout * 8 * Cin_p
                         + 4 * Cout * Cout)
    bytes_accessed = int(x_big.size * x_big.dtype.itemsize
                         + N * param_bytes + N * Cout * L * 4)
    working_set = (2 * Cin_p * W_big * 2        # double-buffered input block
                   + 2 * Cout * L * 4           # double-buffered output block
                   + 2 * param_bytes            # (default) double-buffered consts
                   + (9 * Cin_p) * L * 2        # windows + im2col stack (bf16)
                   + (4 * Cout + 2 * Cout) * L * 4)  # y_center + act + acc (f32)
    vmem_limit = int(min(max(16 * 1024 * 1024, 2 * working_set),
                         32 * 1024 * 1024))

    out = pl.pallas_call(
        kernel,
        out_shape=jax.ShapeDtypeStruct((N, Cout, L), jnp.float32),
        grid=(N,),
        in_specs=in_specs,
        out_specs=pl.BlockSpec((1, Cout, L), lambda n: (n, 0, 0)),
        compiler_params=pltpu.CompilerParams(
            dimension_semantics=("parallel",),   # batch items are independent
            vmem_limit_bytes=vmem_limit),
        cost_estimate=pl.CostEstimate(flops=int(flops), transcendentals=0,
                                      bytes_accessed=bytes_accessed),
    )(*operands)

    # Crop the valid interior back out (layout plumbing, stays in XLA).
    out = out[:, :, :Hp * Wp].reshape(N, Cout, Hp, Wp)
    return out[:, :, PMAX:PMAX + H, PMAX:PMAX + W]


# --------------------------------------------------------------------------
# Deterministic parameter init (synthetic, no checkpoint)
# --------------------------------------------------------------------------
def init_params(key, cin, cout):
    keys = iter(jax.random.split(key, 32))

    def nrm(shape, scale=0.1):
        return scale * jax.random.normal(next(keys), shape, dtype=jnp.float32)

    def bn():
        g = jax.random.uniform(next(keys), (cout,), jnp.float32, 0.5, 1.5)
        b = nrm((cout,))
        m = nrm((cout,))
        v = jax.random.uniform(next(keys), (cout,), jnp.float32, 0.5, 1.5)
        return (g, b, m, v)

    p = {
        "w0": nrm((cout, cin)),               # Conv2d(cin, cout, 1)
        "w1": nrm((cout, cin, 3, 3)),         # ASPPConv rate1
        "w2": nrm((cout, cin, 3, 3)),         # ASPPConv rate2
        "w3": nrm((cout, cin, 3, 3)),         # ASPPConv rate3
        "wp": nrm((cout, cin)),               # ASPPPooling 1x1 conv
        "wproj": nrm((cout, 5 * cout)),       # projection 1x1 conv
    }
    for name in ("bn0", "bn1", "bn2", "bn3", "bnp"):
        p[name] = bn()
    return p


def pack_params(p, eps=BN_EPS):
    """Fold eval-mode BN into scale/bias, fuse center taps, split wproj,
    pack non-center taps tap-major and pad Cin to the bf16 sublane packing."""
    cout, cin = p["w0"].shape
    cin_p = _round_up(cin, CIN_PACK)

    def pad_cin(w):  # zero-pad the input-channel axis (axis=1)
        pads = ((0, 0), (0, cin_p - cin)) + ((0, 0),) * (w.ndim - 2)
        return jnp.pad(w, pads)

    def fold(bn):
        g, b, m, v = bn
        s = g / jnp.sqrt(v + eps)
        return s.reshape(-1, 1), (b - m * s).reshape(-1, 1)

    def pack_nocenter(w):   # (Cout, Cin_p, 3, 3) -> (Cout, 8*Cin_p) tap-major
        taps = []
        for k in range(9):
            if k == 4:
                continue
            ky, kx = divmod(k, 3)
            taps.append(w[:, :, ky, kx])
        return jnp.concatenate(taps, axis=1)

    w0 = pad_cin(p["w0"])
    w1 = pad_cin(p["w1"]); w2 = pad_cin(p["w2"]); w3 = pad_cin(p["w3"])
    wp = pad_cin(p["wp"])

    w_center = jnp.concatenate(
        [w0, w1[:, :, 1, 1], w2[:, :, 1, 1], w3[:, :, 1, 1]], axis=0)

    s_parts, b_parts = [], []
    for name in ("bn0", "bn1", "bn2", "bn3"):
        s, b = fold(p[name])
        s_parts.append(s); b_parts.append(b)
    sproj, bproj = fold(p["bnp"])

    # (Cout, 5*Cout) -> (5, Cout, Cout): chunk k multiplies branch k's output.
    wproj = p["wproj"].reshape(cout, 5, cout).transpose(1, 0, 2)

    bf16 = jnp.bfloat16
    return dict(
        w_center=w_center.astype(bf16),
        wd1=pack_nocenter(w1).astype(bf16),
        wd2=pack_nocenter(w2).astype(bf16),
        wd3=pack_nocenter(w3).astype(bf16),
        s_br=jnp.concatenate(s_parts, axis=0),      # (4*Cout, 1) f32
        b_br=jnp.concatenate(b_parts, axis=0),      # (4*Cout, 1) f32
        wp=wp.astype(bf16),                          # (Cout, Cin_p)
        wproj=wproj.astype(bf16),                    # (5, Cout, Cout)
        sproj=sproj, bproj=bproj)                    # (Cout, 1) f32


# --------------------------------------------------------------------------
# Plain-JAX reference (mirrors the PyTorch forward, eval mode)
# --------------------------------------------------------------------------
def aspp_reference(x, p, rates=ATROUS_RATES, eps=BN_EPS):
    prec = lax.Precision.HIGHEST

    def bn_relu(y, bn):
        g, b, m, v = bn
        s = g / jnp.sqrt(v + eps)
        return jax.nn.relu(y * s[None, :, None, None]
                           + (b - m * s)[None, :, None, None])

    res = [bn_relu(jnp.einsum("nchw,oc->nohw", x, p["w0"], precision=prec),
                   p["bn0"])]
    for wk, bnk, d in zip(("w1", "w2", "w3"), ("bn1", "bn2", "bn3"), rates):
        y = lax.conv_general_dilated(
            x, p[wk], (1, 1), [(d, d), (d, d)],
            rhs_dilation=(d, d),
            dimension_numbers=("NCHW", "OIHW", "NCHW"),
            precision=prec)
        res.append(bn_relu(y, p[bnk]))
    xm = jnp.mean(x, axis=(2, 3))                                   # (N, Cin)
    yp = jax.nn.relu(jnp.einsum("nc,oc->no", xm, p["wp"], precision=prec))
    res.append(jnp.broadcast_to(yp[:, :, None, None], res[0].shape))
    cat = jnp.concatenate(res, axis=1)
    yproj = jnp.einsum("nchw,oc->nohw", cat, p["wproj"], precision=prec)
    return bn_relu(yproj, p["bnp"])


# --------------------------------------------------------------------------
if __name__ == "__main__":
    N, Cin, H, W, Cout = 2, 4, 16, 16, 8
    key = jax.random.PRNGKey(0)
    kx, kparams = jax.random.split(key)
    x = jax.random.normal(kx, (N, Cin, H, W), dtype=jnp.float32)

    params = init_params(kparams, Cin, Cout)
    packed = pack_params(params)

    out = aspp_forward(x, packed)
    out = jax.block_until_ready(out)
    assert out.shape == (N, Cout, H, W), out.shape

    ref = aspp_reference(x, params)
    max_err = float(jnp.max(jnp.abs(out - ref)))
    ref_scale = float(jnp.max(jnp.abs(ref)))
    # bf16 MXU operands (one-pass) vs a HIGHEST-precision f32 reference.
    tol = 1e-2 + 2e-2 * max(1.0, ref_scale)
    if not (max_err < tol):
        raise AssertionError(
            f"kernel mismatch vs reference, max|err|={max_err}, tol={tol}")

    print("KERNEL_OK")
</pallas_src>

<mosaic_0001>
module attributes {stable_mosaic.version = 11 : i64} {
  func.func @_aspp_kernel(%arg0: i32, %arg1: memref<1x16x1408xbf16, #tpu.memory_space<vmem>>, %arg2: memref<32x16xbf16, #tpu.memory_space<vmem>>, %arg3: memref<8x128xbf16, #tpu.memory_space<vmem>>, %arg4: memref<8x128xbf16, #tpu.memory_space<vmem>>, %arg5: memref<8x128xbf16, #tpu.memory_space<vmem>>, %arg6: memref<32x1xf32, #tpu.memory_space<vmem>>, %arg7: memref<32x1xf32, #tpu.memory_space<vmem>>, %arg8: memref<8x16xbf16, #tpu.memory_space<vmem>>, %arg9: memref<5x8x8xbf16, #tpu.memory_space<vmem>>, %arg10: memref<8x1xf32, #tpu.memory_space<vmem>>, %arg11: memref<8x1xf32, #tpu.memory_space<vmem>>, %arg12: memref<1x8x896xf32, #tpu.memory_space<vmem>>) attributes {dimension_semantics = [#tpu.dimension_semantics<parallel>], iteration_bounds = array<i64: 2>, scalar_prefetch = 0 : i64, scratch_operands = 0 : i64, tpu.core_type = #tpu.core_type<tc>, window_params = [{transform_indices = @transform_0, window_bounds = array<i64: 1, 16, 1408>}, {pipeline_mode = #tpu.pipeline_mode<synchronous>, transform_indices = @transform_1, window_bounds = array<i64: 32, 16>}, {pipeline_mode = #tpu.pipeline_mode<synchronous>, transform_indices = @transform_2, window_bounds = array<i64: 8, 128>}, {pipeline_mode = #tpu.pipeline_mode<synchronous>, transform_indices = @transform_3, window_bounds = array<i64: 8, 128>}, {pipeline_mode = #tpu.pipeline_mode<synchronous>, transform_indices = @transform_4, window_bounds = array<i64: 8, 128>}, {pipeline_mode = #tpu.pipeline_mode<synchronous>, transform_indices = @transform_5, window_bounds = array<i64: 32, 1>}, {pipeline_mode = #tpu.pipeline_mode<synchronous>, transform_indices = @transform_6, window_bounds = array<i64: 32, 1>}, {pipeline_mode = #tpu.pipeline_mode<synchronous>, transform_indices = @transform_7, window_bounds = array<i64: 8, 16>}, {pipeline_mode = #tpu.pipeline_mode<synchronous>, transform_indices = @transform_8, window_bounds = array<i64: 5, 8, 8>}, {pipeline_mode = #tpu.pipeline_mode<synchronous>, transform_indices = @transform_9, window_bounds = array<i64: 8, 1>}, {pipeline_mode = #tpu.pipeline_mode<synchronous>, transform_indices = @transform_10, window_bounds = array<i64: 8, 1>}, {transform_indices = @transform_11, window_bounds = array<i64: 1, 8, 896>}]} {
    %c0 = arith.constant 0 : index
    %c0_0 = arith.constant 0 : index
    %c256 = arith.constant 256 : index
    %0 = vector.load %arg1[%c0, %c0_0, %c256] : memref<1x16x1408xbf16, #tpu.memory_space<vmem>>, vector<1x16x896xbf16>
    %1 = vector.shape_cast %0 : vector<1x16x896xbf16> to vector<16x896xbf16>
    %c0_1 = arith.constant 0 : index
    %c0_2 = arith.constant 0 : index
    %2 = vector.load %arg2[%c0_1, %c0_2] : memref<32x16xbf16, #tpu.memory_space<vmem>>, vector<32x16xbf16>
    %cst = arith.constant dense<0.000000e+00> : vector<32x896xf32>
    %3 = tpu.matmul %2, %1, %cst {dimension_numbers = #tpu.dot_dimension_numbers<[1], [0], [0], [1], [0, 0, 1, 1], [], []>} : vector<32x16xbf16>, vector<16x896xbf16>, vector<32x896xf32> -> vector<32x896xf32>
    %4 = vector.extract_strided_slice %3 {offsets = [0, 0], sizes = [8, 896], strides = [1, 1]} : vector<32x896xf32> to vector<8x896xf32>
    %c0_3 = arith.constant 0 : index
    %c0_4 = arith.constant 0 : index
    %5 = vector.load %arg6[%c0_3, %c0_4] : memref<32x1xf32, #tpu.memory_space<vmem>>, vector<8x1xf32>
    %6 = vector.broadcast %5 : vector<8x1xf32> to vector<8x896xf32>
    %7 = arith.mulf %4, %6 : vector<8x896xf32>
    %c0_5 = arith.constant 0 : index
    %c0_6 = arith.constant 0 : index
    %8 = vector.load %arg7[%c0_5, %c0_6] : memref<32x1xf32, #tpu.memory_space<vmem>>, vector<8x1xf32>
    %9 = vector.broadcast %8 : vector<8x1xf32> to vector<8x896xf32>
    %10 = arith.addf %7, %9 : vector<8x896xf32>
    %cst_7 = arith.constant 0.000000e+00 : f32
    %11 = vector.broadcast %cst_7 : f32 to vector<8x896xf32>
    %12 = arith.maximumf %10, %11 : vector<8x896xf32>
    %c0_8 = arith.constant 0 : index
    %c0_9 = arith.constant 0 : index
    %c0_10 = arith.constant 0 : index
    %13 = vector.load %arg9[%c0_8, %c0_9, %c0_10] : memref<5x8x8xbf16, #tpu.memory_space<vmem>>, vector<1x8x8xbf16>
    %14 = vector.shape_cast %13 : vector<1x8x8xbf16> to vector<8x8xbf16>
    %15 = arith.truncf %12 : vector<8x896xf32> to vector<8x896xbf16>
    %cst_11 = arith.constant dense<0.000000e+00> : vector<8x896xf32>
    %16 = tpu.matmul %14, %15, %cst_11 {dimension_numbers = #tpu.dot_dimension_numbers<[1], [0], [0], [1], [0, 0, 1, 1], [], []>} : vector<8x8xbf16>, vector<8x896xbf16>, vector<8x896xf32> -> vector<8x896xf32>
    %c0_12 = arith.constant 0 : index
    %c0_13 = arith.constant 0 : index
    %c198 = arith.constant 198 : index
    %17 = vector.load %arg1[%c0_12, %c0_13, %c198] : memref<1x16x1408xbf16, #tpu.memory_space<vmem>>, vector<1x16x896xbf16>
    %18 = vector.shape_cast %17 : vector<1x16x896xbf16> to vector<16x896xbf16>
    %c0_14 = arith.constant 0 : index
    %c0_15 = arith.constant 0 : index
    %c200 = arith.constant 200 : index
    %19 = vector.load %arg1[%c0_14, %c0_15, %c200] : memref<1x16x1408xbf16, #tpu.memory_space<vmem>>, vector<1x16x896xbf16>
    %20 = vector.shape_cast %19 : vector<1x16x896xbf16> to vector<16x896xbf16>
    %c0_16 = arith.constant 0 : index
    %c0_17 = arith.constant 0 : index
    %c202 = arith.constant 202 : index
    %21 = vector.load %arg1[%c0_16, %c0_17, %c202] : memref<1x16x1408xbf16, #tpu.memory_space<vmem>>, vector<1x16x896xbf16>
    %22 = vector.shape_cast %21 : vector<1x16x896xbf16> to vector<16x896xbf16>
    %c0_18 = arith.constant 0 : index
    %c0_19 = arith.constant 0 : index
    %c254 = arith.constant 254 : index
    %23 = vector.load %arg1[%c0_18, %c0_19, %c254] : memref<1x16x1408xbf16, #tpu.memory_space<vmem>>, vector<1x16x896xbf16>
    %24 = vector.shape_cast %23 : vector<1x16x896xbf16> to vector<16x896xbf16>
    %c0_20 = arith.constant 0 : index
    %c0_21 = arith.constant 0 : index
    %c258 = arith.constant 258 : index
    %25 = vector.load %arg1[%c0_20, %c0_21, %c258] : memref<1x16x1408xbf16, #tpu.memory_space<vmem>>, vector<1x16x896xbf16>
    %26 = vector.shape_cast %25 : vector<1x16x896xbf16> to vector<16x896xbf16>
    %c0_22 = arith.constant 0 : index
    %c0_23 = arith.constant 0 : index
    %c310 = arith.constant 310 : index
    %27 = vector.load %arg1[%c0_22, %c0_23, %c310] : memref<1x16x1408xbf16, #tpu.memory_space<vmem>>, vector<1x16x896xbf16>
    %28 = vector.shape_cast %27 : vector<1x16x896xbf16> to vector<16x896xbf16>
    %c0_24 = arith.constant 0 : index
    %c0_25 = arith.constant 0 : index
    %c312 = arith.constant 312 : index
    %29 = vector.load %arg1[%c0_24, %c0_25, %c312] : memref<1x16x1408xbf16, #tpu.memory_space<vmem>>, vector<1x16x896xbf16>
    %30 = vector.shape_cast %29 : vector<1x16x896xbf16> to vector<16x896xbf16>
    %c0_26 = arith.constant 0 : index
    %c0_27 = arith.constant 0 : index
    %c314 = arith.constant 314 : index
    %31 = vector.load %arg1[%c0_26, %c0_27, %c314] : memref<1x16x1408xbf16, #tpu.memory_space<vmem>>, vector<1x16x896xbf16>
    %32 = vector.shape_cast %31 : vector<1x16x896xbf16> to vector<16x896xbf16>
    %33 = tpu.concatenate %18, %20, %22, %24, %26, %28, %30, %32 in 0 : vector<16x896xbf16>, vector<16x896xbf16>, vector<16x896xbf16>, vector<16x896xbf16>, vector<16x896xbf16>, vector<16x896xbf16>, vector<16x896xbf16>, vector<16x896xbf16> -> vector<128x896xbf16>
    %34 = vector.extract_strided_slice %3 {offsets = [8, 0], sizes = [8, 896], strides = [1, 1]} : vector<32x896xf32> to vector<8x896xf32>
    %c0_28 = arith.constant 0 : index
    %c0_29 = arith.constant 0 : index
    %35 = vector.load %arg3[%c0_28, %c0_29] : memref<8x128xbf16, #tpu.memory_space<vmem>>, vector<8x128xbf16>
    %cst_30 = arith.constant dense<0.000000e+00> : vector<8x896xf32>
    %36 = tpu.matmul %35, %33, %cst_30 {dimension_numbers = #tpu.dot_dimension_numbers<[1], [0], [0], [1], [0, 0, 1, 1], [], []>} : vector<8x128xbf16>, vector<128x896xbf16>, vector<8x896xf32> -> vector<8x896xf32>
    %37 = arith.addf %34, %36 : vector<8x896xf32>
    %c8 = arith.constant 8 : index
    %c0_31 = arith.constant 0 : index
    %38 = vector.load %arg6[%c8, %c0_31] : memref<32x1xf32, #tpu.memory_space<vmem>>, vector<8x1xf32>
    %39 = vector.broadcast %38 : vector<8x1xf32> to vector<8x896xf32>
    %40 = arith.mulf %37, %39 : vector<8x896xf32>
    %c8_32 = arith.constant 8 : index
    %c0_33 = arith.constant 0 : index
    %41 = vector.load %arg7[%c8_32, %c0_33] : memref<32x1xf32, #tpu.memory_space<vmem>>, vector<8x1xf32>
    %42 = vector.broadcast %41 : vector<8x1xf32> to vector<8x896xf32>
    %43 = arith.addf %40, %42 : vector<8x896xf32>
    %cst_34 = arith.constant 0.000000e+00 : f32
    %44 = vector.broadcast %cst_34 : f32 to vector<8x896xf32>
    %45 = arith.maximumf %43, %44 : vector<8x896xf32>
    %c1 = arith.constant 1 : index
    %c0_35 = arith.constant 0 : index
    %c0_36 = arith.constant 0 : index
    %46 = vector.load %arg9[%c1, %c0_35, %c0_36] : memref<5x8x8xbf16, #tpu.memory_space<vmem>>, vector<1x8x8xbf16>
    %47 = vector.shape_cast %46 : vector<1x8x8xbf16> to vector<8x8xbf16>
    %48 = arith.truncf %45 : vector<8x896xf32> to vector<8x896xbf16>
    %cst_37 = arith.constant dense<0.000000e+00> : vector<8x896xf32>
    %49 = tpu.matmul %47, %48, %cst_37 {dimension_numbers = #tpu.dot_dimension_numbers<[1], [0], [0], [1], [0, 0, 1, 1], [], []>} : vector<8x8xbf16>, vector<8x896xbf16>, vector<8x896xf32> -> vector<8x896xf32>
    %50 = arith.addf %16, %49 : vector<8x896xf32>
    %c0_38 = arith.constant 0 : index
    %c0_39 = arith.constant 0 : index
    %c140 = arith.constant 140 : index
    %51 = vector.load %arg1[%c0_38, %c0_39, %c140] : memref<1x16x1408xbf16, #tpu.memory_space<vmem>>, vector<1x16x896xbf16>
    %52 = vector.shape_cast %51 : vector<1x16x896xbf16> to vector<16x896xbf16>
    %c0_40 = arith.constant 0 : index
    %c0_41 = arith.constant 0 : index
    %c144 = arith.constant 144 : index
    %53 = vector.load %arg1[%c0_40, %c0_41, %c144] : memref<1x16x1408xbf16, #tpu.memory_space<vmem>>, vector<1x16x896xbf16>
    %54 = vector.shape_cast %53 : vector<1x16x896xbf16> to vector<16x896xbf16>
    %c0_42 = arith.constant 0 : index
    %c0_43 = arith.constant 0 : index
    %c148 = arith.constant 148 : index
    %55 = vector.load %arg1[%c0_42, %c0_43, %c148] : memref<1x16x1408xbf16, #tpu.memory_space<vmem>>, vector<1x16x896xbf16>
    %56 = vector.shape_cast %55 : vector<1x16x896xbf16> to vector<16x896xbf16>
    %c0_44 = arith.constant 0 : index
    %c0_45 = arith.constant 0 : index
    %c252 = arith.constant 252 : index
    %57 = vector.load %arg1[%c0_44, %c0_45, %c252] : memref<1x16x1408xbf16, #tpu.memory_space<vmem>>, vector<1x16x896xbf16>
    %58 = vector.shape_cast %57 : vector<1x16x896xbf16> to vector<16x896xbf16>
    %c0_46 = arith.constant 0 : index
    %c0_47 = arith.constant 0 : index
    %c260 = arith.constant 260 : index
    %59 = vector.load %arg1[%c0_46, %c0_47, %c260] : memref<1x16x1408xbf16, #tpu.memory_space<vmem>>, vector<1x16x896xbf16>
    %60 = vector.shape_cast %59 : vector<1x16x896xbf16> to vector<16x896xbf16>
    %c0_48 = arith.constant 0 : index
    %c0_49 = arith.constant 0 : index
    %c364 = arith.constant 364 : index
    %61 = vector.load %arg1[%c0_48, %c0_49, %c364] : memref<1x16x1408xbf16, #tpu.memory_space<vmem>>, vector<1x16x896xbf16>
    %62 = vector.shape_cast %61 : vector<1x16x896xbf16> to vector<16x896xbf16>
    %c0_50 = arith.constant 0 : index
    %c0_51 = arith.constant 0 : index
    %c368 = arith.constant 368 : index
    %63 = vector.load %arg1[%c0_50, %c0_51, %c368] : memref<1x16x1408xbf16, #tpu.memory_space<vmem>>, vector<1x16x896xbf16>
    %64 = vector.shape_cast %63 : vector<1x16x896xbf16> to vector<16x896xbf16>
    %c0_52 = arith.constant 0 : index
    %c0_53 = arith.constant 0 : index
    %c372 = arith.constant 372 : index
    %65 = vector.load %arg1[%c0_52, %c0_53, %c372] : memref<1x16x1408xbf16, #tpu.memory_space<vmem>>, vector<1x16x896xbf16>
    %66 = vector.shape_cast %65 : vector<1x16x896xbf16> to vector<16x896xbf16>
    %67 = tpu.concatenate %52, %54, %56, %58, %60, %62, %64, %66 in 0 : vector<16x896xbf16>, vector<16x896xbf16>, vector<16x896xbf16>, vector<16x896xbf16>, vector<16x896xbf16>, vector<16x896xbf16>, vector<16x896xbf16>, vector<16x896xbf16> -> vector<128x896xbf16>
    %68 = vector.extract_strided_slice %3 {offsets = [16, 0], sizes = [8, 896], strides = [1, 1]} : vector<32x896xf32> to vector<8x896xf32>
    %c0_54 = arith.constant 0 : index
    %c0_55 = arith.constant 0 : index
    %69 = vector.load %arg4[%c0_54, %c0_55] : memref<8x128xbf16, #tpu.memory_space<vmem>>, vector<8x128xbf16>
    %cst_56 = arith.constant dense<0.000000e+00> : vector<8x896xf32>
    %70 = tpu.matmul %69, %67, %cst_56 {dimension_numbers = #tpu.dot_dimension_numbers<[1], [0], [0], [1], [0, 0, 1, 1], [], []>} : vector<8x128xbf16>, vector<128x896xbf16>, vector<8x896xf32> -> vector<8x896xf32>
    %71 = arith.addf %68, %70 : vector<8x896xf32>
    %c16 = arith.constant 16 : index
    %c0_57 = arith.constant 0 : index
    %72 = vector.load %arg6[%c16, %c0_57] : memref<32x1xf32, #tpu.memory_space<vmem>>, vector<8x1xf32>
    %73 = vector.broadcast %72 : vector<8x1xf32> to vector<8x896xf32>
    %74 = arith.mulf %71, %73 : vector<8x896xf32>
    %c16_58 = arith.constant 16 : index
    %c0_59 = arith.constant 0 : index
    %75 = vector.load %arg7[%c16_58, %c0_59] : memref<32x1xf32, #tpu.memory_space<vmem>>, vector<8x1xf32>
    %76 = vector.broadcast %75 : vector<8x1xf32> to vector<8x896xf32>
    %77 = arith.addf %74, %76 : vector<8x896xf32>
    %cst_60 = arith.constant 0.000000e+00 : f32
    %78 = vector.broadcast %cst_60 : f32 to vector<8x896xf32>
    %79 = arith.maximumf %77, %78 : vector<8x896xf32>
    %c2 = arith.constant 2 : index
    %c0_61 = arith.constant 0 : index
    %c0_62 = arith.constant 0 : index
    %80 = vector.load %arg9[%c2, %c0_61, %c0_62] : memref<5x8x8xbf16, #tpu.memory_space<vmem>>, vector<1x8x8xbf16>
    %81 = vector.shape_cast %80 : vector<1x8x8xbf16> to vector<8x8xbf16>
    %82 = arith.truncf %79 : vector<8x896xf32> to vector<8x896xbf16>
    %cst_63 = arith.constant dense<0.000000e+00> : vector<8x896xf32>
    %83 = tpu.matmul %81, %82, %cst_63 {dimension_numbers = #tpu.dot_dimension_numbers<[1], [0], [0], [1], [0, 0, 1, 1], [], []>} : vector<8x8xbf16>, vector<8x896xbf16>, vector<8x896xf32> -> vector<8x896xf32>
    %84 = arith.addf %50, %83 : vector<8x896xf32>
    %c0_64 = arith.constant 0 : index
    %c0_65 = arith.constant 0 : index
    %c82 = arith.constant 82 : index
    %85 = vector.load %arg1[%c0_64, %c0_65, %c82] : memref<1x16x1408xbf16, #tpu.memory_space<vmem>>, vector<1x16x896xbf16>
    %86 = vector.shape_cast %85 : vector<1x16x896xbf16> to vector<16x896xbf16>
    %c0_66 = arith.constant 0 : index
    %c0_67 = arith.constant 0 : index
    %c88 = arith.constant 88 : index
    %87 = vector.load %arg1[%c0_66, %c0_67, %c88] : memref<1x16x1408xbf16, #tpu.memory_space<vmem>>, vector<1x16x896xbf16>
    %88 = vector.shape_cast %87 : vector<1x16x896xbf16> to vector<16x896xbf16>
    %c0_68 = arith.constant 0 : index
    %c0_69 = arith.constant 0 : index
    %c94 = arith.constant 94 : index
    %89 = vector.load %arg1[%c0_68, %c0_69, %c94] : memref<1x16x1408xbf16, #tpu.memory_space<vmem>>, vector<1x16x896xbf16>
    %90 = vector.shape_cast %89 : vector<1x16x896xbf16> to vector<16x896xbf16>
    %c0_70 = arith.constant 0 : index
    %c0_71 = arith.constant 0 : index
    %c250 = arith.constant 250 : index
    %91 = vector.load %arg1[%c0_70, %c0_71, %c250] : memref<1x16x1408xbf16, #tpu.memory_space<vmem>>, vector<1x16x896xbf16>
    %92 = vector.shape_cast %91 : vector<1x16x896xbf16> to vector<16x896xbf16>
    %c0_72 = arith.constant 0 : index
    %c0_73 = arith.constant 0 : index
    %c262 = arith.constant 262 : index
    %93 = vector.load %arg1[%c0_72, %c0_73, %c262] : memref<1x16x1408xbf16, #tpu.memory_space<vmem>>, vector<1x16x896xbf16>
    %94 = vector.shape_cast %93 : vector<1x16x896xbf16> to vector<16x896xbf16>
    %c0_74 = arith.constant 0 : index
    %c0_75 = arith.constant 0 : index
    %c418 = arith.constant 418 : index
    %95 = vector.load %arg1[%c0_74, %c0_75, %c418] : memref<1x16x1408xbf16, #tpu.memory_space<vmem>>, vector<1x16x896xbf16>
    %96 = vector.shape_cast %95 : vector<1x16x896xbf16> to vector<16x896xbf16>
    %c0_76 = arith.constant 0 : index
    %c0_77 = arith.constant 0 : index
    %c424 = arith.constant 424 : index
    %97 = vector.load %arg1[%c0_76, %c0_77, %c424] : memref<1x16x1408xbf16, #tpu.memory_space<vmem>>, vector<1x16x896xbf16>
    %98 = vector.shape_cast %97 : vector<1x16x896xbf16> to vector<16x896xbf16>
    %c0_78 = arith.constant 0 : index
    %c0_79 = arith.constant 0 : index
    %c430 = arith.constant 430 : index
    %99 = vector.load %arg1[%c0_78, %c0_79, %c430] : memref<1x16x1408xbf16, #tpu.memory_space<vmem>>, vector<1x16x896xbf16>
    %100 = vector.shape_cast %99 : vector<1x16x896xbf16> to vector<16x896xbf16>
    %101 = tpu.concatenate %86, %88, %90, %92, %94, %96, %98, %100 in 0 : vector<16x896xbf16>, vector<16x896xbf16>, vector<16x896xbf16>, vector<16x896xbf16>, vector<16x896xbf16>, vector<16x896xbf16>, vector<16x896xbf16>, vector<16x896xbf16> -> vector<128x896xbf16>
    %102 = vector.extract_strided_slice %3 {offsets = [24, 0], sizes = [8, 896], strides = [1, 1]} : vector<32x896xf32> to vector<8x896xf32>
    %c0_80 = arith.constant 0 : index
    %c0_81 = arith.constant 0 : index
    %103 = vector.load %arg5[%c0_80, %c0_81] : memref<8x128xbf16, #tpu.memory_space<vmem>>, vector<8x128xbf16>
    %cst_82 = arith.constant dense<0.000000e+00> : vector<8x896xf32>
    %104 = tpu.matmul %103, %101, %cst_82 {dimension_numbers = #tpu.dot_dimension_numbers<[1], [0], [0], [1], [0, 0, 1, 1], [], []>} : vector<8x128xbf16>, vector<128x896xbf16>, vector<8x896xf32> -> vector<8x896xf32>
    %105 = arith.addf %102, %104 : vector<8x896xf32>
    %c24 = arith.constant 24 : index
    %c0_83 = arith.constant 0 : index
    %106 = vector.load %arg6[%c24, %c0_83] : memref<32x1xf32, #tpu.memory_space<vmem>>, vector<8x1xf32>
    %107 = vector.broadcast %106 : vector<8x1xf32> to vector<8x896xf32>
    %108 = arith.mulf %105, %107 : vector<8x896xf32>
    %c24_84 = arith.constant 24 : index
    %c0_85 = arith.constant 0 : index
    %109 = vector.load %arg7[%c24_84, %c0_85] : memref<32x1xf32, #tpu.memory_space<vmem>>, vector<8x1xf32>
    %110 = vector.broadcast %109 : vector<8x1xf32> to vector<8x896xf32>
    %111 = arith.addf %108, %110 : vector<8x896xf32>
    %cst_86 = arith.constant 0.000000e+00 : f32
    %112 = vector.broadcast %cst_86 : f32 to vector<8x896xf32>
    %113 = arith.maximumf %111, %112 : vector<8x896xf32>
    %c3 = arith.constant 3 : index
    %c0_87 = arith.constant 0 : index
    %c0_88 = arith.constant 0 : index
    %114 = vector.load %arg9[%c3, %c0_87, %c0_88] : memref<5x8x8xbf16, #tpu.memory_space<vmem>>, vector<1x8x8xbf16>
    %115 = vector.shape_cast %114 : vector<1x8x8xbf16> to vector<8x8xbf16>
    %116 = arith.truncf %113 : vector<8x896xf32> to vector<8x896xbf16>
    %cst_89 = arith.constant dense<0.000000e+00> : vector<8x896xf32>
    %117 = tpu.matmul %115, %116, %cst_89 {dimension_numbers = #tpu.dot_dimension_numbers<[1], [0], [0], [1], [0, 0, 1, 1], [], []>} : vector<8x8xbf16>, vector<8x896xbf16>, vector<8x896xf32> -> vector<8x896xf32>
    %118 = arith.addf %84, %117 : vector<8x896xf32>
    %119 = arith.extf %1 : vector<16x896xbf16> to vector<16x896xf32>
    %cst_90 = arith.constant dense<0.000000e+00> : vector<16xf32>
    %120 = vector.multi_reduction <add>, %119, %cst_90 [1] : vector<16x896xf32> to vector<16xf32>
    %121 = vector.shape_cast %120 : vector<16xf32> to vector<16x1xf32>
    %cst_91 = arith.constant 3.906250e-03 : f32
    %122 = vector.broadcast %cst_91 : f32 to vector<16x1xf32>
    %123 = arith.mulf %121, %122 : vector<16x1xf32>
    %c0_92 = arith.constant 0 : index
    %c0_93 = arith.constant 0 : index
    %124 = vector.load %arg8[%c0_92, %c0_93] : memref<8x16xbf16, #tpu.memory_space<vmem>>, vector<8x16xbf16>
    %125 = arith.extf %124 : vector<8x16xbf16> to vector<8x16xf32>
    %cst_94 = arith.constant dense<0.000000e+00> : vector<8x1xf32>
    %126 = tpu.matmul %125, %123, %cst_94 {dimension_numbers = #tpu.dot_dimension_numbers<[1], [0], [0], [1], [0, 0, 1, 1], [], []>} : vector<8x16xf32>, vector<16x1xf32>, vector<8x1xf32> -> vector<8x1xf32>
    %cst_95 = arith.constant 0.000000e+00 : f32
    %127 = vector.broadcast %cst_95 : f32 to vector<8x1xf32>
    %128 = arith.maximumf %126, %127 : vector<8x1xf32>
    %c4 = arith.constant 4 : index
    %c0_96 = arith.constant 0 : index
    %c0_97 = arith.constant 0 : index
    %129 = vector.load %arg9[%c4, %c0_96, %c0_97] : memref<5x8x8xbf16, #tpu.memory_space<vmem>>, vector<1x8x8xbf16>
    %130 = vector.shape_cast %129 : vector<1x8x8xbf16> to vector<8x8xbf16>
    %131 = arith.extf %130 : vector<8x8xbf16> to vector<8x8xf32>
    %cst_98 = arith.constant dense<0.000000e+00> : vector<8x1xf32>
    %132 = tpu.matmul %131, %128, %cst_98 {dimension_numbers = #tpu.dot_dimension_numbers<[1], [0], [0], [1], [0, 0, 1, 1], [], []>} : vector<8x8xf32>, vector<8x1xf32>, vector<8x1xf32> -> vector<8x1xf32>
    %133 = vector.broadcast %132 : vector<8x1xf32> to vector<8x896xf32>
    %134 = arith.addf %118, %133 : vector<8x896xf32>
    %c0_99 = arith.constant 0 : index
    %c0_100 = arith.constant 0 : index
    %135 = vector.load %arg10[%c0_99, %c0_100] : memref<8x1xf32, #tpu.memory_space<vmem>>, vector<8x1xf32>
    %136 = vector.broadcast %135 : vector<8x1xf32> to vector<8x896xf32>
    %137 = arith.mulf %134, %136 : vector<8x896xf32>
    %c0_101 = arith.constant 0 : index
    %c0_102 = arith.constant 0 : index
    %138 = vector.load %arg11[%c0_101, %c0_102] : memref<8x1xf32, #tpu.memory_space<vmem>>, vector<8x1xf32>
    %139 = vector.broadcast %138 : vector<8x1xf32> to vector<8x896xf32>
    %140 = arith.addf %137, %139 : vector<8x896xf32>
    %cst_103 = arith.constant 0.000000e+00 : f32
    %141 = vector.broadcast %cst_103 : f32 to vector<8x896xf32>
    %142 = arith.maximumf %140, %141 : vector<8x896xf32>
    %c0_104 = arith.constant 0 : index
    %c0_105 = arith.constant 0 : index
    %c0_106 = arith.constant 0 : index
    %143 = vector.load %arg12[%c0_104, %c0_105, %c0_106] : memref<1x8x896xf32, #tpu.memory_space<vmem>>, vector<1x8x896xf32>
    %144 = vector.shape_cast %143 : vector<1x8x896xf32> to vector<8x896xf32>
    %145 = vector.shape_cast %142 : vector<8x896xf32> to vector<1x8x896xf32>
    tpu.vector_store %arg12[%c0_104, %c0_105, %c0_106], %145 {strides = array<i32>} : memref<1x8x896xf32, #tpu.memory_space<vmem>>, vector<1x8x896xf32>,
    return
  }
  func.func @transform_0(%arg0: i32) -> (i32, i32, i32) {
    %c0_i32 = arith.constant 0 : i32
    %c0_i32_0 = arith.constant 0 : i32
    %c0_i32_1 = arith.constant 0 : i32
    return %arg0, %c0_i32, %c0_i32_0 : i32, i32, i32
  }
  func.func @transform_1(%arg0: i32) -> (i32, i32) {
    %c0_i32 = arith.constant 0 : i32
    %c0_i32_0 = arith.constant 0 : i32
    %c0_i32_1 = arith.constant 0 : i32
    return %c0_i32, %c0_i32_0 : i32, i32
  }
  func.func @transform_2(%arg0: i32) -> (i32, i32) {
    %c0_i32 = arith.constant 0 : i32
    %c0_i32_0 = arith.constant 0 : i32
    %c0_i32_1 = arith.constant 0 : i32
    return %c0_i32, %c0_i32_0 : i32, i32
  }
  func.func @transform_3(%arg0: i32) -> (i32, i32) {
    %c0_i32 = arith.constant 0 : i32
    %c0_i32_0 = arith.constant 0 : i32
    %c0_i32_1 = arith.constant 0 : i32
    return %c0_i32, %c0_i32_0 : i32, i32
  }
  func.func @transform_4(%arg0: i32) -> (i32, i32) {
    %c0_i32 = arith.constant 0 : i32
    %c0_i32_0 = arith.constant 0 : i32
    %c0_i32_1 = arith.constant 0 : i32
    return %c0_i32, %c0_i32_0 : i32, i32
  }
  func.func @transform_5(%arg0: i32) -> (i32, i32) {
    %c0_i32 = arith.constant 0 : i32
    %c0_i32_0 = arith.constant 0 : i32
    %c0_i32_1 = arith.constant 0 : i32
    return %c0_i32, %c0_i32_0 : i32, i32
  }
  func.func @transform_6(%arg0: i32) -> (i32, i32) {
    %c0_i32 = arith.constant 0 : i32
    %c0_i32_0 = arith.constant 0 : i32
    %c0_i32_1 = arith.constant 0 : i32
    return %c0_i32, %c0_i32_0 : i32, i32
  }
  func.func @transform_7(%arg0: i32) -> (i32, i32) {
    %c0_i32 = arith.constant 0 : i32
    %c0_i32_0 = arith.constant 0 : i32
    %c0_i32_1 = arith.constant 0 : i32
    return %c0_i32, %c0_i32_0 : i32, i32
  }
  func.func @transform_8(%arg0: i32) -> (i32, i32, i32) {
    %c0_i32 = arith.constant 0 : i32
    %c0_i32_0 = arith.constant 0 : i32
    %c0_i32_1 = arith.constant 0 : i32
    %c0_i32_2 = arith.constant 0 : i32
    return %c0_i32, %c0_i32_0, %c0_i32_1 : i32, i32, i32
  }
  func.func @transform_9(%arg0: i32) -> (i32, i32) {
    %c0_i32 = arith.constant 0 : i32
    %c0_i32_0 = arith.constant 0 : i32
    %c0_i32_1 = arith.constant 0 : i32
    return %c0_i32, %c0_i32_0 : i32, i32
  }
  func.func @transform_10(%arg0: i32) -> (i32, i32) {
    %c0_i32 = arith.constant 0 : i32
    %c0_i32_0 = arith.constant 0 : i32
    %c0_i32_1 = arith.constant 0 : i32
    return %c0_i32, %c0_i32_0 : i32, i32
  }
  func.func @transform_11(%arg0: i32) -> (i32, i32, i32) {
    %c0_i32 = arith.constant 0 : i32
    %c0_i32_0 = arith.constant 0 : i32
    %c0_i32_1 = arith.constant 0 : i32
    return %arg0, %c0_i32, %c0_i32_0 : i32, i32, i32
  }
}

</mosaic_0001>

<llo_original>
// kernel: tpu_custom_call.1
$region0: #{tpu_custom_call.1}
  #allocation0 [shape = 'u32[]', space=smem, size = 0x4, offset = 0x4, fixed_abs, tag = 'smem constant byte address 0x4 - core index']
  #allocation1 [shape = 'u32[144,128]{1,0:T(1,128)}', space=vmem, size = 0x12000, scoped, tag = 'internal scratch']
  %s0 = inlined_call_operand.hbm [shape: bf16[2,16,1408], index: 0, kind: input, shape index: {}]
  %s1 = inlined_call_operand.vmem [shape: bf16[32,16], index: 1, kind: input, shape index: {}]
  %s2 = inlined_call_operand.vmem [shape: bf16[8,128], index: 2, kind: input, shape index: {}]
  %s3 = inlined_call_operand.vmem [shape: bf16[8,128], index: 3, kind: input, shape index: {}]
  %s4 = inlined_call_operand.vmem [shape: bf16[8,128], index: 4, kind: input, shape index: {}]
  %s5 = inlined_call_operand.vmem [shape: f32[32,1], index: 5, kind: input, shape index: {}]
  %s6 = inlined_call_operand.vmem [shape: f32[32,1], index: 6, kind: input, shape index: {}]
  %s7 = inlined_call_operand.vmem [shape: bf16[8,16], index: 7, kind: input, shape index: {}]
  %s8 = inlined_call_operand.vmem [shape: bf16[5,8,8], index: 8, kind: input, shape index: {}]
  %s9 = inlined_call_operand.vmem [shape: f32[8,1], index: 9, kind: input, shape index: {}]
  %s10 = inlined_call_operand.vmem [shape: f32[8,1], index: 10, kind: input, shape index: {}]
  %s11 = inlined_call_operand.hbm [shape: f32[2,8,896], index: 11, kind: output, shape index: {}]
  %s12 = sld [smem:[#allocation0]]
  $region81: #{tpu_custom_call.1} parent=0
    _
  %s14 = ssub.s32 1, %s12
  %s15 = scalar_select 0, %s14, %s12
  $region1: #{tpu_custom_call.1} parent=0
    #allocation2 [shape = 'u8[90112]{0}', space=vmem, size = 0x16000, scoped, tag = 'input window, operand 0']
    #allocation3 [shape = 's32[2]{0}', space=sflag, size = 0x8, scoped, tag = 'scoped memory for tpu_custom_call.1']
    #allocation4 [shape = 's32[2]{0}', space=sflag, size = 0x8, scoped, tag = 'scoped memory for tpu_custom_call.1']
    #allocation5 [shape = 'u8[57344]{0}', space=vmem, size = 0xe000, scoped, tag = 'output window, operand 0']
    %16 = vsyncpa [#allocation3], 0
    %s17 = scalar_lea.sflag [#allocation3], 1
    %18 = vsyncpa %s17, 0
    %19 = vsyncpa [#allocation4], 0
    %s20 = scalar_lea.sflag [#allocation4], 1
    %21 = vsyncpa %s20, 0
    loop: start=0, step=1, limit=4
    $region2: #{tpu_custom_call.1} parent=1 // loop_pre_header
      _
    $region3: #{tpu_custom_call.1} parent=1 // loop_header
      %s23 = sphi 0, %s27
      %p24 = scmp.ge.s32.totalorder %s23, 4
      %s33 = sphi 0, %s35
      %s36 = sphi 0, %s33
      %s37 = sphi 0, %s36
      %s53 = sphi 0, %s37
      %s57 = sphi 0, %s57
      %s59 = sphi 0, %s57
      %s60 = sphi 0, %s59
      %s74 = sphi 0, %s60
      %s78 = sphi 0, %s78
      %s80 = sphi 0, %s78
      %s81 = sphi 0, %s80
      %s95 = sphi 0, %s81
      %s99 = sphi 0, %s99
      %s101 = sphi 0, %s99
      %s102 = sphi 0, %s101
      %s116 = sphi 0, %s102
      %s120 = sphi 0, %s120
      %s122 = sphi 0, %s120
      %s123 = sphi 0, %s122
      %s137 = sphi 0, %s123
      %s141 = sphi 0, %s141
      %s143 = sphi 0, %s141
      %s144 = sphi 0, %s143
      %s158 = sphi 0, %s144
      %s162 = sphi 0, %s162
      %s164 = sphi 0, %s162
      %s165 = sphi 0, %s164
      %s179 = sphi 0, %s165
      %s183 = sphi 0, %s183
      %s185 = sphi 0, %s183
      %s186 = sphi 0, %s185
      %s200 = sphi 0, %s186
      %s204 = sphi 0, %s204
      %s206 = sphi 0, %s204
      %s207 = sphi 0, %s206
      %s221 = sphi 0, %s207
      %s225 = sphi 0, %s225
      %s227 = sphi 0, %s225
      %s228 = sphi 0, %s227
      %s242 = sphi 0, %s228
      %s246 = sphi 0, %s246
      %s248 = sphi 0, %s246
      %s249 = sphi 0, %s248
      %s263 = sphi 0, %s249
      %s269 = sphi 0, %s271
      %s272 = sphi 0, %s269
      %s273 = sphi 0, %s272
      %s289 = sphi 0, %s273
    $region4: #{tpu_custom_call.1} parent=1 // loop_header_branch
      %26 = sbr.rel (%p24) target = $region8
    $region5: #{tpu_custom_call.1} parent=1 // loop_body
      %s28 = ssub.s32 %s23, 1
      %s29 = ssub.s32 %s23, 2
      %s30 = sadd.s32 %s23, 1
      %s31 = ssub.s32 %s23, %s30
      %p32 = scmp.eq.s32.totalorder %s31, 0
      %s34 = sadd.s32 %s33, 1
      %s35 = scalar_select %p32, %s33, %s34
      %p38 = pneg %p32
      %p39 = scmp.eq.s32.totalorder %s23, 1
      %p40 = por %p38, %p39
      %p41 = scmp.ne.s32.totalorder %s33, %s36
      %p42 = scmp.eq.s32.totalorder %s23, 0
      %p43 = por %p41, %p42
      %p44 = scmp.ne.s32.totalorder %s33, %s36
      %p45 = scmp.eq.s32.totalorder %s28, 1
      %p46 = por %p44, %p45
      %p47 = scmp.ne.s32.totalorder %s36, %s37
      %p48 = scmp.eq.s32.totalorder %s28, 0
      %p49 = por %p47, %p48
      %p50 = scmp.ne.s32.totalorder %s36, %s37
      %p51 = scmp.eq.s32.totalorder %s29, 1
      %p52 = por %p50, %p51
      %p54 = scmp.ne.s32.totalorder %s37, %s53
      %p55 = scmp.eq.s32.totalorder %s29, 0
      %p56 = por %p54, %p55
      %s58 = sadd.s32 %s57, 1
      %p61 = scmp.eq.s32.totalorder %s23, 1
      %p62 = scmp.ne.s32.totalorder %s57, %s59
      %p63 = scmp.eq.s32.totalorder %s23, 0
      %p64 = por %p62, %p63
      %p65 = scmp.ne.s32.totalorder %s57, %s59
      %p66 = scmp.eq.s32.totalorder %s28, 1
      %p67 = por %p65, %p66
      %p68 = scmp.ne.s32.totalorder %s59, %s60
      %p69 = scmp.eq.s32.totalorder %s28, 0
      %p70 = por %p68, %p69
      %p71 = scmp.ne.s32.totalorder %s59, %s60
      %p72 = scmp.eq.s32.totalorder %s29, 1
      %p73 = por %p71, %p72
      %p75 = scmp.ne.s32.totalorder %s60, %s74
      %p76 = scmp.eq.s32.totalorder %s29, 0
      %p77 = por %p75, %p76
      %s79 = sadd.s32 %s78, 1
      %p82 = scmp.eq.s32.totalorder %s23, 1
      %p83 = scmp.ne.s32.totalorder %s78, %s80
      %p84 = scmp.eq.s32.totalorder %s23, 0
      %p85 = por %p83, %p84
      %p86 = scmp.ne.s32.totalorder %s78, %s80
      %p87 = scmp.eq.s32.totalorder %s28, 1
      %p88 = por %p86, %p87
      %p89 = scmp.ne.s32.totalorder %s80, %s81
      %p90 = scmp.eq.s32.totalorder %s28, 0
      %p91 = por %p89, %p90
      %p92 = scmp.ne.s32.totalorder %s80, %s81
      %p93 = scmp.eq.s32.totalorder %s29, 1
      %p94 = por %p92, %p93
      %p96 = scmp.ne.s32.totalorder %s81, %s95
      %p97 = scmp.eq.s32.totalorder %s29, 0
      %p98 = por %p96, %p97
      %s100 = sadd.s32 %s99, 1
      %p103 = scmp.eq.s32.totalorder %s23, 1
      %p104 = scmp.ne.s32.totalorder %s99, %s101
      %p105 = scmp.eq.s32.totalorder %s23, 0
      %p106 = por %p104, %p105
      %p107 = scmp.ne.s32.totalorder %s99, %s101
      %p108 = scmp.eq.s32.totalorder %s28, 1
      %p109 = por %p107, %p108
      %p110 = scmp.ne.s32.totalorder %s101, %s102
      %p111 = scmp.eq.s32.totalorder %s28, 0
      %p112 = por %p110, %p111
      %p113 = scmp.ne.s32.totalorder %s101, %s102
      %p114 = scmp.eq.s32.totalorder %s29, 1
      %p115 = por %p113, %p114
      %p117 = scmp.ne.s32.totalorder %s102, %s116
      %p118 = scmp.eq.s32.totalorder %s29, 0
      %p119 = por %p117, %p118
      %s121 = sadd.s32 %s120, 1
      %p124 = scmp.eq.s32.totalorder %s23, 1
      %p125 = scmp.ne.s32.totalorder %s120, %s122
      %p126 = scmp.eq.s32.totalorder %s23, 0
      %p127 = por %p125, %p126
      %p128 = scmp.ne.s32.totalorder %s120, %s122
      %p129 = scmp.eq.s32.totalorder %s28, 1
      %p130 = por %p128, %p129
      %p131 = scmp.ne.s32.totalorder %s122, %s123
      %p132 = scmp.eq.s32.totalorder %s28, 0
      %p133 = por %p131, %p132
      %p134 = scmp.ne.s32.totalorder %s122, %s123
      %p135 = scmp.eq.s32.totalorder %s29, 1
      %p136 = por %p134, %p135
      %p138 = scmp.ne.s32.totalorder %s123, %s137
      %p139 = scmp.eq.s32.totalorder %s29, 0
      %p140 = por %p138, %p139
      %s142 = sadd.s32 %s141, 1
      %p145 = scmp.eq.s32.totalorder %s23, 1
      %p146 = scmp.ne.s32.totalorder %s141, %s143
      %p147 = scmp.eq.s32.totalorder %s23, 0
      %p148 = por %p146, %p147
      %p149 = scmp.ne.s32.totalorder %s141, %s143
      %p150 = scmp.eq.s32.totalorder %s28, 1
      %p151 = por %p149, %p150
      %p152 = scmp.ne.s32.totalorder %s143, %s144
      %p153 = scmp.eq.s32.totalorder %s28, 0
      %p154 = por %p152, %p153
      %p155 = scmp.ne.s32.totalorder %s143, %s144
      %p156 = scmp.eq.s32.totalorder %s29, 1
      %p157 = por %p155, %p156
      %p159 = scmp.ne.s32.totalorder %s144, %s158
      %p160 = scmp.eq.s32.totalorder %s29, 0
      %p161 = por %p159, %p160
      %s163 = sadd.s32 %s162, 1
      %p166 = scmp.eq.s32.totalorder %s23, 1
      %p167 = scmp.ne.s32.totalorder %s162, %s164
      %p168 = scmp.eq.s32.totalorder %s23, 0
      %p169 = por %p167, %p168
      %p170 = scmp.ne.s32.totalorder %s162, %s164
      %p171 = scmp.eq.s32.totalorder %s28, 1
      %p172 = por %p170, %p171
      %p173 = scmp.ne.s32.totalorder %s164, %s165
      %p174 = scmp.eq.s32.totalorder %s28, 0
      %p175 = por %p173, %p174
      %p176 = scmp.ne.s32.totalorder %s164, %s165
      %p177 = scmp.eq.s32.totalorder %s29, 1
      %p178 = por %p176, %p177
      %p180 = scmp.ne.s32.totalorder %s165, %s179
      %p181 = scmp.eq.s32.totalorder %s29, 0
      %p182 = por %p180, %p181
      %s184 = sadd.s32 %s183, 1
      %p187 = scmp.eq.s32.totalorder %s23, 1
      %p188 = scmp.ne.s32.totalorder %s183, %s185
      %p189 = scmp.eq.s32.totalorder %s23, 0
      %p190 = por %p188, %p189
      %p191 = scmp.ne.s32.totalorder %s183, %s185
      %p192 = scmp.eq.s32.totalorder %s28, 1
      %p193 = por %p191, %p192
      %p194 = scmp.ne.s32.totalorder %s185, %s186
      %p195 = scmp.eq.s32.totalorder %s28, 0
      %p196 = por %p194, %p195
      %p197 = scmp.ne.s32.totalorder %s185, %s186
      %p198 = scmp.eq.s32.totalorder %s29, 1
      %p199 = por %p197, %p198
      %p201 = scmp.ne.s32.totalorder %s186, %s200
      %p202 = scmp.eq.s32.totalorder %s29, 0
      %p203 = por %p201, %p202
      %s205 = sadd.s32 %s204, 1
      %p208 = scmp.eq.s32.totalorder %s23, 1
      %p209 = scmp.ne.s32.totalorder %s204, %s206
      %p210 = scmp.eq.s32.totalorder %s23, 0
      %p211 = por %p209, %p210
      %p212 = scmp.ne.s32.totalorder %s204, %s206
      %p213 = scmp.eq.s32.totalorder %s28, 1
      %p214 = por %p212, %p213
      %p215 = scmp.ne.s32.totalorder %s206, %s207
      %p216 = scmp.eq.s32.totalorder %s28, 0
      %p217 = por %p215, %p216
      %p218 = scmp.ne.s32.totalorder %s206, %s207
      %p219 = scmp.eq.s32.totalorder %s29, 1
      %p220 = por %p218, %p219
      %p222 = scmp.ne.s32.totalorder %s207, %s221
      %p223 = scmp.eq.s32.totalorder %s29, 0
      %p224 = por %p222, %p223
      %s226 = sadd.s32 %s225, 1
      %p229 = scmp.eq.s32.totalorder %s23, 1
      %p230 = scmp.ne.s32.totalorder %s225, %s227
      %p231 = scmp.eq.s32.totalorder %s23, 0
      %p232 = por %p230, %p231
      %p233 = scmp.ne.s32.totalorder %s225, %s227
      %p234 = scmp.eq.s32.totalorder %s28, 1
      %p235 = por %p233, %p234
      %p236 = scmp.ne.s32.totalorder %s227, %s228
      %p237 = scmp.eq.s32.totalorder %s28, 0
      %p238 = por %p236, %p237
      %p239 = scmp.ne.s32.totalorder %s227, %s228
      %p240 = scmp.eq.s32.totalorder %s29, 1
      %p241 = por %p239, %p240
      %p243 = scmp.ne.s32.totalorder %s228, %s242
      %p244 = scmp.eq.s32.totalorder %s29, 0
      %p245 = por %p243, %p244
      %s247 = sadd.s32 %s246, 1
      %p250 = scmp.eq.s32.totalorder %s23, 1
      %p251 = scmp.ne.s32.totalorder %s246, %s248
      %p252 = scmp.eq.s32.totalorder %s23, 0
      %p253 = por %p251, %p252
      %p254 = scmp.ne.s32.totalorder %s246, %s248
      %p255 = scmp.eq.s32.totalorder %s28, 1
      %p256 = por %p254, %p255
      %p257 = scmp.ne.s32.totalorder %s248, %s249
      %p258 = scmp.eq.s32.totalorder %s28, 0
      %p259 = por %p257, %p258
      %p260 = scmp.ne.s32.totalorder %s248, %s249
      %p261 = scmp.eq.s32.totalorder %s29, 1
      %p262 = por %p260, %p261
      %p264 = scmp.ne.s32.totalorder %s249, %s263
      %p265 = scmp.eq.s32.totalorder %s29, 0
      %p266 = por %p264, %p265
      %s267 = ssub.s32 %s23, %s30
      %p268 = scmp.eq.s32.totalorder %s267, 0
      %s270 = sadd.s32 %s269, 1
      %s271 = scalar_select %p268, %s269, %s270
      %p274 = pneg %p268
      %p275 = scmp.eq.s32.totalorder %s23, 1
      %p276 = por %p274, %p275
      %p277 = scmp.ne.s32.totalorder %s269, %s272
      %p278 = scmp.eq.s32.totalorder %s23, 0
      %p279 = por %p277, %p278
      %p280 = scmp.ne.s32.totalorder %s269, %s272
      %p281 = scmp.eq.s32.totalorder %s28, 1
      %p282 = por %p280, %p281
      %p283 = scmp.ne.s32.totalorder %s272, %s273
      %p284 = scmp.eq.s32.totalorder %s28, 0
      %p285 = por %p283, %p284
      %p286 = scmp.ne.s32.totalorder %s272, %s273
      %p287 = scmp.eq.s32.totalorder %s29, 1
      %p288 = por %p286, %p287
      %p290 = scmp.ne.s32.totalorder %s273, %s289
      %p291 = scmp.eq.s32.totalorder %s29, 0
      %p292 = por %p290, %p291
      %p293 = scmp.le.s32.totalorder 1, %s23
      %p294 = scmp.lt.s32.totalorder %s23, 3
      %p295 = pnand %p293, %p294
      %p296 = pneg %p295
      // Predicated region
      $region9: #{tpu_custom_call.1} parent=5 // pred_check
        _
      $region10: #{tpu_custom_call.1} parent=5 // pred_check_branch
        %298 = sbr.rel (%p295) target = $region12
      $region11: #{tpu_custom_call.1} parent=5 // pred_region
        %s299 = ssub.s32 %s23, 1
        // Predicated region
        $region13: #{tpu_custom_call.1} parent=11 // pred_check
          %p300 = pneg %p70
        $region14: #{tpu_custom_call.1} parent=11 // pred_check_branch
          %302 = sbr.rel (%p300) target = $region16
        $region15: #{tpu_custom_call.1} parent=11 // pred_region
          _
        $region16: #{tpu_custom_call.1} parent=11 // pred_fallthru
          _
        // Predicated region
        $region17: #{tpu_custom_call.1} parent=11 // pred_check
          %p303 = pneg %p91
        $region18: #{tpu_custom_call.1} parent=11 // pred_check_branch
          %305 = sbr.rel (%p303) target = $region20
        $region19: #{tpu_custom_call.1} parent=11 // pred_region
          _
        $region20: #{tpu_custom_call.1} parent=11 // pred_fallthru
          _
        // Predicated region
        $region21: #{tpu_custom_call.1} parent=11 // pred_check
          %p306 = pneg %p112
        $region22: #{tpu_custom_call.1} parent=11 // pred_check_branch
          %308 = sbr.rel (%p306) target = $region24
        $region23: #{tpu_custom_call.1} parent=11 // pred_region
          _
        $region24: #{tpu_custom_call.1} parent=11 // pred_fallthru
          _
        // Predicated region
        $region25: #{tpu_custom_call.1} parent=11 // pred_check
          %p309 = pneg %p133
        $region26: #{tpu_custom_call.1} parent=11 // pred_check_branch
          %311 = sbr.rel (%p309) target = $region28
        $region27: #{tpu_custom_call.1} parent=11 // pred_region
          _
        $region28: #{tpu_custom_call.1} parent=11 // pred_fallthru
          _
        // Predicated region
        $region29: #{tpu_custom_call.1} parent=11 // pred_check
          %p312 = pneg %p154
        $region30: #{tpu_custom_call.1} parent=11 // pred_check_branch
          %314 = sbr.rel (%p312) target = $region32
        $region31: #{tpu_custom_call.1} parent=11 // pred_region
          _
        $region32: #{tpu_custom_call.1} parent=11 // pred_fallthru
          _
        // Predicated region
        $region33: #{tpu_custom_call.1} parent=11 // pred_check
          %p315 = pneg %p175
        $region34: #{tpu_custom_call.1} parent=11 // pred_check_branch
          %317 = sbr.rel (%p315) target = $region36
        $region35: #{tpu_custom_call.1} parent=11 // pred_region
          _
        $region36: #{tpu_custom_call.1} parent=11 // pred_fallthru
          _
        // Predicated region
        $region37: #{tpu_custom_call.1} parent=11 // pred_check
          %p318 = pneg %p196
        $region38: #{tpu_custom_call.1} parent=11 // pred_check_branch
          %320 = sbr.rel (%p318) target = $region40
        $region39: #{tpu_custom_call.1} parent=11 // pred_region
          _
        $region40: #{tpu_custom_call.1} parent=11 // pred_fallthru
          _
        // Predicated region
        $region41: #{tpu_custom_call.1} parent=11 // pred_check
          %p321 = pneg %p217
        $region42: #{tpu_custom_call.1} parent=11 // pred_check_branch
          %323 = sbr.rel (%p321) target = $region44
        $region43: #{tpu_custom_call.1} parent=11 // pred_region
          _
        $region44: #{tpu_custom_call.1} parent=11 // pred_fallthru
          _
        // Predicated region
        $region45: #{tpu_custom_call.1} parent=11 // pred_check
          %p324 = pneg %p238
        $region46: #{tpu_custom_call.1} parent=11 // pred_check_branch
          %326 = sbr.rel (%p324) target = $region48
        $region47: #{tpu_custom_call.1} parent=11 // pred_region
          _
        $region48: #{tpu_custom_call.1} parent=11 // pred_fallthru
          _
        // Predicated region
        $region49: #{tpu_custom_call.1} parent=11 // pred_check
          %p327 = pneg %p259
        $region50: #{tpu_custom_call.1} parent=11 // pred_check_branch
          %329 = sbr.rel (%p327) target = $region52
        $region51: #{tpu_custom_call.1} parent=11 // pred_region
          _
        $region52: #{tpu_custom_call.1} parent=11 // pred_fallthru
          _
      $region12: #{tpu_custom_call.1} parent=5 // pred_fallthru
        _
      %p330 = scmp.lt.s32.totalorder %s23, 2
      // Predicated region
      $region53: #{tpu_custom_call.1} parent=5 // pred_check
        %p331 = pneg %p330
      $region54: #{tpu_custom_call.1} parent=5 // pred_check_branch
        %333 = sbr.rel (%p331) target = $region56
      $region55: #{tpu_custom_call.1} parent=5 // pred_region
        // Predicated region
        $region57: #{tpu_custom_call.1} parent=55 // pred_check
          %p334 = pneg %p43
        $region58: #{tpu_custom_call.1} parent=55 // pred_check_branch
          %336 = sbr.rel (%p334) target = $region60
        $region59: #{tpu_custom_call.1} parent=55 // pred_region
          %s337 = sand.u32 %s33, 1
          %s338 = scalar_lea.sflag [#allocation3], %s337
          %s339 = sand.u32 %s33, 1
          %s340 = smul.addr %s339, 88
          %s341 = scalar_lea.vmem [#allocation2], %s340
          %s343 = ssub.s32 1408, 1408
          %344 = vsyncadd %s338, %s343
          %s345 = smul.addr %s23, 22
          %s346 = smul.addr %s345, 64
          %s347 = scalar_lea.hbm %s0, %s346
          %s348 = sshll.u32 %s341, 4
          %s349 = int_to_ptr.vmem [resolvable:$true] %s348
          %354 = dma.hbm_to_vmem [thread:$0]  %s347, 1408, %s349, %s338, 704, 704, 44
        $region60: #{tpu_custom_call.1} parent=55 // pred_fallthru
          _
      $region56: #{tpu_custom_call.1} parent=5 // pred_fallthru
        _
      %p355 = scmp.le.s32.totalorder 1, %s23
      %p356 = scmp.lt.s32.totalorder %s23, 3
      %p357 = pnand %p355, %p356
      %p358 = pneg %p357
      // Predicated region
      $region61: #{tpu_custom_call.1} parent=5 // pred_check
        _
      $region62: #{tpu_custom_call.1} parent=5 // pred_check_branch
        %360 = sbr.rel (%p357) target = $region64
      $region63: #{tpu_custom_call.1} parent=5 // pred_region
        %s361 = ssub.s32 %s23, 1
        %s362 = sand.u32 %s36, 1
        %s363 = scalar_lea.sflag [#allocation3], %s362
        %s364 = sand.u32 %s36, 1
        %s365 = smul.addr %s364, 88
        %s366 = scalar_lea.vmem [#allocation2], %s365
        // Predicated region
        $region65: #{tpu_custom_call.1} parent=63 // pred_check
          %p367 = pneg %p49
        $region66: #{tpu_custom_call.1} parent=63 // pred_check_branch
          %369 = sbr.rel (%p367) target = $region68
        $region67: #{tpu_custom_call.1} parent=63 // pred_region
          %370 = dma.done %s363, 1408
        $region68: #{tpu_custom_call.1} parent=63 // pred_fallthru
          _
        %s371 = sand.u32 %s36, 1
        %s372 = scalar_lea.sflag [#allocation3], %s371
        %s373 = sand.u32 %s36, 1
        %s374 = smul.addr %s373, 88
        %s375 = scalar_lea.vmem [#allocation2], %s374
        %p376 = pneg %p49
        %p377 = pneg %p46
        %p378 = pneg %p70
        %p379 = pneg %p67
        %p380 = pneg %p91
        %p381 = pneg %p88
        %p382 = pneg %p112
        %p383 = pneg %p109
        %p384 = pneg %p133
        %p385 = pneg %p130
        %p386 = pneg %p154
        %p387 = pneg %p151
        %p388 = pneg %p175
        %p389 = pneg %p172
        %p390 = pneg %p196
        %p391 = pneg %p193
        %p392 = pneg %p217
        %p393 = pneg %p214
        %p394 = pneg %p238
        %p395 = pneg %p235
        %p396 = pneg %p259
        %p397 = pneg %p256
        %p398 = pneg %p285
        %p399 = pneg %p282
        %s400 = sand.u32 %s272, 1
        %s401 = scalar_lea.sflag [#allocation4], %s400
        %s402 = sand.u32 %s272, 1
        %s403 = smul.addr %s402, 56
        %s404 = scalar_lea.vmem [#allocation5], %s403
        %v406 = vld [vmem:[%s366 + $0x8] sm:$0xff]
        %v407 = vld [vmem:[%s366 + $0x10] sm:$0xff]
        %v408 = vld [vmem:[%s366 + $0x18] sm:$0xff]
        %v409 = vld [vmem:[%s366 + $0x20] sm:$0xf]
        %v410 = vld [vmem:[%s366 + $0x34] sm:$0xff]
        %v411 = vld [vmem:[%s366 + $0x3c] sm:$0xff]
        %v412 = vld [vmem:[%s366 + $0x44] sm:$0xff]
        %v413 = vld [vmem:[%s366 + $0x4c] sm:$0xf]
        %v414 = vld [vmem:[%s1] sm:$0xf]
        %v415 = vld [vmem:[%s1 + $0x4] sm:$0xf]
        %v416 = vld [vmem:[%s1 + $0x8] sm:$0xf]
        %v417 = vld [vmem:[%s1 + $0xc] sm:$0xf]
        %v422 = vunpack.c.l.b16 %v414
        %v423 = vunpack.c.l.b16 %v415
        %v424 = vunpack.c.l.b16 %v416
        %v425 = vunpack.c.l.b16 %v417
        %v426 = vpack.c.b16 %v423, %v422
        %v427 = vpack.c.b16 %v425, %v424
        %v436 = vunpack.c.l.b16 %v406
        %v437 = vunpack.c.h.b16 %v406
        %v438 = vunpack.c.l.b16 %v407
        %v439 = vunpack.c.h.b16 %v407
        %v440 = vunpack.c.l.b16 %v408
        %v441 = vunpack.c.h.b16 %v408
        %v442 = vunpack.c.l.b16 %v409
        %v443 = vunpack.c.l.b16 %v410
        %v444 = vunpack.c.h.b16 %v410
        %v445 = vunpack.c.l.b16 %v411
        %v446 = vunpack.c.h.b16 %v411
        %v447 = vunpack.c.l.b16 %v412
        %v448 = vunpack.c.h.b16 %v412
        %v449 = vunpack.c.l.b16 %v413
        %v450 = vpack.c.b16 %v443, %v436
        %v451 = vpack.c.b16 %v444, %v437
        %v452 = vpack.c.b16 %v445, %v438
        %v453 = vpack.c.b16 %v446, %v439
        %v454 = vpack.c.b16 %v447, %v440
        %v455 = vpack.c.b16 %v448, %v441
        %v456 = vpack.c.b16 %v449, %v442
        %vm464 = vcmask 130048
        %v466 = vsel %vm464, %v426, 0
        %v469 = vsel %vm464, %v427, 0
        %471 = vmatprep.subr.bf16.mxu0 %v451
        %472 = vmatpush1.bf16.msra.mxu0 %v450
        %473 = vmatprep.subr.bf16.mxu0 0
        %474 = vmatpush1.bf16.msra.mxu0 0
        %475 = vmatprep.subr.bf16.mxu0 0
        %476 = vmatpush1.bf16.msra.mxu0 0
        %477 = vmatprep.subr.bf16.mxu0 0
        %478 = vmatpush1.bf16.msra.mxu0 0
        %479 = vmatprep.subr.bf16.mxu0 0
        %480 = vmatpush1.bf16.msra.mxu0 0
        %481 = vmatprep.subr.bf16.mxu0 0
        %482 = vmatpush1.bf16.msra.mxu0 0
        %483 = vmatprep.subr.bf16.mxu0 0
        %484 = vmatpush1.bf16.msra.mxu0 0
        %485 = vmatprep.subr.bf16.mxu0 0
        %486 = vmatpush1.bf16.msra.mxu0 0
        %487 = vmatprep.subr.bf16.mxu0 0
        %488 = vmatpush1.bf16.msra.mxu0 0
        %489 = vmatprep.subr.bf16.mxu0 0
        %490 = vmatpush1.bf16.msra.mxu0 0
        %491 = vmatprep.subr.bf16.mxu0 0
        %492 = vmatpush1.bf16.msra.mxu0 0
        %493 = vmatprep.subr.bf16.mxu0 0
        %494 = vmatpush1.bf16.msra.mxu0 0
        %495 = vmatprep.subr.bf16.mxu0 0
        %496 = vmatpush1.bf16.msra.mxu0 0
        %497 = vmatprep.subr.bf16.mxu0 0
        %498 = vmatpush1.bf16.msra.mxu0 0
        %499 = vmatprep.subr.bf16.mxu0 0
        %500 = vmatpush1.bf16.msra.mxu0 0
        %501 = vmatprep.subr.bf16.mxu0 0
        %502 = vmatpush1.bf16.msra.mxu0 0
        %503 = vmatprep.mubr.bf16.mxu0 0
        %504 = vmatmul.mubr.bf16.gmra.mrb[0].mxu0 %v466
        %v505 = vpop.f32.mrb[0].mxu0
        %v506 = vadd.f32 0.0, %v505
        %v507 = vpop.f32.mrb[0].mxu0
        %v508 = vadd.f32 0.0, %v507
        %v509 = vpop.f32.mrb[0].mxu0
        %v510 = vadd.f32 0.0, %v509
        %v511 = vpop.f32.mrb[0].mxu0
        %v512 = vadd.f32 0.0, %v511
        %513 = vmatprep.mubr.bf16.mxu0 0
        %514 = vmatmul.mubr.bf16.gmra.mrb[0].mxu0 %v469
        %v515 = vpop.f32.mrb[0].mxu0
        %v516 = vadd.f32 0.0, %v515
        %v517 = vpop.f32.mrb[0].mxu0
        %v518 = vadd.f32 0.0, %v517
        %v519 = vpop.f32.mrb[0].mxu0
        %v520 = vadd.f32 0.0, %v519
        %v521 = vpop.f32.mrb[0].mxu0
        %v522 = vadd.f32 0.0, %v521
        %523 = vdwg.mxu0
        %524 = vmatprep.subr.bf16.mxu0 %v453
        %525 = vmatpush1.bf16.msra.mxu0 %v452
        %526 = vmatprep.subr.bf16.mxu0 0
        %527 = vmatpush1.bf16.msra.mxu0 0
        %528 = vmatprep.subr.bf16.mxu0 0
        %529 = vmatpush1.bf16.msra.mxu0 0
        %530 = vmatprep.subr.bf16.mxu0 0
        %531 = vmatpush1.bf16.msra.mxu0 0
        %532 = vmatprep.subr.bf16.mxu0 0
        %533 = vmatpush1.bf16.msra.mxu0 0
        %534 = vmatprep.subr.bf16.mxu0 0
        %535 = vmatpush1.bf16.msra.mxu0 0
        %536 = vmatprep.subr.bf16.mxu0 0
        %537 = vmatpush1.bf16.msra.mxu0 0
        %538 = vmatprep.subr.bf16.mxu0 0
        %539 = vmatpush1.bf16.msra.mxu0 0
        %540 = vmatprep.subr.bf16.mxu0 0
        %541 = vmatpush1.bf16.msra.mxu0 0
        %542 = vmatprep.subr.bf16.mxu0 0
        %543 = vmatpush1.bf16.msra.mxu0 0
        %544 = vmatprep.subr.bf16.mxu0 0
        %545 = vmatpush1.bf16.msra.mxu0 0
        %546 = vmatprep.subr.bf16.mxu0 0
        %547 = vmatpush1.bf16.msra.mxu0 0
        %548 = vmatprep.subr.bf16.mxu0 0
        %549 = vmatpush1.bf16.msra.mxu0 0
        %550 = vmatprep.subr.bf16.mxu0 0
        %551 = vmatpush1.bf16.msra.mxu0 0
        %552 = vmatprep.subr.bf16.mxu0 0
        %553 = vmatpush1.bf16.msra.mxu0 0
        %554 = vmatprep.subr.bf16.mxu0 0
        %555 = vmatpush1.bf16.msra.mxu0 0
        %556 = vmatprep.mubr.bf16.mxu0 0
        %557 = vmatmul.mubr.bf16.gmra.mrb[0].mxu0 %v466
        %v558 = vpop.f32.mrb[0].mxu0
        %v559 = vadd.f32 0.0, %v558
        %v560 = vpop.f32.mrb[0].mxu0
        %v561 = vadd.f32 0.0, %v560
        %v562 = vpop.f32.mrb[0].mxu0
        %v563 = vadd.f32 0.0, %v562
        %v564 = vpop.f32.mrb[0].mxu0
        %v565 = vadd.f32 0.0, %v564
        %566 = vmatprep.mubr.bf16.mxu0 0
        %567 = vmatmul.mubr.bf16.gmra.mrb[0].mxu0 %v469
        %v568 = vpop.f32.mrb[0].mxu0
        %v569 = vadd.f32 0.0, %v568
        %v570 = vpop.f32.mrb[0].mxu0
        %v571 = vadd.f32 0.0, %v570
        %v572 = vpop.f32.mrb[0].mxu0
        %v573 = vadd.f32 0.0, %v572
        %v574 = vpop.f32.mrb[0].mxu0
        %v575 = vadd.f32 0.0, %v574
        %576 = vdwg.mxu0
        %577 = vmatprep.subr.bf16.mxu0 %v455
        %578 = vmatpush1.bf16.msra.mxu0 %v454
        %579 = vmatprep.subr.bf16.mxu0 0
        %580 = vmatpush1.bf16.msra.mxu0 0
        %581 = vmatprep.subr.bf16.mxu0 0
        %582 = vmatpush1.bf16.msra.mxu0 0
        %583 = vmatprep.subr.bf16.mxu0 0
        %584 = vmatpush1.bf16.msra.mxu0 0
        %585 = vmatprep.subr.bf16.mxu0 0
        %586 = vmatpush1.bf16.msra.mxu0 0
        %587 = vmatprep.subr.bf16.mxu0 0
        %588 = vmatpush1.bf16.msra.mxu0 0
        %589 = vmatprep.subr.bf16.mxu0 0
        %590 = vmatpush1.bf16.msra.mxu0 0
        %591 = vmatprep.subr.bf16.mxu0 0
        %592 = vmatpush1.bf16.msra.mxu0 0
        %593 = vmatprep.subr.bf16.mxu0 0
        %594 = vmatpush1.bf16.msra.mxu0 0
        %595 = vmatprep.subr.bf16.mxu0 0
        %596 = vmatpush1.bf16.msra.mxu0 0
        %597 = vmatprep.subr.bf16.mxu0 0
        %598 = vmatpush1.bf16.msra.mxu0 0
        %599 = vmatprep.subr.bf16.mxu0 0
        %600 = vmatpush1.bf16.msra.mxu0 0
        %601 = vmatprep.subr.bf16.mxu0 0
        %602 = vmatpush1.bf16.msra.mxu0 0
        %603 = vmatprep.subr.bf16.mxu0 0
        %604 = vmatpush1.bf16.msra.mxu0 0
        %605 = vmatprep.subr.bf16.mxu0 0
        %606 = vmatpush1.bf16.msra.mxu0 0
        %607 = vmatprep.subr.bf16.mxu0 0
        %608 = vmatpush1.bf16.msra.mxu0 0
        %609 = vmatprep.mubr.bf16.mxu0 0
        %610 = vmatmul.mubr.bf16.gmra.mrb[0].mxu0 %v466
        %v611 = vpop.f32.mrb[0].mxu0
        %v612 = vadd.f32 0.0, %v611
        %v613 = vpop.f32.mrb[0].mxu0
        %v614 = vadd.f32 0.0, %v613
        %v615 = vpop.f32.mrb[0].mxu0
        %v616 = vadd.f32 0.0, %v615
        %v617 = vpop.f32.mrb[0].mxu0
        %v618 = vadd.f32 0.0, %v617
        %619 = vmatprep.mubr.bf16.mxu0 0
        %620 = vmatmul.mubr.bf16.gmra.mrb[0].mxu0 %v469
        %v621 = vpop.f32.mrb[0].mxu0
        %v622 = vadd.f32 0.0, %v621
        %v623 = vpop.f32.mrb[0].mxu0
        %v624 = vadd.f32 0.0, %v623
        %v625 = vpop.f32.mrb[0].mxu0
        %v626 = vadd.f32 0.0, %v625
        %v627 = vpop.f32.mrb[0].mxu0
        %v628 = vadd.f32 0.0, %v627
        %629 = vdwg.mxu0
        %630 = vmatprep.subr.bf16.mxu0 0
        %631 = vmatpush1.bf16.msra.mxu0 %v456
        %632 = vmatprep.subr.bf16.mxu0 0
        %633 = vmatpush1.bf16.msra.mxu0 0
        %634 = vmatprep.subr.bf16.mxu0 0
        %635 = vmatpush1.bf16.msra.mxu0 0
        %636 = vmatprep.subr.bf16.mxu0 0
        %637 = vmatpush1.bf16.msra.mxu0 0
        %638 = vmatprep.subr.bf16.mxu0 0
        %639 = vmatpush1.bf16.msra.mxu0 0
        %640 = vmatprep.subr.bf16.mxu0 0
        %641 = vmatpush1.bf16.msra.mxu0 0
        %642 = vmatprep.subr.bf16.mxu0 0
        %643 = vmatpush1.bf16.msra.mxu0 0
        %644 = vmatprep.subr.bf16.mxu0 0
        %645 = vmatpush1.bf16.msra.mxu0 0
        %646 = vmatprep.subr.bf16.mxu0 0
        %647 = vmatpush1.bf16.msra.mxu0 0
        %648 = vmatprep.subr.bf16.mxu0 0
        %649 = vmatpush1.bf16.msra.mxu0 0
        %650 = vmatprep.subr.bf16.mxu0 0
        %651 = vmatpush1.bf16.msra.mxu0 0
        %652 = vmatprep.subr.bf16.mxu0 0
        %653 = vmatpush1.bf16.msra.mxu0 0
        %654 = vmatprep.subr.bf16.mxu0 0
        %655 = vmatpush1.bf16.msra.mxu0 0
        %656 = vmatprep.subr.bf16.mxu0 0
        %657 = vmatpush1.bf16.msra.mxu0 0
        %658 = vmatprep.subr.bf16.mxu0 0
        %659 = vmatpush1.bf16.msra.mxu0 0
        %660 = vmatprep.subr.bf16.mxu0 0
        %661 = vmatpush1.bf16.msra.mxu0 0
        %662 = vmatprep.mubr.bf16.mxu0 0
        %663 = vmatmul.mubr.bf16.gmra.mrb[0].mxu0 %v466
        %v664 = vpop.f32.mrb[0].mxu0
        %v665 = vadd.f32 0.0, %v664
        %v666 = vpop.f32.mrb[0].mxu0
        %v667 = vpop.f32.mrb[0].mxu0
        %v668 = vadd.f32 0.0, %v667
        %v669 = vpop.f32.mrb[0].mxu0
        %670 = vmatprep.mubr.bf16.mxu0 0
        %671 = vmatmul.mubr.bf16.gmra.mrb[0].mxu0 %v469
        %v672 = vpop.f32.mrb[0].mxu0
        %v673 = vadd.f32 0.0, %v672
        %v674 = vpop.f32.mrb[0].mxu0
        %v675 = vpop.f32.mrb[0].mxu0
        %v676 = vadd.f32 0.0, %v675
        %v677 = vpop.f32.mrb[0].mxu0
        %678 = vdwg.mxu0
        %v679 = vld [vmem:[%s5] sm:$0xff]
        %681 = vset.pattern.permute.xlu0 0
        %682 = vperm.xlu0 %681, %v679
        %v683 = vpop.permute.xlu0 %682
        %v685 = vmul.f32 %v506, %v683
        %v686 = vmul.f32 %v508, %v683
        %v687 = vmul.f32 %v559, %v683
        %v688 = vmul.f32 %v561, %v683
        %v689 = vmul.f32 %v612, %v683
        %v690 = vmul.f32 %v614, %v683
        %v691 = vmul.f32 %v665, %v683
        %v692 = vld [vmem:[%s6] sm:$0xff]
        %694 = vset.pattern.permute.xlu0 0
        %695 = vperm.xlu0 %694, %v692
        %v696 = vpop.permute.xlu0 %695
        %v698 = vadd.f32 %v685, %v696
        %v699 = vadd.f32 %v686, %v696
        %v700 = vadd.f32 %v687, %v696
        %v701 = vadd.f32 %v688, %v696
        %v702 = vadd.f32 %v689, %v696
        %v703 = vadd.f32 %v690, %v696
        %v704 = vadd.f32 %v691, %v696
        %v705 = vmax.f32 %v698, 0.0
        %v706 = vmax.f32 %v699, 0.0
        %v707 = vmax.f32 %v700, 0.0
        %v708 = vmax.f32 %v701, 0.0
        %v709 = vmax.f32 %v702, 0.0
        %v710 = vmax.f32 %v703, 0.0
        %v711 = vmax.f32 %v704, 0.0
        %v712 = vld [vmem:[%s8] sm:$0xf]
        %v713 = vpack.c.bf16 %v705, %v705
        %v714 = vpack.c.bf16 %v706, %v706
        %v715 = vpack.c.bf16 %v707, %v707
        %v716 = vpack.c.bf16 %v708, %v708
        %v717 = vpack.c.bf16 %v709, %v709
        %v718 = vpack.c.bf16 %v710, %v710
        %v719 = vpack.c.bf16 %v711, %v711
        %v720 = vld [vmem:[%s366 + $0x4] sm:$0xff]
        %v721 = vld [vmem:[%s366 + $0xc] sm:$0xff]
        %v722 = vld [vmem:[%s366 + $0x14] sm:$0xff]
        %v723 = vld [vmem:[%s366 + $0x1c] sm:$0xff]
        %v724 = vld [vmem:[%s366 + $0x30] sm:$0xff]
        %v725 = vld [vmem:[%s366 + $0x38] sm:$0xff]
        %v726 = vld [vmem:[%s366 + $0x40] sm:$0xff]
        %v727 = vld [vmem:[%s366 + $0x48] sm:$0xff]
        %v728 = vld [vmem:[%s366 + $0x8] sm:$0xff]
        %v729 = vld [vmem:[%s366 + $0x10] sm:$0xff]
        %v730 = vld [vmem:[%s366 + $0x18] sm:$0xff]
        %v731 = vld [vmem:[%s366 + $0x20] sm:$0xff]
        %v732 = vld [vmem:[%s366 + $0x34] sm:$0xff]
        %v733 = vld [vmem:[%s366 + $0x3c] sm:$0xff]
        %v734 = vld [vmem:[%s366 + $0x44] sm:$0xff]
        %v735 = vld [vmem:[%s366 + $0x4c] sm:$0xff]
        %v744 = vunpack.c.l.b16 %v720
        %v745 = vunpack.c.h.b16 %v720
        %v746 = vunpack.c.l.b16 %v721
        %v747 = vunpack.c.h.b16 %v721
        %v748 = vunpack.c.l.b16 %v722
        %v749 = vunpack.c.h.b16 %v722
        %v750 = vunpack.c.l.b16 %v723
        %v751 = vunpack.c.h.b16 %v723
        %v752 = vunpack.c.l.b16 %v724
        %v753 = vunpack.c.h.b16 %v724
        %v754 = vunpack.c.l.b16 %v725
        %v755 = vunpack.c.h.b16 %v725
        %v756 = vunpack.c.l.b16 %v726
        %v757 = vunpack.c.h.b16 %v726
        %v758 = vunpack.c.l.b16 %v727
        %v759 = vunpack.c.h.b16 %v727
        %v760 = vpack.c.b16 %v752, %v744
        %v761 = vpack.c.b16 %v753, %v745
        %v762 = vpack.c.b16 %v754, %v746
        %v763 = vpack.c.b16 %v755, %v747
        %v764 = vpack.c.b16 %v756, %v748
        %v765 = vpack.c.b16 %v757, %v749
        %v766 = vpack.c.b16 %v758, %v750
        %v767 = vpack.c.b16 %v759, %v751
        %768 = vrot.lane.b32.xlu0 %v760, 126
        %v769 = vpop.permute.xlu0 %768
        %770 = vrot.lane.b32.xlu0 %v761, 126
        %v771 = vpop.permute.xlu0 %770
        %772 = vrot.lane.b32.xlu0 %v762, 126
        %v773 = vpop.permute.xlu0 %772
        %774 = vrot.lane.b32.xlu0 %v763, 126
        %v775 = vpop.permute.xlu0 %774
        %776 = vrot.lane.b32.xlu0 %v764, 126
        %v777 = vpop.permute.xlu0 %776
        %778 = vrot.lane.b32.xlu0 %v765, 126
        %v779 = vpop.permute.xlu0 %778
        %780 = vrot.lane.b32.xlu0 %v766, 126
        %v781 = vpop.permute.xlu0 %780
        %782 = vrot.lane.b32.xlu0 %v767, 126
        %v783 = vpop.permute.xlu0 %782
        %vm784 = vcmask 1031168
        %v785 = vsel %vm784, %v769, %v771
        %v786 = vsel %vm784, %v771, %v773
        %v787 = vsel %vm784, %v773, %v775
        %v788 = vsel %vm784, %v775, %v777
        %v789 = vsel %vm784, %v777, %v779
        %v790 = vsel %vm784, %v779, %v781
        %v791 = vsel %vm784, %v781, %v783
        %792 = vrot.lane.b32.xlu0 %v760, 124
        %v793 = vpop.permute.xlu0 %792
        %794 = vrot.lane.b32.xlu0 %v761, 124
        %v795 = vpop.permute.xlu0 %794
        %796 = vrot.lane.b32.xlu0 %v762, 124
        %v797 = vpop.permute.xlu0 %796
        %798 = vrot.lane.b32.xlu0 %v763, 124
        %v799 = vpop.permute.xlu0 %798
        %800 = vrot.lane.b32.xlu0 %v764, 124
        %v801 = vpop.permute.xlu0 %800
        %802 = vrot.lane.b32.xlu0 %v765, 124
        %v803 = vpop.permute.xlu0 %802
        %804 = vrot.lane.b32.xlu0 %v766, 124
        %v805 = vpop.permute.xlu0 %804
        %806 = vrot.lane.b32.xlu0 %v767, 124
        %v807 = vpop.permute.xlu0 %806
        %vm808 = vcmask 1014784
        %v809 = vsel %vm808, %v793, %v795
        %v810 = vsel %vm808, %v795, %v797
        %v811 = vsel %vm808, %v797, %v799
        %v812 = vsel %vm808, %v799, %v801
        %v813 = vsel %vm808, %v801, %v803
        %v814 = vsel %vm808, %v803, %v805
        %v815 = vsel %vm808, %v805, %v807
        %816 = vrot.lane.b32.xlu0 %v760, 72
        %v817 = vpop.permute.xlu0 %816
        %818 = vrot.lane.b32.xlu0 %v761, 72
        %v819 = vpop.permute.xlu0 %818
        %820 = vrot.lane.b32.xlu0 %v762, 72
        %v821 = vpop.permute.xlu0 %820
        %822 = vrot.lane.b32.xlu0 %v763, 72
        %v823 = vpop.permute.xlu0 %822
        %824 = vrot.lane.b32.xlu0 %v764, 72
        %v825 = vpop.permute.xlu0 %824
        %826 = vrot.lane.b32.xlu0 %v765, 72
        %v827 = vpop.permute.xlu0 %826
        %828 = vrot.lane.b32.xlu0 %v766, 72
        %v829 = vpop.permute.xlu0 %828
        %830 = vrot.lane.b32.xlu0 %v767, 72
        %v831 = vpop.permute.xlu0 %830
        %vm832 = vcmask 588800
        %v833 = vsel %vm832, %v817, %v819
        %v834 = vsel %vm832, %v819, %v821
        %v835 = vsel %vm832, %v821, %v823
        %v836 = vsel %vm832, %v823, %v825
        %v837 = vsel %vm832, %v825, %v827
        %v838 = vsel %vm832, %v827, %v829
        %v839 = vsel %vm832, %v829, %v831
        %v848 = vunpack.c.l.b16 %v728
        %v849 = vunpack.c.h.b16 %v728
        %v850 = vunpack.c.l.b16 %v729
        %v851 = vunpack.c.h.b16 %v729
        %v852 = vunpack.c.l.b16 %v730
        %v853 = vunpack.c.h.b16 %v730
        %v854 = vunpack.c.l.b16 %v731
        %v855 = vunpack.c.h.b16 %v731
        %v856 = vunpack.c.l.b16 %v732
        %v857 = vunpack.c.h.b16 %v732
        %v858 = vunpack.c.l.b16 %v733
        %v859 = vunpack.c.h.b16 %v733
        %v860 = vunpack.c.l.b16 %v734
        %v861 = vunpack.c.h.b16 %v734
        %v862 = vunpack.c.l.b16 %v735
        %v863 = vunpack.c.h.b16 %v735
        %v864 = vpack.c.b16 %v856, %v848
        %v865 = vpack.c.b16 %v857, %v849
        %v866 = vpack.c.b16 %v858, %v850
        %v867 = vpack.c.b16 %v859, %v851
        %v868 = vpack.c.b16 %v860, %v852
        %v869 = vpack.c.b16 %v861, %v853
        %v870 = vpack.c.b16 %v862, %v854
        %v871 = vpack.c.b16 %v863, %v855
        %872 = vrot.lane.b32.xlu0 %v864, 68
        %v873 = vpop.permute.xlu0 %872
        %874 = vrot.lane.b32.xlu0 %v865, 68
        %v875 = vpop.permute.xlu0 %874
        %876 = vrot.lane.b32.xlu0 %v866, 68
        %v877 = vpop.permute.xlu0 %876
        %878 = vrot.lane.b32.xlu0 %v867, 68
        %v879 = vpop.permute.xlu0 %878
        %880 = vrot.lane.b32.xlu0 %v868, 68
        %v881 = vpop.permute.xlu0 %880
        %882 = vrot.lane.b32.xlu0 %v869, 68
        %v883 = vpop.permute.xlu0 %882
        %884 = vrot.lane.b32.xlu0 %v870, 68
        %v885 = vpop.permute.xlu0 %884
        %886 = vrot.lane.b32.xlu0 %v871, 68
        %v887 = vpop.permute.xlu0 %886
        %vm888 = vcmask 556032
        %v889 = vsel %vm888, %v873, %v875
        %v890 = vsel %vm888, %v875, %v877
        %v891 = vsel %vm888, %v877, %v879
        %v892 = vsel %vm888, %v879, %v881
        %v893 = vsel %vm888, %v881, %v883
        %v894 = vsel %vm888, %v883, %v885
        %v895 = vsel %vm888, %v885, %v887
        %896 = vrot.lane.b32.xlu0 %v864, 16
        %v897 = vpop.permute.xlu0 %896
        %898 = vrot.lane.b32.xlu0 %v865, 16
        %v899 = vpop.permute.xlu0 %898
        %900 = vrot.lane.b32.xlu0 %v866, 16
        %v901 = vpop.permute.xlu0 %900
        %902 = vrot.lane.b32.xlu0 %v867, 16
        %v903 = vpop.permute.xlu0 %902
        %904 = vrot.lane.b32.xlu0 %v868, 16
        %v905 = vpop.permute.xlu0 %904
        %906 = vrot.lane.b32.xlu0 %v869, 16
        %v907 = vpop.permute.xlu0 %906
        %908 = vrot.lane.b32.xlu0 %v870, 16
        %v909 = vpop.permute.xlu0 %908
        %910 = vrot.lane.b32.xlu0 %v871, 16
        %v911 = vpop.permute.xlu0 %910
        %vm912 = vcmask 130048
        %v913 = vsel %vm912, %v897, %v899
        %v914 = vsel %vm912, %v899, %v901
        %v915 = vsel %vm912, %v901, %v903
        %v916 = vsel %vm912, %v903, %v905
        %v917 = vsel %vm912, %v905, %v907
        %v918 = vsel %vm912, %v907, %v909
        %v919 = vsel %vm912, %v909, %v911
        %920 = vrot.lane.b32.xlu0 %v864, 14
        %v921 = vpop.permute.xlu0 %920
        %922 = vrot.lane.b32.xlu0 %v865, 14
        %v923 = vpop.permute.xlu0 %922
        %924 = vrot.lane.b32.xlu0 %v866, 14
        %v925 = vpop.permute.xlu0 %924
        %926 = vrot.lane.b32.xlu0 %v867, 14
        %v927 = vpop.permute.xlu0 %926
        %928 = vrot.lane.b32.xlu0 %v868, 14
        %v929 = vpop.permute.xlu0 %928
        %930 = vrot.lane.b32.xlu0 %v869, 14
        %v931 = vpop.permute.xlu0 %930
        %932 = vrot.lane.b32.xlu0 %v870, 14
        %v933 = vpop.permute.xlu0 %932
        %934 = vrot.lane.b32.xlu0 %v871, 14
        %v935 = vpop.permute.xlu0 %934
        %vm936 = vcmask 113664
        %v937 = vsel %vm936, %v921, %v923
        %v938 = vsel %vm936, %v923, %v925
        %v939 = vsel %vm936, %v925, %v927
        %v940 = vsel %vm936, %v927, %v929
        %v941 = vsel %vm936, %v929, %v931
        %v942 = vsel %vm936, %v931, %v933
        %v943 = vsel %vm936, %v933, %v935
        %944 = vrot.lane.b32.xlu0 %v864, 12
        %v945 = vpop.permute.xlu0 %944
        %946 = vrot.lane.b32.xlu0 %v865, 12
        %v947 = vpop.permute.xlu0 %946
        %948 = vrot.lane.b32.xlu0 %v866, 12
        %v949 = vpop.permute.xlu0 %948
        %950 = vrot.lane.b32.xlu0 %v867, 12
        %v951 = vpop.permute.xlu0 %950
        %952 = vrot.lane.b32.xlu0 %v868, 12
        %v953 = vpop.permute.xlu0 %952
        %954 = vrot.lane.b32.xlu0 %v869, 12
        %v955 = vpop.permute.xlu0 %954
        %956 = vrot.lane.b32.xlu0 %v870, 12
        %v957 = vpop.permute.xlu0 %956
        %958 = vrot.lane.b32.xlu0 %v871, 12
        %v959 = vpop.permute.xlu0 %958
        %vm960 = vcmask 97280
        %v961 = vsel %vm960, %v945, %v947
        %v962 = vsel %vm960, %v947, %v949
        %v963 = vsel %vm960, %v949, %v951
        %v964 = vsel %vm960, %v951, %v953
        %v965 = vsel %vm960, %v953, %v955
        %v966 = vsel %vm960, %v955, %v957
        %v967 = vsel %vm960, %v957, %v959
        %v968 = vld [vmem:[%s2] sm:$0xf]
        %969 = vrot.lane.b32.xlu0 %v760, 58
        %v970 = vpop.permute.xlu0 %969
        %971 = vrot.lane.b32.xlu0 %v761, 58
        %v972 = vpop.permute.xlu0 %971
        %973 = vrot.lane.b32.xlu0 %v762, 58
        %v974 = vpop.permute.xlu0 %973
        %975 = vrot.lane.b32.xlu0 %v763, 58
        %v976 = vpop.permute.xlu0 %975
        %977 = vrot.lane.b32.xlu0 %v764, 58
        %v978 = vpop.permute.xlu0 %977
        %979 = vrot.lane.b32.xlu0 %v765, 58
        %v980 = vpop.permute.xlu0 %979
        %981 = vrot.lane.b32.xlu0 %v766, 58
        %v982 = vpop.permute.xlu0 %981
        %983 = vrot.lane.b32.xlu0 %v767, 58
        %v984 = vpop.permute.xlu0 %983
        %985 = vrot.lane.b32.xlu0 %v785, 58
        %v986 = vpop.permute.xlu0 %985
        %987 = vrot.lane.b32.xlu0 %v786, 58
        %v988 = vpop.permute.xlu0 %987
        %989 = vrot.lane.b32.xlu0 %v787, 58
        %v990 = vpop.permute.xlu0 %989
        %991 = vrot.lane.b32.xlu0 %v788, 58
        %v992 = vpop.permute.xlu0 %991
        %993 = vrot.lane.b32.xlu0 %v789, 58
        %v994 = vpop.permute.xlu0 %993
        %995 = vrot.lane.b32.xlu0 %v790, 58
        %v996 = vpop.permute.xlu0 %995
        %997 = vrot.lane.b32.xlu0 %v791, 58
        %v998 = vpop.permute.xlu0 %997
        %999 = vrot.lane.b32.xlu0 %v783, 58
        %v1000 = vpop.permute.xlu0 %999
        %1001 = vrot.lane.b32.xlu0 %v809, 58
        %v1002 = vpop.permute.xlu0 %1001
        %1003 = vrot.lane.b32.xlu0 %v810, 58
        %v1004 = vpop.permute.xlu0 %1003
        %1005 = vrot.lane.b32.xlu0 %v811, 58
        %v1006 = vpop.permute.xlu0 %1005
        %1007 = vrot.lane.b32.xlu0 %v812, 58
        %v1008 = vpop.permute.xlu0 %1007
        %1009 = vrot.lane.b32.xlu0 %v813, 58
        %v1010 = vpop.permute.xlu0 %1009
        %1011 = vrot.lane.b32.xlu0 %v814, 58
        %v1012 = vpop.permute.xlu0 %1011
        %1013 = vrot.lane.b32.xlu0 %v815, 58
        %v1014 = vpop.permute.xlu0 %1013
        %1015 = vrot.lane.b32.xlu0 %v807, 58
        %v1016 = vpop.permute.xlu0 %1015
        %1017 = vrot.lane.b32.xlu0 %v833, 58
        %v1018 = vpop.permute.xlu0 %1017
        %1019 = vrot.lane.b32.xlu0 %v834, 58
        %v1020 = vpop.permute.xlu0 %1019
        %1021 = vrot.lane.b32.xlu0 %v835, 58
        %v1022 = vpop.permute.xlu0 %1021
        %1023 = vrot.lane.b32.xlu0 %v836, 58
        %v1024 = vpop.permute.xlu0 %1023
        %1025 = vrot.lane.b32.xlu0 %v837, 58
        %v1026 = vpop.permute.xlu0 %1025
        %1027 = vrot.lane.b32.xlu0 %v838, 58
        %v1028 = vpop.permute.xlu0 %1027
        %1029 = vrot.lane.b32.xlu0 %v839, 58
        %v1030 = vpop.permute.xlu0 %1029
        %1031 = vrot.lane.b32.xlu0 %v831, 58
        %v1032 = vpop.permute.xlu0 %1031
        %1033 = vrot.lane.b32.xlu0 %v873, 58
        %v1034 = vpop.permute.xlu0 %1033
        %1035 = vrot.lane.b32.xlu0 %v889, 58
        %v1036 = vpop.permute.xlu0 %1035
        %1037 = vrot.lane.b32.xlu0 %v890, 58
        %v1038 = vpop.permute.xlu0 %1037
        %1039 = vrot.lane.b32.xlu0 %v891, 58
        %v1040 = vpop.permute.xlu0 %1039
        %1041 = vrot.lane.b32.xlu0 %v892, 58
        %v1042 = vpop.permute.xlu0 %1041
        %1043 = vrot.lane.b32.xlu0 %v893, 58
        %v1044 = vpop.permute.xlu0 %1043
        %1045 = vrot.lane.b32.xlu0 %v894, 58
        %v1046 = vpop.permute.xlu0 %1045
        %1047 = vrot.lane.b32.xlu0 %v895, 58
        %v1048 = vpop.permute.xlu0 %1047
        %1049 = vrot.lane.b32.xlu0 %v897, 58
        %v1050 = vpop.permute.xlu0 %1049
        %1051 = vrot.lane.b32.xlu0 %v913, 58
        %v1052 = vpop.permute.xlu0 %1051
        %1053 = vrot.lane.b32.xlu0 %v914, 58
        %v1054 = vpop.permute.xlu0 %1053
        %1055 = vrot.lane.b32.xlu0 %v915, 58
        %v1056 = vpop.permute.xlu0 %1055
        %1057 = vrot.lane.b32.xlu0 %v916, 58
        %v1058 = vpop.permute.xlu0 %1057
        %1059 = vrot.lane.b32.xlu0 %v917, 58
        %v1060 = vpop.permute.xlu0 %1059
        %1061 = vrot.lane.b32.xlu0 %v918, 58
        %v1062 = vpop.permute.xlu0 %1061
        %1063 = vrot.lane.b32.xlu0 %v919, 58
        %v1064 = vpop.permute.xlu0 %1063
        %1065 = vrot.lane.b32.xlu0 %v921, 58
        %v1066 = vpop.permute.xlu0 %1065
        %1067 = vrot.lane.b32.xlu0 %v937, 58
        %v1068 = vpop.permute.xlu0 %1067
        %1069 = vrot.lane.b32.xlu0 %v938, 58
        %v1070 = vpop.permute.xlu0 %1069
        %1071 = vrot.lane.b32.xlu0 %v939, 58
        %v1072 = vpop.permute.xlu0 %1071
        %1073 = vrot.lane.b32.xlu0 %v940, 58
        %v1074 = vpop.permute.xlu0 %1073
        %1075 = vrot.lane.b32.xlu0 %v941, 58
        %v1076 = vpop.permute.xlu0 %1075
        %1077 = vrot.lane.b32.xlu0 %v942, 58
        %v1078 = vpop.permute.xlu0 %1077
        %1079 = vrot.lane.b32.xlu0 %v943, 58
        %v1080 = vpop.permute.xlu0 %1079
        %1081 = vrot.lane.b32.xlu0 %v945, 58
        %v1082 = vpop.permute.xlu0 %1081
        %1083 = vrot.lane.b32.xlu0 %v961, 58
        %v1084 = vpop.permute.xlu0 %1083
        %1085 = vrot.lane.b32.xlu0 %v962, 58
        %v1086 = vpop.permute.xlu0 %1085
        %1087 = vrot.lane.b32.xlu0 %v963, 58
        %v1088 = vpop.permute.xlu0 %1087
        %1089 = vrot.lane.b32.xlu0 %v964, 58
        %v1090 = vpop.permute.xlu0 %1089
        %1091 = vrot.lane.b32.xlu0 %v965, 58
        %v1092 = vpop.permute.xlu0 %1091
        %1093 = vrot.lane.b32.xlu0 %v966, 58
        %v1094 = vpop.permute.xlu0 %1093
        %1095 = vrot.lane.b32.xlu0 %v967, 58
        %v1096 = vpop.permute.xlu0 %1095
        %vm1097 = vcmask 474112
        %v1098 = vsel %vm1097, %v970, %v972
        %v1099 = vsel %vm1097, %v972, %v974
        %v1100 = vsel %vm1097, %v974, %v976
        %v1101 = vsel %vm1097, %v976, %v978
        %v1102 = vsel %vm1097, %v978, %v980
        %v1103 = vsel %vm1097, %v980, %v982
        %v1104 = vsel %vm1097, %v982, %v984
        %v1105 = vsel %vm1097, %v986, %v988
        %v1106 = vsel %vm1097, %v988, %v990
        %v1107 = vsel %vm1097, %v990, %v992
        %v1108 = vsel %vm1097, %v992, %v994
        %v1109 = vsel %vm1097, %v994, %v996
        %v1110 = vsel %vm1097, %v996, %v998
        %v1111 = vsel %vm1097, %v998, %v1000
        %v1112 = vsel %vm1097, %v1002, %v1004
        %v1113 = vsel %vm1097, %v1004, %v1006
        %v1114 = vsel %vm1097, %v1006, %v1008
        %v1115 = vsel %vm1097, %v1008, %v1010
        %v1116 = vsel %vm1097, %v1010, %v1012
        %v1117 = vsel %vm1097, %v1012, %v1014
        %v1118 = vsel %vm1097, %v1014, %v1016
        %v1119 = vsel %vm1097, %v1018, %v1020
        %v1120 = vsel %vm1097, %v1020, %v1022
        %v1121 = vsel %vm1097, %v1022, %v1024
        %v1122 = vsel %vm1097, %v1024, %v1026
        %v1123 = vsel %vm1097, %v1026, %v1028
        %v1124 = vsel %vm1097, %v1028, %v1030
        %v1125 = vsel %vm1097, %v1030, %v1032
        %v1126 = vsel %vm1097, %v1034, %v1036
        %v1127 = vsel %vm1097, %v1036, %v1038
        %v1128 = vsel %vm1097, %v1038, %v1040
        %v1129 = vsel %vm1097, %v1040, %v1042
        %v1130 = vsel %vm1097, %v1042, %v1044
        %v1131 = vsel %vm1097, %v1044, %v1046
        %v1132 = vsel %vm1097, %v1046, %v1048
        %v1133 = vsel %vm1097, %v1050, %v1052
        %v1134 = vsel %vm1097, %v1052, %v1054
        %v1135 = vsel %vm1097, %v1054, %v1056
        %v1136 = vsel %vm1097, %v1056, %v1058
        %v1137 = vsel %vm1097, %v1058, %v1060
        %v1138 = vsel %vm1097, %v1060, %v1062
        %v1139 = vsel %vm1097, %v1062, %v1064
        %v1140 = vsel %vm1097, %v1066, %v1068
        %v1141 = vsel %vm1097, %v1068, %v1070
        %v1142 = vsel %vm1097, %v1070, %v1072
        %v1143 = vsel %vm1097, %v1072, %v1074
        %v1144 = vsel %vm1097, %v1074, %v1076
        %v1145 = vsel %vm1097, %v1076, %v1078
        %v1146 = vsel %vm1097, %v1078, %v1080
        %v1147 = vsel %vm1097, %v1082, %v1084
        %v1148 = vsel %vm1097, %v1084, %v1086
        %v1149 = vsel %vm1097, %v1086, %v1088
        %v1150 = vsel %vm1097, %v1088, %v1090
        %v1151 = vsel %vm1097, %v1090, %v1092
        %v1152 = vsel %vm1097, %v1092, %v1094
        %v1153 = vsel %vm1097, %v1094, %v1096
        %1210 = vmatprep.subr.bf16.mxu0 %v1099
        %1211 = vmatpush1.bf16.msra.mxu0 %v1098
        %1212 = vmatprep.subr.bf16.mxu0 %v1106
        %1213 = vmatpush1.bf16.msra.mxu0 %v1105
        %1214 = vmatprep.subr.bf16.mxu0 %v1113
        %1215 = vmatpush1.bf16.msra.mxu0 %v1112
        %1216 = vmatprep.subr.bf16.mxu0 %v1120
        %1217 = vmatpush1.bf16.msra.mxu0 %v1119
        %1218 = vmatprep.subr.bf16.mxu0 %v1127
        %1219 = vmatpush1.bf16.msra.mxu0 %v1126
        %1220 = vmatprep.subr.bf16.mxu0 %v1134
        %1221 = vmatpush1.bf16.msra.mxu0 %v1133
        %1222 = vmatprep.subr.bf16.mxu0 %v1141
        %1223 = vmatpush1.bf16.msra.mxu0 %v1140
        %1224 = vmatprep.subr.bf16.mxu0 %v1148
        %1225 = vmatpush1.bf16.msra.mxu0 %v1147
        %1226 = vmatprep.subr.bf16.mxu0 0
        %1227 = vmatpush1.bf16.msra.mxu0 0
        %1228 = vmatprep.subr.bf16.mxu0 0
        %1229 = vmatpush1.bf16.msra.mxu0 0
        %1230 = vmatprep.subr.bf16.mxu0 0
        %1231 = vmatpush1.bf16.msra.mxu0 0
        %1232 = vmatprep.subr.bf16.mxu0 0
        %1233 = vmatpush1.bf16.msra.mxu0 0
        %1234 = vmatprep.subr.bf16.mxu0 0
        %1235 = vmatpush1.bf16.msra.mxu0 0
        %1236 = vmatprep.subr.bf16.mxu0 0
        %1237 = vmatpush1.bf16.msra.mxu0 0
        %1238 = vmatprep.subr.bf16.mxu0 0
        %1239 = vmatpush1.bf16.msra.mxu0 0
        %1240 = vmatprep.subr.bf16.mxu0 0
        %1241 = vmatpush1.bf16.msra.mxu0 0
        %1242 = vmatprep.mubr.bf16.mxu0 0
        %1243 = vmatmul.mubr.bf16.gmra.mrb[0].mxu0 %v968
        %v1244 = vpop.f32.mrb[0].mxu0
        %v1245 = vadd.f32 0.0, %v1244
        %v1246 = vpop.f32.mrb[0].mxu0
        %v1247 = vadd.f32 0.0, %v1246
        %v1248 = vpop.f32.mrb[0].mxu0
        %v1249 = vpop.f32.mrb[0].mxu0
        %1250 = vdwg.mxu0
        %1251 = vmatprep.subr.bf16.mxu0 %v1101
        %1252 = vmatpush1.bf16.msra.mxu0 %v1100
        %1253 = vmatprep.subr.bf16.mxu0 %v1108
        %1254 = vmatpush1.bf16.msra.mxu0 %v1107
        %1255 = vmatprep.subr.bf16.mxu0 %v1115
        %1256 = vmatpush1.bf16.msra.mxu0 %v1114
        %1257 = vmatprep.subr.bf16.mxu0 %v1122
        %1258 = vmatpush1.bf16.msra.mxu0 %v1121
        %1259 = vmatprep.subr.bf16.mxu0 %v1129
        %1260 = vmatpush1.bf16.msra.mxu0 %v1128
        %1261 = vmatprep.subr.bf16.mxu0 %v1136
        %1262 = vmatpush1.bf16.msra.mxu0 %v1135
        %1263 = vmatprep.subr.bf16.mxu0 %v1143
        %1264 = vmatpush1.bf16.msra.mxu0 %v1142
        %1265 = vmatprep.subr.bf16.mxu0 %v1150
        %1266 = vmatpush1.bf16.msra.mxu0 %v1149
        %1267 = vmatprep.subr.bf16.mxu0 0
        %1268 = vmatpush1.bf16.msra.mxu0 0
        %1269 = vmatprep.subr.bf16.mxu0 0
        %1270 = vmatpush1.bf16.msra.mxu0 0
        %1271 = vmatprep.subr.bf16.mxu0 0
        %1272 = vmatpush1.bf16.msra.mxu0 0
        %1273 = vmatprep.subr.bf16.mxu0 0
        %1274 = vmatpush1.bf16.msra.mxu0 0
        %1275 = vmatprep.subr.bf16.mxu0 0
        %1276 = vmatpush1.bf16.msra.mxu0 0
        %1277 = vmatprep.subr.bf16.mxu0 0
        %1278 = vmatpush1.bf16.msra.mxu0 0
        %1279 = vmatprep.subr.bf16.mxu0 0
        %1280 = vmatpush1.bf16.msra.mxu0 0
        %1281 = vmatprep.subr.bf16.mxu0 0
        %1282 = vmatpush1.bf16.msra.mxu0 0
        %1283 = vmatprep.mubr.bf16.mxu0 0
        %1284 = vmatmul.mubr.bf16.gmra.mrb[0].mxu0 %v968
        %v1285 = vpop.f32.mrb[0].mxu0
        %v1286 = vadd.f32 0.0, %v1285
        %v1287 = vpop.f32.mrb[0].mxu0
        %v1288 = vadd.f32 0.0, %v1287
        %v1289 = vpop.f32.mrb[0].mxu0
        %v1290 = vpop.f32.mrb[0].mxu0
        %1291 = vdwg.mxu0
        %1292 = vmatprep.subr.bf16.mxu0 %v1103
        %1293 = vmatpush1.bf16.msra.mxu0 %v1102
        %1294 = vmatprep.subr.bf16.mxu0 %v1110
        %1295 = vmatpush1.bf16.msra.mxu0 %v1109
        %1296 = vmatprep.subr.bf16.mxu0 %v1117
        %1297 = vmatpush1.bf16.msra.mxu0 %v1116
        %1298 = vmatprep.subr.bf16.mxu0 %v1124
        %1299 = vmatpush1.bf16.msra.mxu0 %v1123
        %1300 = vmatprep.subr.bf16.mxu0 %v1131
        %1301 = vmatpush1.bf16.msra.mxu0 %v1130
        %1302 = vmatprep.subr.bf16.mxu0 %v1138
        %1303 = vmatpush1.bf16.msra.mxu0 %v1137
        %1304 = vmatprep.subr.bf16.mxu0 %v1145
        %1305 = vmatpush1.bf16.msra.mxu0 %v1144
        %1306 = vmatprep.subr.bf16.mxu0 %v1152
        %1307 = vmatpush1.bf16.msra.mxu0 %v1151
        %1308 = vmatprep.subr.bf16.mxu0 0
        %1309 = vmatpush1.bf16.msra.mxu0 0
        %1310 = vmatprep.subr.bf16.mxu0 0
        %1311 = vmatpush1.bf16.msra.mxu0 0
        %1312 = vmatprep.subr.bf16.mxu0 0
        %1313 = vmatpush1.bf16.msra.mxu0 0
        %1314 = vmatprep.subr.bf16.mxu0 0
        %1315 = vmatpush1.bf16.msra.mxu0 0
        %1316 = vmatprep.subr.bf16.mxu0 0
        %1317 = vmatpush1.bf16.msra.mxu0 0
        %1318 = vmatprep.subr.bf16.mxu0 0
        %1319 = vmatpush1.bf16.msra.mxu0 0
        %1320 = vmatprep.subr.bf16.mxu0 0
        %1321 = vmatpush1.bf16.msra.mxu0 0
        %1322 = vmatprep.subr.bf16.mxu0 0
        %1323 = vmatpush1.bf16.msra.mxu0 0
        %1324 = vmatprep.mubr.bf16.mxu0 0
        %1325 = vmatmul.mubr.bf16.gmra.mrb[0].mxu0 %v968
        %v1326 = vpop.f32.mrb[0].mxu0
        %v1327 = vadd.f32 0.0, %v1326
        %v1328 = vpop.f32.mrb[0].mxu0
        %v1329 = vadd.f32 0.0, %v1328
        %v1330 = vpop.f32.mrb[0].mxu0
        %v1331 = vpop.f32.mrb[0].mxu0
        %1332 = vdwg.mxu0
        %1333 = vmatprep.subr.bf16.mxu0 0
        %1334 = vmatpush1.bf16.msra.mxu0 %v1104
        %1335 = vmatprep.subr.bf16.mxu0 0
        %1336 = vmatpush1.bf16.msra.mxu0 %v1111
        %1337 = vmatprep.subr.bf16.mxu0 0
        %1338 = vmatpush1.bf16.msra.mxu0 %v1118
        %1339 = vmatprep.subr.bf16.mxu0 0
        %1340 = vmatpush1.bf16.msra.mxu0 %v1125
        %1341 = vmatprep.subr.bf16.mxu0 0
        %1342 = vmatpush1.bf16.msra.mxu0 %v1132
        %1343 = vmatprep.subr.bf16.mxu0 0
        %1344 = vmatpush1.bf16.msra.mxu0 %v1139
        %1345 = vmatprep.subr.bf16.mxu0 0
        %1346 = vmatpush1.bf16.msra.mxu0 %v1146
        %1347 = vmatprep.subr.bf16.mxu0 0
        %1348 = vmatpush1.bf16.msra.mxu0 %v1153
        %1349 = vmatprep.subr.bf16.mxu0 0
        %1350 = vmatpush1.bf16.msra.mxu0 0
        %1351 = vmatprep.subr.bf16.mxu0 0
        %1352 = vmatpush1.bf16.msra.mxu0 0
        %1353 = vmatprep.subr.bf16.mxu0 0
        %1354 = vmatpush1.bf16.msra.mxu0 0
        %1355 = vmatprep.subr.bf16.mxu0 0
        %1356 = vmatpush1.bf16.msra.mxu0 0
        %1357 = vmatprep.subr.bf16.mxu0 0
        %1358 = vmatpush1.bf16.msra.mxu0 0
        %1359 = vmatprep.subr.bf16.mxu0 0
        %1360 = vmatpush1.bf16.msra.mxu0 0
        %1361 = vmatprep.subr.bf16.mxu0 0
        %1362 = vmatpush1.bf16.msra.mxu0 0
        %1363 = vmatprep.subr.bf16.mxu0 0
        %1364 = vmatpush1.bf16.msra.mxu0 0
        %1365 = vmatprep.mubr.bf16.mxu0 0
        %1366 = vmatmul.mubr.bf16.gmra.mrb[0].mxu0 %v968
        %v1367 = vpop.f32.mrb[0].mxu0
        %v1368 = vadd.f32 0.0, %v1367
        %v1369 = vpop.f32.mrb[0].mxu0
        %v1370 = vpop.f32.mrb[0].mxu0
        %v1371 = vpop.f32.mrb[0].mxu0
        %1372 = vdwg.mxu0
        %v1373 = vadd.f32 %v510, %v1245
        %v1374 = vadd.f32 %v512, %v1247
        %v1375 = vadd.f32 %v563, %v1286
        %v1376 = vadd.f32 %v565, %v1288
        %v1377 = vadd.f32 %v616, %v1327
        %v1378 = vadd.f32 %v618, %v1329
        %v1379 = vadd.f32 %v668, %v1368
        %v1380 = vld [vmem:[%s5 + $0x8] sm:$0xff]
        %1382 = vset.pattern.permute.xlu0 0
        %1383 = vperm.xlu0 %1382, %v1380
        %v1384 = vpop.permute.xlu0 %1383
        %v1386 = vmul.f32 %v1373, %v1384
        %v1387 = vmul.f32 %v1374, %v1384
        %v1388 = vmul.f32 %v1375, %v1384
        %v1389 = vmul.f32 %v1376, %v1384
        %v1390 = vmul.f32 %v1377, %v1384
        %v1391 = vmul.f32 %v1378, %v1384
        %v1392 = vmul.f32 %v1379, %v1384
        %v1393 = vld [vmem:[%s6 + $0x8] sm:$0xff]
        %1395 = vset.pattern.permute.xlu0 0
        %1396 = vperm.xlu0 %1395, %v1393
        %v1397 = vpop.permute.xlu0 %1396
        %v1399 = vadd.f32 %v1386, %v1397
        %v1400 = vadd.f32 %v1387, %v1397
        %v1401 = vadd.f32 %v1388, %v1397
        %v1402 = vadd.f32 %v1389, %v1397
        %v1403 = vadd.f32 %v1390, %v1397
        %v1404 = vadd.f32 %v1391, %v1397
        %v1405 = vadd.f32 %v1392, %v1397
        %v1406 = vmax.f32 %v1399, 0.0
        %v1407 = vmax.f32 %v1400, 0.0
        %v1408 = vmax.f32 %v1401, 0.0
        %v1409 = vmax.f32 %v1402, 0.0
        %v1410 = vmax.f32 %v1403, 0.0
        %v1411 = vmax.f32 %v1404, 0.0
        %v1412 = vmax.f32 %v1405, 0.0
        %s1413 = scalar_lea.vmem %s8, 4
        %v1414 = vld [vmem:[%s1413] sm:$0xf]
        %v1415 = vpack.c.bf16 %v1406, %v1406
        %v1416 = vpack.c.bf16 %v1407, %v1407
        %v1417 = vpack.c.bf16 %v1408, %v1408
        %v1418 = vpack.c.bf16 %v1409, %v1409
        %v1419 = vpack.c.bf16 %v1410, %v1410
        %v1420 = vpack.c.bf16 %v1411, %v1411
        %v1421 = vpack.c.bf16 %v1412, %v1412
        %vm1422 = vcmask 64512
        %v1424 = vsel %vm1422, %v1414, 0
        %vm1426 = vcmask 1043456
        %v1428 = vsel %vm1426, %v1415, 0
        %v1431 = vsel %vm1426, %v1416, 0
        %v1434 = vsel %vm1426, %v1417, 0
        %v1437 = vsel %vm1426, %v1418, 0
        %v1440 = vsel %vm1426, %v1419, 0
        %v1443 = vsel %vm1426, %v1420, 0
        %v1446 = vsel %vm1426, %v1421, 0
        %1448 = vmatprep.subr.bf16.mxu0 %v1431
        %1449 = vmatpush1.bf16.msra.mxu0 %v1428
        %1450 = vmatprep.subr.bf16.mxu0 0
        %1451 = vmatpush1.bf16.msra.mxu0 0
        %1452 = vmatprep.subr.bf16.mxu0 0
        %1453 = vmatpush1.bf16.msra.mxu0 0
        %1454 = vmatprep.subr.bf16.mxu0 0
        %1455 = vmatpush1.bf16.msra.mxu0 0
        %1456 = vmatprep.subr.bf16.mxu0 0
        %1457 = vmatpush1.bf16.msra.mxu0 0
        %1458 = vmatprep.subr.bf16.mxu0 0
        %1459 = vmatpush1.bf16.msra.mxu0 0
        %1460 = vmatprep.subr.bf16.mxu0 0
        %1461 = vmatpush1.bf16.msra.mxu0 0
        %1462 = vmatprep.subr.bf16.mxu0 0
        %1463 = vmatpush1.bf16.msra.mxu0 0
        %1464 = vmatprep.subr.bf16.mxu0 0
        %1465 = vmatpush1.bf16.msra.mxu0 0
        %1466 = vmatprep.subr.bf16.mxu0 0
        %1467 = vmatpush1.bf16.msra.mxu0 0
        %1468 = vmatprep.subr.bf16.mxu0 0
        %1469 = vmatpush1.bf16.msra.mxu0 0
        %1470 = vmatprep.subr.bf16.mxu0 0
        %1471 = vmatpush1.bf16.msra.mxu0 0
        %1472 = vmatprep.subr.bf16.mxu0 0
        %1473 = vmatpush1.bf16.msra.mxu0 0
        %1474 = vmatprep.subr.bf16.mxu0 0
        %1475 = vmatpush1.bf16.msra.mxu0 0
        %1476 = vmatprep.subr.bf16.mxu0 0
        %1477 = vmatpush1.bf16.msra.mxu0 0
        %1478 = vmatprep.subr.bf16.mxu0 0
        %1479 = vmatpush1.bf16.msra.mxu0 0
        %1480 = vmatprep.mubr.bf16.mxu0 0
        %1481 = vmatmul.mubr.bf16.gmra.mrb[0].mxu0 %v1424
        %v1482 = vpop.f32.mrb[0].mxu0
        %v1483 = vadd.f32 0.0, %v1482
        %v1484 = vpop.f32.mrb[0].mxu0
        %v1485 = vadd.f32 0.0, %v1484
        %v1486 = vpop.f32.mrb[0].mxu0
        %v1487 = vpop.f32.mrb[0].mxu0
        %1488 = vdwg.mxu0
        %1489 = vmatprep.subr.bf16.mxu0 %v1437
        %1490 = vmatpush1.bf16.msra.mxu0 %v1434
        %1491 = vmatprep.subr.bf16.mxu0 0
        %1492 = vmatpush1.bf16.msra.mxu0 0
        %1493 = vmatprep.subr.bf16.mxu0 0
        %1494 = vmatpush1.bf16.msra.mxu0 0
        %1495 = vmatprep.subr.bf16.mxu0 0
        %1496 = vmatpush1.bf16.msra.mxu0 0
        %1497 = vmatprep.subr.bf16.mxu0 0
        %1498 = vmatpush1.bf16.msra.mxu0 0
        %1499 = vmatprep.subr.bf16.mxu0 0
        %1500 = vmatpush1.bf16.msra.mxu0 0
        %1501 = vmatprep.subr.bf16.mxu0 0
        %1502 = vmatpush1.bf16.msra.mxu0 0
        %1503 = vmatprep.subr.bf16.mxu0 0
        %1504 = vmatpush1.bf16.msra.mxu0 0
        %1505 = vmatprep.subr.bf16.mxu0 0
        %1506 = vmatpush1.bf16.msra.mxu0 0
        %1507 = vmatprep.subr.bf16.mxu0 0
        %1508 = vmatpush1.bf16.msra.mxu0 0
        %1509 = vmatprep.subr.bf16.mxu0 0
        %1510 = vmatpush1.bf16.msra.mxu0 0
        %1511 = vmatprep.subr.bf16.mxu0 0
        %1512 = vmatpush1.bf16.msra.mxu0 0
        %1513 = vmatprep.subr.bf16.mxu0 0
        %1514 = vmatpush1.bf16.msra.mxu0 0
        %1515 = vmatprep.subr.bf16.mxu0 0
        %1516 = vmatpush1.bf16.msra.mxu0 0
        %1517 = vmatprep.subr.bf16.mxu0 0
        %1518 = vmatpush1.bf16.msra.mxu0 0
        %1519 = vmatprep.subr.bf16.mxu0 0
        %1520 = vmatpush1.bf16.msra.mxu0 0
        %1521 = vmatprep.mubr.bf16.mxu0 0
        %1522 = vmatmul.mubr.bf16.gmra.mrb[0].mxu0 %v1424
        %v1523 = vpop.f32.mrb[0].mxu0
        %v1524 = vadd.f32 0.0, %v1523
        %v1525 = vpop.f32.mrb[0].mxu0
        %v1526 = vadd.f32 0.0, %v1525
        %v1527 = vpop.f32.mrb[0].mxu0
        %v1528 = vpop.f32.mrb[0].mxu0
        %1529 = vdwg.mxu0
        %1530 = vmatprep.subr.bf16.mxu0 %v1443
        %1531 = vmatpush1.bf16.msra.mxu0 %v1440
        %1532 = vmatprep.subr.bf16.mxu0 0
        %1533 = vmatpush1.bf16.msra.mxu0 0
        %1534 = vmatprep.subr.bf16.mxu0 0
        %1535 = vmatpush1.bf16.msra.mxu0 0
        %1536 = vmatprep.subr.bf16.mxu0 0
        %1537 = vmatpush1.bf16.msra.mxu0 0
        %1538 = vmatprep.subr.bf16.mxu0 0
        %1539 = vmatpush1.bf16.msra.mxu0 0
        %1540 = vmatprep.subr.bf16.mxu0 0
        %1541 = vmatpush1.bf16.msra.mxu0 0
        %1542 = vmatprep.subr.bf16.mxu0 0
        %1543 = vmatpush1.bf16.msra.mxu0 0
        %1544 = vmatprep.subr.bf16.mxu0 0
        %1545 = vmatpush1.bf16.msra.mxu0 0
        %1546 = vmatprep.subr.bf16.mxu0 0
        %1547 = vmatpush1.bf16.msra.mxu0 0
        %1548 = vmatprep.subr.bf16.mxu0 0
        %1549 = vmatpush1.bf16.msra.mxu0 0
        %1550 = vmatprep.subr.bf16.mxu0 0
        %1551 = vmatpush1.bf16.msra.mxu0 0
        %1552 = vmatprep.subr.bf16.mxu0 0
        %1553 = vmatpush1.bf16.msra.mxu0 0
        %1554 = vmatprep.subr.bf16.mxu0 0
        %1555 = vmatpush1.bf16.msra.mxu0 0
        %1556 = vmatprep.subr.bf16.mxu0 0
        %1557 = vmatpush1.bf16.msra.mxu0 0
        %1558 = vmatprep.subr.bf16.mxu0 0
        %1559 = vmatpush1.bf16.msra.mxu0 0
        %1560 = vmatprep.subr.bf16.mxu0 0
        %1561 = vmatpush1.bf16.msra.mxu0 0
        %1562 = vmatprep.mubr.bf16.mxu0 0
        %1563 = vmatmul.mubr.bf16.gmra.mrb[0].mxu0 %v1424
        %v1564 = vpop.f32.mrb[0].mxu0
        %v1565 = vadd.f32 0.0, %v1564
        %v1566 = vpop.f32.mrb[0].mxu0
        %v1567 = vadd.f32 0.0, %v1566
        %v1568 = vpop.f32.mrb[0].mxu0
        %v1569 = vpop.f32.mrb[0].mxu0
        %1570 = vdwg.mxu0
        %1571 = vmatprep.subr.bf16.mxu0 0
        %1572 = vmatpush1.bf16.msra.mxu0 %v1446
        %1573 = vmatprep.subr.bf16.mxu0 0
        %1574 = vmatpush1.bf16.msra.mxu0 0
        %1575 = vmatprep.subr.bf16.mxu0 0
        %1576 = vmatpush1.bf16.msra.mxu0 0
        %1577 = vmatprep.subr.bf16.mxu0 0
        %1578 = vmatpush1.bf16.msra.mxu0 0
        %1579 = vmatprep.subr.bf16.mxu0 0
        %1580 = vmatpush1.bf16.msra.mxu0 0
        %1581 = vmatprep.subr.bf16.mxu0 0
        %1582 = vmatpush1.bf16.msra.mxu0 0
        %1583 = vmatprep.subr.bf16.mxu0 0
        %1584 = vmatpush1.bf16.msra.mxu0 0
        %1585 = vmatprep.subr.bf16.mxu0 0
        %1586 = vmatpush1.bf16.msra.mxu0 0
        %1587 = vmatprep.subr.bf16.mxu0 0
        %1588 = vmatpush1.bf16.msra.mxu0 0
        %1589 = vmatprep.subr.bf16.mxu0 0
        %1590 = vmatpush1.bf16.msra.mxu0 0
        %1591 = vmatprep.subr.bf16.mxu0 0
        %1592 = vmatpush1.bf16.msra.mxu0 0
        %1593 = vmatprep.subr.bf16.mxu0 0
        %1594 = vmatpush1.bf16.msra.mxu0 0
        %1595 = vmatprep.subr.bf16.mxu0 0
        %1596 = vmatpush1.bf16.msra.mxu0 0
        %1597 = vmatprep.subr.bf16.mxu0 0
        %1598 = vmatpush1.bf16.msra.mxu0 0
        %1599 = vmatprep.subr.bf16.mxu0 0
        %1600 = vmatpush1.bf16.msra.mxu0 0
        %1601 = vmatprep.subr.bf16.mxu0 0
        %1602 = vmatpush1.bf16.msra.mxu0 0
        %1603 = vmatprep.mubr.bf16.mxu0 0
        %1604 = vmatmul.mubr.bf16.gmra.mrb[0].mxu0 %v1424
        %v1605 = vpop.f32.mrb[0].mxu0
        %v1606 = vadd.f32 0.0, %v1605
        %v1607 = vpop.f32.mrb[0].mxu0
        %v1608 = vpop.f32.mrb[0].mxu0
        %v1609 = vpop.f32.mrb[0].mxu0
        %1610 = vdwg.mxu0
        %v1612 = vsel %vm1422, %v712, 0
        %v1615 = vsel %vm1426, %v713, 0
        %v1618 = vsel %vm1426, %v714, 0
        %v1621 = vsel %vm1426, %v715, 0
        %v1624 = vsel %vm1426, %v716, 0
        %v1627 = vsel %vm1426, %v717, 0
        %v1630 = vsel %vm1426, %v718, 0
        %v1633 = vsel %vm1426, %v719, 0
        %1635 = vmatprep.subr.bf16.mxu0 %v1618
        %1636 = vmatpush1.bf16.msra.mxu0 %v1615
        %1637 = vmatprep.subr.bf16.mxu0 0
        %1638 = vmatpush1.bf16.msra.mxu0 0
        %1639 = vmatprep.subr.bf16.mxu0 0
        %1640 = vmatpush1.bf16.msra.mxu0 0
        %1641 = vmatprep.subr.bf16.mxu0 0
        %1642 = vmatpush1.bf16.msra.mxu0 0
        %1643 = vmatprep.subr.bf16.mxu0 0
        %1644 = vmatpush1.bf16.msra.mxu0 0
        %1645 = vmatprep.subr.bf16.mxu0 0
        %1646 = vmatpush1.bf16.msra.mxu0 0
        %1647 = vmatprep.subr.bf16.mxu0 0
        %1648 = vmatpush1.bf16.msra.mxu0 0
        %1649 = vmatprep.subr.bf16.mxu0 0
        %1650 = vmatpush1.bf16.msra.mxu0 0
        %1651 = vmatprep.subr.bf16.mxu0 0
        %1652 = vmatpush1.bf16.msra.mxu0 0
        %1653 = vmatprep.subr.bf16.mxu0 0
        %1654 = vmatpush1.bf16.msra.mxu0 0
        %1655 = vmatprep.subr.bf16.mxu0 0
        %1656 = vmatpush1.bf16.msra.mxu0 0
        %1657 = vmatprep.subr.bf16.mxu0 0
        %1658 = vmatpush1.bf16.msra.mxu0 0
        %1659 = vmatprep.subr.bf16.mxu0 0
        %1660 = vmatpush1.bf16.msra.mxu0 0
        %1661 = vmatprep.subr.bf16.mxu0 0
        %1662 = vmatpush1.bf16.msra.mxu0 0
        %1663 = vmatprep.subr.bf16.mxu0 0
        %1664 = vmatpush1.bf16.msra.mxu0 0
        %1665 = vmatprep.subr.bf16.mxu0 0
        %1666 = vmatpush1.bf16.msra.mxu0 0
        %1667 = vmatprep.mubr.bf16.mxu0 0
        %1668 = vmatmul.mubr.bf16.gmra.mrb[0].mxu0 %v1612
        %v1669 = vpop.f32.mrb[0].mxu0
        %v1670 = vadd.f32 %v1483, %v1669
        %v1671 = vpop.f32.mrb[0].mxu0
        %v1672 = vadd.f32 %v1485, %v1671
        %v1673 = vpop.f32.mrb[0].mxu0
        %v1674 = vpop.f32.mrb[0].mxu0
        %1675 = vdwg.mxu0
        %1676 = vmatprep.subr.bf16.mxu0 %v1624
        %1677 = vmatpush1.bf16.msra.mxu0 %v1621
        %1678 = vmatprep.subr.bf16.mxu0 0
        %1679 = vmatpush1.bf16.msra.mxu0 0
        %1680 = vmatprep.subr.bf16.mxu0 0
        %1681 = vmatpush1.bf16.msra.mxu0 0
        %1682 = vmatprep.subr.bf16.mxu0 0
        %1683 = vmatpush1.bf16.msra.mxu0 0
        %1684 = vmatprep.subr.bf16.mxu0 0
        %1685 = vmatpush1.bf16.msra.mxu0 0
        %1686 = vmatprep.subr.bf16.mxu0 0
        %1687 = vmatpush1.bf16.msra.mxu0 0
        %1688 = vmatprep.subr.bf16.mxu0 0
        %1689 = vmatpush1.bf16.msra.mxu0 0
        %1690 = vmatprep.subr.bf16.mxu0 0
        %1691 = vmatpush1.bf16.msra.mxu0 0
        %1692 = vmatprep.subr.bf16.mxu0 0
        %1693 = vmatpush1.bf16.msra.mxu0 0
        %1694 = vmatprep.subr.bf16.mxu0 0
        %1695 = vmatpush1.bf16.msra.mxu0 0
        %1696 = vmatprep.subr.bf16.mxu0 0
        %1697 = vmatpush1.bf16.msra.mxu0 0
        %1698 = vmatprep.subr.bf16.mxu0 0
        %1699 = vmatpush1.bf16.msra.mxu0 0
        %1700 = vmatprep.subr.bf16.mxu0 0
        %1701 = vmatpush1.bf16.msra.mxu0 0
        %1702 = vmatprep.subr.bf16.mxu0 0
        %1703 = vmatpush1.bf16.msra.mxu0 0
        %1704 = vmatprep.subr.bf16.mxu0 0
        %1705 = vmatpush1.bf16.msra.mxu0 0
        %1706 = vmatprep.subr.bf16.mxu0 0
        %1707 = vmatpush1.bf16.msra.mxu0 0
        %1708 = vmatprep.mubr.bf16.mxu0 0
        %1709 = vmatmul.mubr.bf16.gmra.mrb[0].mxu0 %v1612
        %v1710 = vpop.f32.mrb[0].mxu0
        %v1711 = vadd.f32 %v1524, %v1710
        %v1712 = vpop.f32.mrb[0].mxu0
        %v1713 = vadd.f32 %v1526, %v1712
        %v1714 = vpop.f32.mrb[0].mxu0
        %v1715 = vpop.f32.mrb[0].mxu0
        %1716 = vdwg.mxu0
        %1717 = vmatprep.subr.bf16.mxu0 %v1630
        %1718 = vmatpush1.bf16.msra.mxu0 %v1627
        %1719 = vmatprep.subr.bf16.mxu0 0
        %1720 = vmatpush1.bf16.msra.mxu0 0
        %1721 = vmatprep.subr.bf16.mxu0 0
        %1722 = vmatpush1.bf16.msra.mxu0 0
        %1723 = vmatprep.subr.bf16.mxu0 0
        %1724 = vmatpush1.bf16.msra.mxu0 0
        %1725 = vmatprep.subr.bf16.mxu0 0
        %1726 = vmatpush1.bf16.msra.mxu0 0
        %1727 = vmatprep.subr.bf16.mxu0 0
        %1728 = vmatpush1.bf16.msra.mxu0 0
        %1729 = vmatprep.subr.bf16.mxu0 0
        %1730 = vmatpush1.bf16.msra.mxu0 0
        %1731 = vmatprep.subr.bf16.mxu0 0
        %1732 = vmatpush1.bf16.msra.mxu0 0
        %1733 = vmatprep.subr.bf16.mxu0 0
        %1734 = vmatpush1.bf16.msra.mxu0 0
        %1735 = vmatprep.subr.bf16.mxu0 0
        %1736 = vmatpush1.bf16.msra.mxu0 0
        %1737 = vmatprep.subr.bf16.mxu0 0
        %1738 = vmatpush1.bf16.msra.mxu0 0
        %1739 = vmatprep.subr.bf16.mxu0 0
        %1740 = vmatpush1.bf16.msra.mxu0 0
        %1741 = vmatprep.subr.bf16.mxu0 0
        %1742 = vmatpush1.bf16.msra.mxu0 0
        %1743 = vmatprep.subr.bf16.mxu0 0
        %1744 = vmatpush1.bf16.msra.mxu0 0
        %1745 = vmatprep.subr.bf16.mxu0 0
        %1746 = vmatpush1.bf16.msra.mxu0 0
        %1747 = vmatprep.subr.bf16.mxu0 0
        %1748 = vmatpush1.bf16.msra.mxu0 0
        %1749 = vmatprep.mubr.bf16.mxu0 0
        %1750 = vmatmul.mubr.bf16.gmra.mrb[0].mxu0 %v1612
        %v1751 = vpop.f32.mrb[0].mxu0
        %v1752 = vadd.f32 %v1565, %v1751
        %v1753 = vpop.f32.mrb[0].mxu0
        %v1754 = vadd.f32 %v1567, %v1753
        %v1755 = vpop.f32.mrb[0].mxu0
        %v1756 = vpop.f32.mrb[0].mxu0
        %1757 = vdwg.mxu0
        %1758 = vmatprep.subr.bf16.mxu0 0
        %1759 = vmatpush1.bf16.msra.mxu0 %v1633
        %1760 = vmatprep.subr.bf16.mxu0 0
        %1761 = vmatpush1.bf16.msra.mxu0 0
        %1762 = vmatprep.subr.bf16.mxu0 0
        %1763 = vmatpush1.bf16.msra.mxu0 0
        %1764 = vmatprep.subr.bf16.mxu0 0
        %1765 = vmatpush1.bf16.msra.mxu0 0
        %1766 = vmatprep.subr.bf16.mxu0 0
        %1767 = vmatpush1.bf16.msra.mxu0 0
        %1768 = vmatprep.subr.bf16.mxu0 0
        %1769 = vmatpush1.bf16.msra.mxu0 0
        %1770 = vmatprep.subr.bf16.mxu0 0
        %1771 = vmatpush1.bf16.msra.mxu0 0
        %1772 = vmatprep.subr.bf16.mxu0 0
        %1773 = vmatpush1.bf16.msra.mxu0 0
        %1774 = vmatprep.subr.bf16.mxu0 0
        %1775 = vmatpush1.bf16.msra.mxu0 0
        %1776 = vmatprep.subr.bf16.mxu0 0
        %1777 = vmatpush1.bf16.msra.mxu0 0
        %1778 = vmatprep.subr.bf16.mxu0 0
        %1779 = vmatpush1.bf16.msra.mxu0 0
        %1780 = vmatprep.subr.bf16.mxu0 0
        %1781 = vmatpush1.bf16.msra.mxu0 0
        %1782 = vmatprep.subr.bf16.mxu0 0
        %1783 = vmatpush1.bf16.msra.mxu0 0
        %1784 = vmatprep.subr.bf16.mxu0 0
        %1785 = vmatpush1.bf16.msra.mxu0 0
        %1786 = vmatprep.subr.bf16.mxu0 0
        %1787 = vmatpush1.bf16.msra.mxu0 0
        %1788 = vmatprep.subr.bf16.mxu0 0
        %1789 = vmatpush1.bf16.msra.mxu0 0
        %1790 = vmatprep.mubr.bf16.mxu0 0
        %1791 = vmatmul.mubr.bf16.gmra.mrb[0].mxu0 %v1612
        %v1792 = vpop.f32.mrb[0].mxu0
        %v1793 = vadd.f32 %v1606, %v1792
        %v1794 = vpop.f32.mrb[0].mxu0
        %v1795 = vpop.f32.mrb[0].mxu0
        %v1796 = vpop.f32.mrb[0].mxu0
        %1797 = vdwg.mxu0
        %1798 = vrot.lane.b32.xlu0 %v760, 120
        %v1799 = vpop.permute.xlu0 %1798
        %1800 = vrot.lane.b32.xlu0 %v761, 120
        %v1801 = vpop.permute.xlu0 %1800
        %1802 = vrot.lane.b32.xlu0 %v762, 120
        %v1803 = vpop.permute.xlu0 %1802
        %1804 = vrot.lane.b32.xlu0 %v763, 120
        %v1805 = vpop.permute.xlu0 %1804
        %1806 = vrot.lane.b32.xlu0 %v764, 120
        %v1807 = vpop.permute.xlu0 %1806
        %1808 = vrot.lane.b32.xlu0 %v765, 120
        %v1809 = vpop.permute.xlu0 %1808
        %1810 = vrot.lane.b32.xlu0 %v766, 120
        %v1811 = vpop.permute.xlu0 %1810
        %1812 = vrot.lane.b32.xlu0 %v767, 120
        %v1813 = vpop.permute.xlu0 %1812
        %vm1814 = vcmask 982016
        %v1815 = vsel %vm1814, %v1799, %v1801
        %v1816 = vsel %vm1814, %v1801, %v1803
        %v1817 = vsel %vm1814, %v1803, %v1805
        %v1818 = vsel %vm1814, %v1805, %v1807
        %v1819 = vsel %vm1814, %v1807, %v1809
        %v1820 = vsel %vm1814, %v1809, %v1811
        %v1821 = vsel %vm1814, %v1811, %v1813
        %1822 = vrot.lane.b32.xlu0 %v760, 16
        %v1823 = vpop.permute.xlu0 %1822
        %1824 = vrot.lane.b32.xlu0 %v761, 16
        %v1825 = vpop.permute.xlu0 %1824
        %1826 = vrot.lane.b32.xlu0 %v762, 16
        %v1827 = vpop.permute.xlu0 %1826
        %1828 = vrot.lane.b32.xlu0 %v763, 16
        %v1829 = vpop.permute.xlu0 %1828
        %1830 = vrot.lane.b32.xlu0 %v764, 16
        %v1831 = vpop.permute.xlu0 %1830
        %1832 = vrot.lane.b32.xlu0 %v765, 16
        %v1833 = vpop.permute.xlu0 %1832
        %1834 = vrot.lane.b32.xlu0 %v766, 16
        %v1835 = vpop.permute.xlu0 %1834
        %1836 = vrot.lane.b32.xlu0 %v767, 16
        %v1837 = vpop.permute.xlu0 %1836
        %v1838 = vsel %vm912, %v1823, %v1825
        %v1839 = vsel %vm912, %v1825, %v1827
        %v1840 = vsel %vm912, %v1827, %v1829
        %v1841 = vsel %vm912, %v1829, %v1831
        %v1842 = vsel %vm912, %v1831, %v1833
        %v1843 = vsel %vm912, %v1833, %v1835
        %v1844 = vsel %vm912, %v1835, %v1837
        %1845 = vrot.lane.b32.xlu0 %v864, 8
        %v1846 = vpop.permute.xlu0 %1845
        %1847 = vrot.lane.b32.xlu0 %v865, 8
        %v1848 = vpop.permute.xlu0 %1847
        %1849 = vrot.lane.b32.xlu0 %v866, 8
        %v1850 = vpop.permute.xlu0 %1849
        %1851 = vrot.lane.b32.xlu0 %v867, 8
        %v1852 = vpop.permute.xlu0 %1851
        %1853 = vrot.lane.b32.xlu0 %v868, 8
        %v1854 = vpop.permute.xlu0 %1853
        %1855 = vrot.lane.b32.xlu0 %v869, 8
        %v1856 = vpop.permute.xlu0 %1855
        %1857 = vrot.lane.b32.xlu0 %v870, 8
        %v1858 = vpop.permute.xlu0 %1857
        %1859 = vrot.lane.b32.xlu0 %v871, 8
        %v1860 = vpop.permute.xlu0 %1859
        %vm1861 = vcmask 64512
        %v1862 = vsel %vm1861, %v1846, %v1848
        %v1863 = vsel %vm1861, %v1848, %v1850
        %v1864 = vsel %vm1861, %v1850, %v1852
        %v1865 = vsel %vm1861, %v1852, %v1854
        %v1866 = vsel %vm1861, %v1854, %v1856
        %v1867 = vsel %vm1861, %v1856, %v1858
        %v1868 = vsel %vm1861, %v1858, %v1860
        %1869 = vrot.lane.b32.xlu0 %v864, 32
        %v1870 = vpop.permute.xlu0 %1869
        %1871 = vrot.lane.b32.xlu0 %v865, 32
        %v1872 = vpop.permute.xlu0 %1871
        %1873 = vrot.lane.b32.xlu0 %v866, 32
        %v1874 = vpop.permute.xlu0 %1873
        %1875 = vrot.lane.b32.xlu0 %v867, 32
        %v1876 = vpop.permute.xlu0 %1875
        %1877 = vrot.lane.b32.xlu0 %v868, 32
        %v1878 = vpop.permute.xlu0 %1877
        %1879 = vrot.lane.b32.xlu0 %v869, 32
        %v1880 = vpop.permute.xlu0 %1879
        %1881 = vrot.lane.b32.xlu0 %v870, 32
        %v1882 = vpop.permute.xlu0 %1881
        %1883 = vrot.lane.b32.xlu0 %v871, 32
        %v1884 = vpop.permute.xlu0 %1883
        %vm1885 = vcmask 261120
        %v1886 = vsel %vm1885, %v1870, %v1872
        %v1887 = vsel %vm1885, %v1872, %v1874
        %v1888 = vsel %vm1885, %v1874, %v1876
        %v1889 = vsel %vm1885, %v1876, %v1878
        %v1890 = vsel %vm1885, %v1878, %v1880
        %v1891 = vsel %vm1885, %v1880, %v1882
        %v1892 = vsel %vm1885, %v1882, %v1884
        %1893 = vrot.lane.b32.xlu0 %v864, 28
        %v1894 = vpop.permute.xlu0 %1893
        %1895 = vrot.lane.b32.xlu0 %v865, 28
        %v1896 = vpop.permute.xlu0 %1895
        %1897 = vrot.lane.b32.xlu0 %v866, 28
        %v1898 = vpop.permute.xlu0 %1897
        %1899 = vrot.lane.b32.xlu0 %v867, 28
        %v1900 = vpop.permute.xlu0 %1899
        %1901 = vrot.lane.b32.xlu0 %v868, 28
        %v1902 = vpop.permute.xlu0 %1901
        %1903 = vrot.lane.b32.xlu0 %v869, 28
        %v1904 = vpop.permute.xlu0 %1903
        %1905 = vrot.lane.b32.xlu0 %v870, 28
        %v1906 = vpop.permute.xlu0 %1905
        %1907 = vrot.lane.b32.xlu0 %v871, 28
        %v1908 = vpop.permute.xlu0 %1907
        %vm1909 = vcmask 228352
        %v1910 = vsel %vm1909, %v1894, %v1896
        %v1911 = vsel %vm1909, %v1896, %v1898
        %v1912 = vsel %vm1909, %v1898, %v1900
        %v1913 = vsel %vm1909, %v1900, %v1902
        %v1914 = vsel %vm1909, %v1902, %v1904
        %v1915 = vsel %vm1909, %v1904, %v1906
        %v1916 = vsel %vm1909, %v1906, %v1908
        %1917 = vrot.lane.b32.xlu0 %v864, 24
        %v1918 = vpop.permute.xlu0 %1917
        %1919 = vrot.lane.b32.xlu0 %v865, 24
        %v1920 = vpop.permute.xlu0 %1919
        %1921 = vrot.lane.b32.xlu0 %v866, 24
        %v1922 = vpop.permute.xlu0 %1921
        %1923 = vrot.lane.b32.xlu0 %v867, 24
        %v1924 = vpop.permute.xlu0 %1923
        %1925 = vrot.lane.b32.xlu0 %v868, 24
        %v1926 = vpop.permute.xlu0 %1925
        %1927 = vrot.lane.b32.xlu0 %v869, 24
        %v1928 = vpop.permute.xlu0 %1927
        %1929 = vrot.lane.b32.xlu0 %v870, 24
        %v1930 = vpop.permute.xlu0 %1929
        %1931 = vrot.lane.b32.xlu0 %v871, 24
        %v1932 = vpop.permute.xlu0 %1931
        %vm1933 = vcmask 195584
        %v1934 = vsel %vm1933, %v1918, %v1920
        %v1935 = vsel %vm1933, %v1920, %v1922
        %v1936 = vsel %vm1933, %v1922, %v1924
        %v1937 = vsel %vm1933, %v1924, %v1926
        %v1938 = vsel %vm1933, %v1926, %v1928
        %v1939 = vsel %vm1933, %v1928, %v1930
        %v1940 = vsel %vm1933, %v1930, %v1932
        %v1941 = vld [vmem:[%s3] sm:$0xf]
        %1942 = vrot.lane.b32.xlu0 %v760, 116
        %v1943 = vpop.permute.xlu0 %1942
        %1944 = vrot.lane.b32.xlu0 %v761, 116
        %v1945 = vpop.permute.xlu0 %1944
        %1946 = vrot.lane.b32.xlu0 %v762, 116
        %v1947 = vpop.permute.xlu0 %1946
        %1948 = vrot.lane.b32.xlu0 %v763, 116
        %v1949 = vpop.permute.xlu0 %1948
        %1950 = vrot.lane.b32.xlu0 %v764, 116
        %v1951 = vpop.permute.xlu0 %1950
        %1952 = vrot.lane.b32.xlu0 %v765, 116
        %v1953 = vpop.permute.xlu0 %1952
        %1954 = vrot.lane.b32.xlu0 %v766, 116
        %v1955 = vpop.permute.xlu0 %1954
        %1956 = vrot.lane.b32.xlu0 %v767, 116
        %v1957 = vpop.permute.xlu0 %1956
        %1958 = vrot.lane.b32.xlu0 %v809, 116
        %v1959 = vpop.permute.xlu0 %1958
        %1960 = vrot.lane.b32.xlu0 %v810, 116
        %v1961 = vpop.permute.xlu0 %1960
        %1962 = vrot.lane.b32.xlu0 %v811, 116
        %v1963 = vpop.permute.xlu0 %1962
        %1964 = vrot.lane.b32.xlu0 %v812, 116
        %v1965 = vpop.permute.xlu0 %1964
        %1966 = vrot.lane.b32.xlu0 %v813, 116
        %v1967 = vpop.permute.xlu0 %1966
        %1968 = vrot.lane.b32.xlu0 %v814, 116
        %v1969 = vpop.permute.xlu0 %1968
        %1970 = vrot.lane.b32.xlu0 %v815, 116
        %v1971 = vpop.permute.xlu0 %1970
        %1972 = vrot.lane.b32.xlu0 %v807, 116
        %v1973 = vpop.permute.xlu0 %1972
        %1974 = vrot.lane.b32.xlu0 %v1815, 116
        %v1975 = vpop.permute.xlu0 %1974
        %1976 = vrot.lane.b32.xlu0 %v1816, 116
        %v1977 = vpop.permute.xlu0 %1976
        %1978 = vrot.lane.b32.xlu0 %v1817, 116
        %v1979 = vpop.permute.xlu0 %1978
        %1980 = vrot.lane.b32.xlu0 %v1818, 116
        %v1981 = vpop.permute.xlu0 %1980
        %1982 = vrot.lane.b32.xlu0 %v1819, 116
        %v1983 = vpop.permute.xlu0 %1982
        %1984 = vrot.lane.b32.xlu0 %v1820, 116
        %v1985 = vpop.permute.xlu0 %1984
        %1986 = vrot.lane.b32.xlu0 %v1821, 116
        %v1987 = vpop.permute.xlu0 %1986
        %1988 = vrot.lane.b32.xlu0 %v1813, 116
        %v1989 = vpop.permute.xlu0 %1988
        %1990 = vrot.lane.b32.xlu0 %v1838, 116
        %v1991 = vpop.permute.xlu0 %1990
        %1992 = vrot.lane.b32.xlu0 %v1839, 116
        %v1993 = vpop.permute.xlu0 %1992
        %1994 = vrot.lane.b32.xlu0 %v1840, 116
        %v1995 = vpop.permute.xlu0 %1994
        %1996 = vrot.lane.b32.xlu0 %v1841, 116
        %v1997 = vpop.permute.xlu0 %1996
        %1998 = vrot.lane.b32.xlu0 %v1842, 116
        %v1999 = vpop.permute.xlu0 %1998
        %2000 = vrot.lane.b32.xlu0 %v1843, 116
        %v2001 = vpop.permute.xlu0 %2000
        %2002 = vrot.lane.b32.xlu0 %v1844, 116
        %v2003 = vpop.permute.xlu0 %2002
        %2004 = vrot.lane.b32.xlu0 %v1837, 116
        %v2005 = vpop.permute.xlu0 %2004
        %2006 = vrot.lane.b32.xlu0 %v1846, 116
        %v2007 = vpop.permute.xlu0 %2006
        %2008 = vrot.lane.b32.xlu0 %v1862, 116
        %v2009 = vpop.permute.xlu0 %2008
        %2010 = vrot.lane.b32.xlu0 %v1863, 116
        %v2011 = vpop.permute.xlu0 %2010
        %2012 = vrot.lane.b32.xlu0 %v1864, 116
        %v2013 = vpop.permute.xlu0 %2012
        %2014 = vrot.lane.b32.xlu0 %v1865, 116
        %v2015 = vpop.permute.xlu0 %2014
        %2016 = vrot.lane.b32.xlu0 %v1866, 116
        %v2017 = vpop.permute.xlu0 %2016
        %2018 = vrot.lane.b32.xlu0 %v1867, 116
        %v2019 = vpop.permute.xlu0 %2018
        %2020 = vrot.lane.b32.xlu0 %v1868, 116
        %v2021 = vpop.permute.xlu0 %2020
        %2022 = vrot.lane.b32.xlu0 %v1886, 116
        %v2023 = vpop.permute.xlu0 %2022
        %2024 = vrot.lane.b32.xlu0 %v1887, 116
        %v2025 = vpop.permute.xlu0 %2024
        %2026 = vrot.lane.b32.xlu0 %v1888, 116
        %v2027 = vpop.permute.xlu0 %2026
        %2028 = vrot.lane.b32.xlu0 %v1889, 116
        %v2029 = vpop.permute.xlu0 %2028
        %2030 = vrot.lane.b32.xlu0 %v1890, 116
        %v2031 = vpop.permute.xlu0 %2030
        %2032 = vrot.lane.b32.xlu0 %v1891, 116
        %v2033 = vpop.permute.xlu0 %2032
        %2034 = vrot.lane.b32.xlu0 %v1892, 116
        %v2035 = vpop.permute.xlu0 %2034
        %2036 = vrot.lane.b32.xlu0 %v1884, 116
        %v2037 = vpop.permute.xlu0 %2036
        %2038 = vrot.lane.b32.xlu0 %v1910, 116
        %v2039 = vpop.permute.xlu0 %2038
        %2040 = vrot.lane.b32.xlu0 %v1911, 116
        %v2041 = vpop.permute.xlu0 %2040
        %2042 = vrot.lane.b32.xlu0 %v1912, 116
        %v2043 = vpop.permute.xlu0 %2042
        %2044 = vrot.lane.b32.xlu0 %v1913, 116
        %v2045 = vpop.permute.xlu0 %2044
        %2046 = vrot.lane.b32.xlu0 %v1914, 116
        %v2047 = vpop.permute.xlu0 %2046
        %2048 = vrot.lane.b32.xlu0 %v1915, 116
        %v2049 = vpop.permute.xlu0 %2048
        %2050 = vrot.lane.b32.xlu0 %v1916, 116
        %v2051 = vpop.permute.xlu0 %2050
        %2052 = vrot.lane.b32.xlu0 %v1908, 116
        %v2053 = vpop.permute.xlu0 %2052
        %2054 = vrot.lane.b32.xlu0 %v1934, 116
        %v2055 = vpop.permute.xlu0 %2054
        %2056 = vrot.lane.b32.xlu0 %v1935, 116
        %v2057 = vpop.permute.xlu0 %2056
        %2058 = vrot.lane.b32.xlu0 %v1936, 116
        %v2059 = vpop.permute.xlu0 %2058
        %2060 = vrot.lane.b32.xlu0 %v1937, 116
        %v2061 = vpop.permute.xlu0 %2060
        %2062 = vrot.lane.b32.xlu0 %v1938, 116
        %v2063 = vpop.permute.xlu0 %2062
        %2064 = vrot.lane.b32.xlu0 %v1939, 116
        %v2065 = vpop.permute.xlu0 %2064
        %2066 = vrot.lane.b32.xlu0 %v1940, 116
        %v2067 = vpop.permute.xlu0 %2066
        %2068 = vrot.lane.b32.xlu0 %v1932, 116
        %v2069 = vpop.permute.xlu0 %2068
        %vm2070 = vcmask 949248
        %v2071 = vsel %vm2070, %v1943, %v1945
        %v2072 = vsel %vm2070, %v1945, %v1947
        %v2073 = vsel %vm2070, %v1947, %v1949
        %v2074 = vsel %vm2070, %v1949, %v1951
        %v2075 = vsel %vm2070, %v1951, %v1953
        %v2076 = vsel %vm2070, %v1953, %v1955
        %v2077 = vsel %vm2070, %v1955, %v1957
        %v2078 = vsel %vm2070, %v1959, %v1961
        %v2079 = vsel %vm2070, %v1961, %v1963
        %v2080 = vsel %vm2070, %v1963, %v1965
        %v2081 = vsel %vm2070, %v1965, %v1967
        %v2082 = vsel %vm2070, %v1967, %v1969
        %v2083 = vsel %vm2070, %v1969, %v1971
        %v2084 = vsel %vm2070, %v1971, %v1973
        %v2085 = vsel %vm2070, %v1975, %v1977
        %v2086 = vsel %vm2070, %v1977, %v1979
        %v2087 = vsel %vm2070, %v1979, %v1981
        %v2088 = vsel %vm2070, %v1981, %v1983
        %v2089 = vsel %vm2070, %v1983, %v1985
        %v2090 = vsel %vm2070, %v1985, %v1987
        %v2091 = vsel %vm2070, %v1987, %v1989
        %v2092 = vsel %vm2070, %v1991, %v1993
        %v2093 = vsel %vm2070, %v1993, %v1995
        %v2094 = vsel %vm2070, %v1995, %v1997
        %v2095 = vsel %vm2070, %v1997, %v1999
        %v2096 = vsel %vm2070, %v1999, %v2001
        %v2097 = vsel %vm2070, %v2001, %v2003
        %v2098 = vsel %vm2070, %v2003, %v2005
        %v2099 = vsel %vm2070, %v2007, %v2009
        %v2100 = vsel %vm2070, %v2009, %v2011
        %v2101 = vsel %vm2070, %v2011, %v2013
        %v2102 = vsel %vm2070, %v2013, %v2015
        %v2103 = vsel %vm2070, %v2015, %v2017
        %v2104 = vsel %vm2070, %v2017, %v2019
        %v2105 = vsel %vm2070, %v2019, %v2021
        %v2106 = vsel %vm2070, %v2023, %v2025
        %v2107 = vsel %vm2070, %v2025, %v2027
        %v2108 = vsel %vm2070, %v2027, %v2029
        %v2109 = vsel %vm2070, %v2029, %v2031
        %v2110 = vsel %vm2070, %v2031, %v2033
        %v2111 = vsel %vm2070, %v2033, %v2035
        %v2112 = vsel %vm2070, %v2035, %v2037
        %v2113 = vsel %vm2070, %v2039, %v2041
        %v2114 = vsel %vm2070, %v2041, %v2043
        %v2115 = vsel %vm2070, %v2043, %v2045
        %v2116 = vsel %vm2070, %v2045, %v2047
        %v2117 = vsel %vm2070, %v2047, %v2049
        %v2118 = vsel %vm2070, %v2049, %v2051
        %v2119 = vsel %vm2070, %v2051, %v2053
        %v2120 = vsel %vm2070, %v2055, %v2057
        %v2121 = vsel %vm2070, %v2057, %v2059
        %v2122 = vsel %vm2070, %v2059, %v2061
        %v2123 = vsel %vm2070, %v2061, %v2063
        %v2124 = vsel %vm2070, %v2063, %v2065
        %v2125 = vsel %vm2070, %v2065, %v2067
        %v2126 = vsel %vm2070, %v2067, %v2069
        %2183 = vmatprep.subr.bf16.mxu0 %v2072
        %2184 = vmatpush1.bf16.msra.mxu0 %v2071
        %2185 = vmatprep.subr.bf16.mxu0 %v2079
        %2186 = vmatpush1.bf16.msra.mxu0 %v2078
        %2187 = vmatprep.subr.bf16.mxu0 %v2086
        %2188 = vmatpush1.bf16.msra.mxu0 %v2085
        %2189 = vmatprep.subr.bf16.mxu0 %v2093
        %2190 = vmatpush1.bf16.msra.mxu0 %v2092
        %2191 = vmatprep.subr.bf16.mxu0 %v2100
        %2192 = vmatpush1.bf16.msra.mxu0 %v2099
        %2193 = vmatprep.subr.bf16.mxu0 %v2107
        %2194 = vmatpush1.bf16.msra.mxu0 %v2106
        %2195 = vmatprep.subr.bf16.mxu0 %v2114
        %2196 = vmatpush1.bf16.msra.mxu0 %v2113
        %2197 = vmatprep.subr.bf16.mxu0 %v2121
        %2198 = vmatpush1.bf16.msra.mxu0 %v2120
        %2199 = vmatprep.subr.bf16.mxu0 0
        %2200 = vmatpush1.bf16.msra.mxu0 0
        %2201 = vmatprep.subr.bf16.mxu0 0
        %2202 = vmatpush1.bf16.msra.mxu0 0
        %2203 = vmatprep.subr.bf16.mxu0 0
        %2204 = vmatpush1.bf16.msra.mxu0 0
        %2205 = vmatprep.subr.bf16.mxu0 0
        %2206 = vmatpush1.bf16.msra.mxu0 0
        %2207 = vmatprep.subr.bf16.mxu0 0
        %2208 = vmatpush1.bf16.msra.mxu0 0
        %2209 = vmatprep.subr.bf16.mxu0 0
        %2210 = vmatpush1.bf16.msra.mxu0 0
        %2211 = vmatprep.subr.bf16.mxu0 0
        %2212 = vmatpush1.bf16.msra.mxu0 0
        %2213 = vmatprep.subr.bf16.mxu0 0
        %2214 = vmatpush1.bf16.msra.mxu0 0
        %2215 = vmatprep.mubr.bf16.mxu0 0
        %2216 = vmatmul.mubr.bf16.gmra.mrb[0].mxu0 %v1941
        %v2217 = vpop.f32.mrb[0].mxu0
        %v2218 = vadd.f32 0.0, %v2217
        %v2219 = vpop.f32.mrb[0].mxu0
        %v2220 = vadd.f32 0.0, %v2219
        %v2221 = vpop.f32.mrb[0].mxu0
        %v2222 = vpop.f32.mrb[0].mxu0
        %2223 = vdwg.mxu0
        %2224 = vmatprep.subr.bf16.mxu0 %v2074
        %2225 = vmatpush1.bf16.msra.mxu0 %v2073
        %2226 = vmatprep.subr.bf16.mxu0 %v2081
        %2227 = vmatpush1.bf16.msra.mxu0 %v2080
        %2228 = vmatprep.subr.bf16.mxu0 %v2088
        %2229 = vmatpush1.bf16.msra.mxu0 %v2087
        %2230 = vmatprep.subr.bf16.mxu0 %v2095
        %2231 = vmatpush1.bf16.msra.mxu0 %v2094
        %2232 = vmatprep.subr.bf16.mxu0 %v2102
        %2233 = vmatpush1.bf16.msra.mxu0 %v2101
        %2234 = vmatprep.subr.bf16.mxu0 %v2109
        %2235 = vmatpush1.bf16.msra.mxu0 %v2108
        %2236 = vmatprep.subr.bf16.mxu0 %v2116
        %2237 = vmatpush1.bf16.msra.mxu0 %v2115
        %2238 = vmatprep.subr.bf16.mxu0 %v2123
        %2239 = vmatpush1.bf16.msra.mxu0 %v2122
        %2240 = vmatprep.subr.bf16.mxu0 0
        %2241 = vmatpush1.bf16.msra.mxu0 0
        %2242 = vmatprep.subr.bf16.mxu0 0
        %2243 = vmatpush1.bf16.msra.mxu0 0
        %2244 = vmatprep.subr.bf16.mxu0 0
        %2245 = vmatpush1.bf16.msra.mxu0 0
        %2246 = vmatprep.subr.bf16.mxu0 0
        %2247 = vmatpush1.bf16.msra.mxu0 0
        %2248 = vmatprep.subr.bf16.mxu0 0
        %2249 = vmatpush1.bf16.msra.mxu0 0
        %2250 = vmatprep.subr.bf16.mxu0 0
        %2251 = vmatpush1.bf16.msra.mxu0 0
        %2252 = vmatprep.subr.bf16.mxu0 0
        %2253 = vmatpush1.bf16.msra.mxu0 0
        %2254 = vmatprep.subr.bf16.mxu0 0
        %2255 = vmatpush1.bf16.msra.mxu0 0
        %2256 = vmatprep.mubr.bf16.mxu0 0
        %2257 = vmatmul.mubr.bf16.gmra.mrb[0].mxu0 %v1941
        %v2258 = vpop.f32.mrb[0].mxu0
        %v2259 = vadd.f32 0.0, %v2258
        %v2260 = vpop.f32.mrb[0].mxu0
        %v2261 = vadd.f32 0.0, %v2260
        %v2262 = vpop.f32.mrb[0].mxu0
        %v2263 = vpop.f32.mrb[0].mxu0
        %2264 = vdwg.mxu0
        %2265 = vmatprep.subr.bf16.mxu0 %v2076
        %2266 = vmatpush1.bf16.msra.mxu0 %v2075
        %2267 = vmatprep.subr.bf16.mxu0 %v2083
        %2268 = vmatpush1.bf16.msra.mxu0 %v2082
        %2269 = vmatprep.subr.bf16.mxu0 %v2090
        %2270 = vmatpush1.bf16.msra.mxu0 %v2089
        %2271 = vmatprep.subr.bf16.mxu0 %v2097
        %2272 = vmatpush1.bf16.msra.mxu0 %v2096
        %2273 = vmatprep.subr.bf16.mxu0 %v2104
        %2274 = vmatpush1.bf16.msra.mxu0 %v2103
        %2275 = vmatprep.subr.bf16.mxu0 %v2111
        %2276 = vmatpush1.bf16.msra.mxu0 %v2110
        %2277 = vmatprep.subr.bf16.mxu0 %v2118
        %2278 = vmatpush1.bf16.msra.mxu0 %v2117
        %2279 = vmatprep.subr.bf16.mxu0 %v2125
        %2280 = vmatpush1.bf16.msra.mxu0 %v2124
        %2281 = vmatprep.subr.bf16.mxu0 0
        %2282 = vmatpush1.bf16.msra.mxu0 0
        %2283 = vmatprep.subr.bf16.mxu0 0
        %2284 = vmatpush1.bf16.msra.mxu0 0
        %2285 = vmatprep.subr.bf16.mxu0 0
        %2286 = vmatpush1.bf16.msra.mxu0 0
        %2287 = vmatprep.subr.bf16.mxu0 0
        %2288 = vmatpush1.bf16.msra.mxu0 0
        %2289 = vmatprep.subr.bf16.mxu0 0
        %2290 = vmatpush1.bf16.msra.mxu0 0
        %2291 = vmatprep.subr.bf16.mxu0 0
        %2292 = vmatpush1.bf16.msra.mxu0 0
        %2293 = vmatprep.subr.bf16.mxu0 0
        %2294 = vmatpush1.bf16.msra.mxu0 0
        %2295 = vmatprep.subr.bf16.mxu0 0
        %2296 = vmatpush1.bf16.msra.mxu0 0
        %2297 = vmatprep.mubr.bf16.mxu0 0
        %2298 = vmatmul.mubr.bf16.gmra.mrb[0].mxu0 %v1941
        %v2299 = vpop.f32.mrb[0].mxu0
        %v2300 = vadd.f32 0.0, %v2299
        %v2301 = vpop.f32.mrb[0].mxu0
        %v2302 = vadd.f32 0.0, %v2301
        %v2303 = vpop.f32.mrb[0].mxu0
        %v2304 = vpop.f32.mrb[0].mxu0
        %2305 = vdwg.mxu0
        %2306 = vmatprep.subr.bf16.mxu0 0
        %2307 = vmatpush1.bf16.msra.mxu0 %v2077
        %2308 = vmatprep.subr.bf16.mxu0 0
        %2309 = vmatpush1.bf16.msra.mxu0 %v2084
        %2310 = vmatprep.subr.bf16.mxu0 0
        %2311 = vmatpush1.bf16.msra.mxu0 %v2091
        %2312 = vmatprep.subr.bf16.mxu0 0
        %2313 = vmatpush1.bf16.msra.mxu0 %v2098
        %2314 = vmatprep.subr.bf16.mxu0 0
        %2315 = vmatpush1.bf16.msra.mxu0 %v2105
        %2316 = vmatprep.subr.bf16.mxu0 0
        %2317 = vmatpush1.bf16.msra.mxu0 %v2112
        %2318 = vmatprep.subr.bf16.mxu0 0
        %2319 = vmatpush1.bf16.msra.mxu0 %v2119
        %2320 = vmatprep.subr.bf16.mxu0 0
        %2321 = vmatpush1.bf16.msra.mxu0 %v2126
        %2322 = vmatprep.subr.bf16.mxu0 0
        %2323 = vmatpush1.bf16.msra.mxu0 0
        %2324 = vmatprep.subr.bf16.mxu0 0
        %2325 = vmatpush1.bf16.msra.mxu0 0
        %2326 = vmatprep.subr.bf16.mxu0 0
        %2327 = vmatpush1.bf16.msra.mxu0 0
        %2328 = vmatprep.subr.bf16.mxu0 0
        %2329 = vmatpush1.bf16.msra.mxu0 0
        %2330 = vmatprep.subr.bf16.mxu0 0
        %2331 = vmatpush1.bf16.msra.mxu0 0
        %2332 = vmatprep.subr.bf16.mxu0 0
        %2333 = vmatpush1.bf16.msra.mxu0 0
        %2334 = vmatprep.subr.bf16.mxu0 0
        %2335 = vmatpush1.bf16.msra.mxu0 0
        %2336 = vmatprep.subr.bf16.mxu0 0
        %2337 = vmatpush1.bf16.msra.mxu0 0
        %2338 = vmatprep.mubr.bf16.mxu0 0
        %2339 = vmatmul.mubr.bf16.gmra.mrb[0].mxu0 %v1941
        %v2340 = vpop.f32.mrb[0].mxu0
        %v2341 = vadd.f32 0.0, %v2340
        %v2342 = vpop.f32.mrb[0].mxu0
        %v2343 = vpop.f32.mrb[0].mxu0
        %v2344 = vpop.f32.mrb[0].mxu0
        %2345 = vdwg.mxu0
        %v2346 = vadd.f32 %v516, %v2218
        %v2347 = vadd.f32 %v518, %v2220
        %v2348 = vadd.f32 %v569, %v2259
        %v2349 = vadd.f32 %v571, %v2261
        %v2350 = vadd.f32 %v622, %v2300
        %v2351 = vadd.f32 %v624, %v2302
        %v2352 = vadd.f32 %v673, %v2341
        %v2353 = vld [vmem:[%s5 + $0x10] sm:$0xff]
        %2355 = vset.pattern.permute.xlu0 0
        %2356 = vperm.xlu0 %2355, %v2353
        %v2357 = vpop.permute.xlu0 %2356
        %v2359 = vmul.f32 %v2346, %v2357
        %v2360 = vmul.f32 %v2347, %v2357
        %v2361 = vmul.f32 %v2348, %v2357
        %v2362 = vmul.f32 %v2349, %v2357
        %v2363 = vmul.f32 %v2350, %v2357
        %v2364 = vmul.f32 %v2351, %v2357
        %v2365 = vmul.f32 %v2352, %v2357
        %v2366 = vld [vmem:[%s6 + $0x10] sm:$0xff]
        %2368 = vset.pattern.permute.xlu0 0
        %2369 = vperm.xlu0 %2368, %v2366
        %v2370 = vpop.permute.xlu0 %2369
        %v2372 = vadd.f32 %v2359, %v2370
        %v2373 = vadd.f32 %v2360, %v2370
        %v2374 = vadd.f32 %v2361, %v2370
        %v2375 = vadd.f32 %v2362, %v2370
        %v2376 = vadd.f32 %v2363, %v2370
        %v2377 = vadd.f32 %v2364, %v2370
        %v2378 = vadd.f32 %v2365, %v2370
        %v2379 = vmax.f32 %v2372, 0.0
        %v2380 = vmax.f32 %v2373, 0.0
        %v2381 = vmax.f32 %v2374, 0.0
        %v2382 = vmax.f32 %v2375, 0.0
        %v2383 = vmax.f32 %v2376, 0.0
        %v2384 = vmax.f32 %v2377, 0.0
        %v2385 = vmax.f32 %v2378, 0.0
        %s2386 = scalar_lea.vmem %s8, 8
        %v2387 = vld [vmem:[%s2386] sm:$0xf]
        %v2388 = vpack.c.bf16 %v2379, %v2379
        %v2389 = vpack.c.bf16 %v2380, %v2380
        %v2390 = vpack.c.bf16 %v2381, %v2381
        %v2391 = vpack.c.bf16 %v2382, %v2382
        %v2392 = vpack.c.bf16 %v2383, %v2383
        %v2393 = vpack.c.bf16 %v2384, %v2384
        %v2394 = vpack.c.bf16 %v2385, %v2385
        %v2396 = vsel %vm1422, %v2387, 0
        %v2399 = vsel %vm1426, %v2388, 0
        %v2402 = vsel %vm1426, %v2389, 0
        %v2405 = vsel %vm1426, %v2390, 0
        %v2408 = vsel %vm1426, %v2391, 0
        %v2411 = vsel %vm1426, %v2392, 0
        %v2414 = vsel %vm1426, %v2393, 0
        %v2417 = vsel %vm1426, %v2394, 0
        %2419 = vmatprep.subr.bf16.mxu0 %v2402
        %2420 = vmatpush1.bf16.msra.mxu0 %v2399
        %2421 = vmatprep.subr.bf16.mxu0 0
        %2422 = vmatpush1.bf16.msra.mxu0 0
        %2423 = vmatprep.subr.bf16.mxu0 0
        %2424 = vmatpush1.bf16.msra.mxu0 0
        %2425 = vmatprep.subr.bf16.mxu0 0
        %2426 = vmatpush1.bf16.msra.mxu0 0
        %2427 = vmatprep.subr.bf16.mxu0 0
        %2428 = vmatpush1.bf16.msra.mxu0 0
        %2429 = vmatprep.subr.bf16.mxu0 0
        %2430 = vmatpush1.bf16.msra.mxu0 0
        %2431 = vmatprep.subr.bf16.mxu0 0
        %2432 = vmatpush1.bf16.msra.mxu0 0
        %2433 = vmatprep.subr.bf16.mxu0 0
        %2434 = vmatpush1.bf16.msra.mxu0 0
        %2435 = vmatprep.subr.bf16.mxu0 0
        %2436 = vmatpush1.bf16.msra.mxu0 0
        %2437 = vmatprep.subr.bf16.mxu0 0
        %2438 = vmatpush1.bf16.msra.mxu0 0
        %2439 = vmatprep.subr.bf16.mxu0 0
        %2440 = vmatpush1.bf16.msra.mxu0 0
        %2441 = vmatprep.subr.bf16.mxu0 0
        %2442 = vmatpush1.bf16.msra.mxu0 0
        %2443 = vmatprep.subr.bf16.mxu0 0
        %2444 = vmatpush1.bf16.msra.mxu0 0
        %2445 = vmatprep.subr.bf16.mxu0 0
        %2446 = vmatpush1.bf16.msra.mxu0 0
        %2447 = vmatprep.subr.bf16.mxu0 0
        %2448 = vmatpush1.bf16.msra.mxu0 0
        %2449 = vmatprep.subr.bf16.mxu0 0
        %2450 = vmatpush1.bf16.msra.mxu0 0
        %2451 = vmatprep.mubr.bf16.mxu0 0
        %2452 = vmatmul.mubr.bf16.gmra.mrb[0].mxu0 %v2396
        %v2453 = vpop.f32.mrb[0].mxu0
        %v2454 = vadd.f32 0.0, %v2453
        %v2455 = vpop.f32.mrb[0].mxu0
        %v2456 = vadd.f32 0.0, %v2455
        %v2457 = vpop.f32.mrb[0].mxu0
        %v2458 = vpop.f32.mrb[0].mxu0
        %2459 = vdwg.mxu0
        %2460 = vmatprep.subr.bf16.mxu0 %v2408
        %2461 = vmatpush1.bf16.msra.mxu0 %v2405
        %2462 = vmatprep.subr.bf16.mxu0 0
        %2463 = vmatpush1.bf16.msra.mxu0 0
        %2464 = vmatprep.subr.bf16.mxu0 0
        %2465 = vmatpush1.bf16.msra.mxu0 0
        %2466 = vmatprep.subr.bf16.mxu0 0
        %2467 = vmatpush1.bf16.msra.mxu0 0
        %2468 = vmatprep.subr.bf16.mxu0 0
        %2469 = vmatpush1.bf16.msra.mxu0 0
        %2470 = vmatprep.subr.bf16.mxu0 0
        %2471 = vmatpush1.bf16.msra.mxu0 0
        %2472 = vmatprep.subr.bf16.mxu0 0
        %2473 = vmatpush1.bf16.msra.mxu0 0
        %2474 = vmatprep.subr.bf16.mxu0 0
        %2475 = vmatpush1.bf16.msra.mxu0 0
        %2476 = vmatprep.subr.bf16.mxu0 0
        %2477 = vmatpush1.bf16.msra.mxu0 0
        %2478 = vmatprep.subr.bf16.mxu0 0
        %2479 = vmatpush1.bf16.msra.mxu0 0
        %2480 = vmatprep.subr.bf16.mxu0 0
        %2481 = vmatpush1.bf16.msra.mxu0 0
        %2482 = vmatprep.subr.bf16.mxu0 0
        %2483 = vmatpush1.bf16.msra.mxu0 0
        %2484 = vmatprep.subr.bf16.mxu0 0
        %2485 = vmatpush1.bf16.msra.mxu0 0
        %2486 = vmatprep.subr.bf16.mxu0 0
        %2487 = vmatpush1.bf16.msra.mxu0 0
        %2488 = vmatprep.subr.bf16.mxu0 0
        %2489 = vmatpush1.bf16.msra.mxu0 0
        %2490 = vmatprep.subr.bf16.mxu0 0
        %2491 = vmatpush1.bf16.msra.mxu0 0
        %2492 = vmatprep.mubr.bf16.mxu0 0
        %2493 = vmatmul.mubr.bf16.gmra.mrb[0].mxu0 %v2396
        %v2494 = vpop.f32.mrb[0].mxu0
        %v2495 = vadd.f32 0.0, %v2494
        %v2496 = vpop.f32.mrb[0].mxu0
        %v2497 = vadd.f32 0.0, %v2496
        %v2498 = vpop.f32.mrb[0].mxu0
        %v2499 = vpop.f32.mrb[0].mxu0
        %2500 = vdwg.mxu0
        %2501 = vmatprep.subr.bf16.mxu0 %v2414
        %2502 = vmatpush1.bf16.msra.mxu0 %v2411
        %2503 = vmatprep.subr.bf16.mxu0 0
        %2504 = vmatpush1.bf16.msra.mxu0 0
        %2505 = vmatprep.subr.bf16.mxu0 0
        %2506 = vmatpush1.bf16.msra.mxu0 0
        %2507 = vmatprep.subr.bf16.mxu0 0
        %2508 = vmatpush1.bf16.msra.mxu0 0
        %2509 = vmatprep.subr.bf16.mxu0 0
        %2510 = vmatpush1.bf16.msra.mxu0 0
        %2511 = vmatprep.subr.bf16.mxu0 0
        %2512 = vmatpush1.bf16.msra.mxu0 0
        %2513 = vmatprep.subr.bf16.mxu0 0
        %2514 = vmatpush1.bf16.msra.mxu0 0
        %2515 = vmatprep.subr.bf16.mxu0 0
        %2516 = vmatpush1.bf16.msra.mxu0 0
        %2517 = vmatprep.subr.bf16.mxu0 0
        %2518 = vmatpush1.bf16.msra.mxu0 0
        %2519 = vmatprep.subr.bf16.mxu0 0
        %2520 = vmatpush1.bf16.msra.mxu0 0
        %2521 = vmatprep.subr.bf16.mxu0 0
        %2522 = vmatpush1.bf16.msra.mxu0 0
        %2523 = vmatprep.subr.bf16.mxu0 0
        %2524 = vmatpush1.bf16.msra.mxu0 0
        %2525 = vmatprep.subr.bf16.mxu0 0
        %2526 = vmatpush1.bf16.msra.mxu0 0
        %2527 = vmatprep.subr.bf16.mxu0 0
        %2528 = vmatpush1.bf16.msra.mxu0 0
        %2529 = vmatprep.subr.bf16.mxu0 0
        %2530 = vmatpush1.bf16.msra.mxu0 0
        %2531 = vmatprep.subr.bf16.mxu0 0
        %2532 = vmatpush1.bf16.msra.mxu0 0
        %2533 = vmatprep.mubr.bf16.mxu0 0
        %2534 = vmatmul.mubr.bf16.gmra.mrb[0].mxu0 %v2396
        %v2535 = vpop.f32.mrb[0].mxu0
        %v2536 = vadd.f32 0.0, %v2535
        %v2537 = vpop.f32.mrb[0].mxu0
        %v2538 = vadd.f32 0.0, %v2537
        %v2539 = vpop.f32.mrb[0].mxu0
        %v2540 = vpop.f32.mrb[0].mxu0
        %2541 = vdwg.mxu0
        %2542 = vmatprep.subr.bf16.mxu0 0
        %2543 = vmatpush1.bf16.msra.mxu0 %v2417
        %2544 = vmatprep.subr.bf16.mxu0 0
        %2545 = vmatpush1.bf16.msra.mxu0 0
        %2546 = vmatprep.subr.bf16.mxu0 0
        %2547 = vmatpush1.bf16.msra.mxu0 0
        %2548 = vmatprep.subr.bf16.mxu0 0
        %2549 = vmatpush1.bf16.msra.mxu0 0
        %2550 = vmatprep.subr.bf16.mxu0 0
        %2551 = vmatpush1.bf16.msra.mxu0 0
        %2552 = vmatprep.subr.bf16.mxu0 0
        %2553 = vmatpush1.bf16.msra.mxu0 0
        %2554 = vmatprep.subr.bf16.mxu0 0
        %2555 = vmatpush1.bf16.msra.mxu0 0
        %2556 = vmatprep.subr.bf16.mxu0 0
        %2557 = vmatpush1.bf16.msra.mxu0 0
        %2558 = vmatprep.subr.bf16.mxu0 0
        %2559 = vmatpush1.bf16.msra.mxu0 0
        %2560 = vmatprep.subr.bf16.mxu0 0
        %2561 = vmatpush1.bf16.msra.mxu0 0
        %2562 = vmatprep.subr.bf16.mxu0 0
        %2563 = vmatpush1.bf16.msra.mxu0 0
        %2564 = vmatprep.subr.bf16.mxu0 0
        %2565 = vmatpush1.bf16.msra.mxu0 0
        %2566 = vmatprep.subr.bf16.mxu0 0
        %2567 = vmatpush1.bf16.msra.mxu0 0
        %2568 = vmatprep.subr.bf16.mxu0 0
        %2569 = vmatpush1.bf16.msra.mxu0 0
        %2570 = vmatprep.subr.bf16.mxu0 0
        %2571 = vmatpush1.bf16.msra.mxu0 0
        %2572 = vmatprep.subr.bf16.mxu0 0
        %2573 = vmatpush1.bf16.msra.mxu0 0
        %2574 = vmatprep.mubr.bf16.mxu0 0
        %2575 = vmatmul.mubr.bf16.gmra.mrb[0].mxu0 %v2396
        %v2576 = vpop.f32.mrb[0].mxu0
        %v2577 = vadd.f32 0.0, %v2576
        %v2578 = vpop.f32.mrb[0].mxu0
        %v2579 = vpop.f32.mrb[0].mxu0
        %v2580 = vpop.f32.mrb[0].mxu0
        %2581 = vdwg.mxu0
        %v2582 = vadd.f32 %v1670, %v2454
        %v2583 = vadd.f32 %v1672, %v2456
        %v2584 = vadd.f32 %v1711, %v2495
        %v2585 = vadd.f32 %v1713, %v2497
        %v2586 = vadd.f32 %v1752, %v2536
        %v2587 = vadd.f32 %v1754, %v2538
        %v2588 = vadd.f32 %v1793, %v2577
        %v2589 = vld [vmem:[%s366] sm:$0xff]
        %v2590 = vld [vmem:[%s366 + $0x8] sm:$0xff]
        %v2591 = vld [vmem:[%s366 + $0x10] sm:$0xff]
        %v2592 = vld [vmem:[%s366 + $0x18] sm:$0xff]
        %v2593 = vld [vmem:[%s366 + $0x2c] sm:$0xff]
        %v2594 = vld [vmem:[%s366 + $0x34] sm:$0xff]
        %v2595 = vld [vmem:[%s366 + $0x3c] sm:$0xff]
        %v2596 = vld [vmem:[%s366 + $0x44] sm:$0xff]
        %v2597 = vld [vmem:[%s366 + $0xc] sm:$0xff]
        %v2598 = vld [vmem:[%s366 + $0x14] sm:$0xff]
        %v2599 = vld [vmem:[%s366 + $0x1c] sm:$0xff]
        %v2600 = vld [vmem:[%s366 + $0x24] sm:$0xff]
        %v2601 = vld [vmem:[%s366 + $0x38] sm:$0xff]
        %v2602 = vld [vmem:[%s366 + $0x40] sm:$0xff]
        %v2603 = vld [vmem:[%s366 + $0x48] sm:$0xff]
        %v2604 = vld [vmem:[%s366 + $0x50] sm:$0xff]
        %v2613 = vunpack.c.l.b16 %v2589
        %v2614 = vunpack.c.h.b16 %v2589
        %v2615 = vunpack.c.l.b16 %v2590
        %v2616 = vunpack.c.h.b16 %v2590
        %v2617 = vunpack.c.l.b16 %v2591
        %v2618 = vunpack.c.h.b16 %v2591
        %v2619 = vunpack.c.l.b16 %v2592
        %v2620 = vunpack.c.h.b16 %v2592
        %v2621 = vunpack.c.l.b16 %v2593
        %v2622 = vunpack.c.h.b16 %v2593
        %v2623 = vunpack.c.l.b16 %v2594
        %v2624 = vunpack.c.h.b16 %v2594
        %v2625 = vunpack.c.l.b16 %v2595
        %v2626 = vunpack.c.h.b16 %v2595
        %v2627 = vunpack.c.l.b16 %v2596
        %v2628 = vunpack.c.h.b16 %v2596
        %v2629 = vpack.c.b16 %v2621, %v2613
        %v2630 = vpack.c.b16 %v2622, %v2614
        %v2631 = vpack.c.b16 %v2623, %v2615
        %v2632 = vpack.c.b16 %v2624, %v2616
        %v2633 = vpack.c.b16 %v2625, %v2617
        %v2634 = vpack.c.b16 %v2626, %v2618
        %v2635 = vpack.c.b16 %v2627, %v2619
        %v2636 = vpack.c.b16 %v2628, %v2620
        %2637 = vrot.lane.b32.xlu0 %v2629, 122
        %v2638 = vpop.permute.xlu0 %2637
        %2639 = vrot.lane.b32.xlu0 %v2630, 122
        %v2640 = vpop.permute.xlu0 %2639
        %2641 = vrot.lane.b32.xlu0 %v2631, 122
        %v2642 = vpop.permute.xlu0 %2641
        %2643 = vrot.lane.b32.xlu0 %v2632, 122
        %v2644 = vpop.permute.xlu0 %2643
        %2645 = vrot.lane.b32.xlu0 %v2633, 122
        %v2646 = vpop.permute.xlu0 %2645
        %2647 = vrot.lane.b32.xlu0 %v2634, 122
        %v2648 = vpop.permute.xlu0 %2647
        %2649 = vrot.lane.b32.xlu0 %v2635, 122
        %v2650 = vpop.permute.xlu0 %2649
        %2651 = vrot.lane.b32.xlu0 %v2636, 122
        %v2652 = vpop.permute.xlu0 %2651
        %vm2653 = vcmask 998400
        %v2654 = vsel %vm2653, %v2638, %v2640
        %v2655 = vsel %vm2653, %v2640, %v2642
        %v2656 = vsel %vm2653, %v2642, %v2644
        %v2657 = vsel %vm2653, %v2644, %v2646
        %v2658 = vsel %vm2653, %v2646, %v2648
        %v2659 = vsel %vm2653, %v2648, %v2650
        %v2660 = vsel %vm2653, %v2650, %v2652
        %2661 = vrot.lane.b32.xlu0 %v2629, 116
        %v2662 = vpop.permute.xlu0 %2661
        %2663 = vrot.lane.b32.xlu0 %v2630, 116
        %v2664 = vpop.permute.xlu0 %2663
        %2665 = vrot.lane.b32.xlu0 %v2631, 116
        %v2666 = vpop.permute.xlu0 %2665
        %2667 = vrot.lane.b32.xlu0 %v2632, 116
        %v2668 = vpop.permute.xlu0 %2667
        %2669 = vrot.lane.b32.xlu0 %v2633, 116
        %v2670 = vpop.permute.xlu0 %2669
        %2671 = vrot.lane.b32.xlu0 %v2634, 116
        %v2672 = vpop.permute.xlu0 %2671
        %2673 = vrot.lane.b32.xlu0 %v2635, 116
        %v2674 = vpop.permute.xlu0 %2673
        %2675 = vrot.lane.b32.xlu0 %v2636, 116
        %v2676 = vpop.permute.xlu0 %2675
        %v2677 = vsel %vm2070, %v2662, %v2664
        %v2678 = vsel %vm2070, %v2664, %v2666
        %v2679 = vsel %vm2070, %v2666, %v2668
        %v2680 = vsel %vm2070, %v2668, %v2670
        %v2681 = vsel %vm2070, %v2670, %v2672
        %v2682 = vsel %vm2070, %v2672, %v2674
        %v2683 = vsel %vm2070, %v2674, %v2676
        %2684 = vrot.lane.b32.xlu0 %v760, 88
        %v2685 = vpop.permute.xlu0 %2684
        %2686 = vrot.lane.b32.xlu0 %v761, 88
        %v2687 = vpop.permute.xlu0 %2686
        %2688 = vrot.lane.b32.xlu0 %v762, 88
        %v2689 = vpop.permute.xlu0 %2688
        %2690 = vrot.lane.b32.xlu0 %v763, 88
        %v2691 = vpop.permute.xlu0 %2690
        %2692 = vrot.lane.b32.xlu0 %v764, 88
        %v2693 = vpop.permute.xlu0 %2692
        %2694 = vrot.lane.b32.xlu0 %v765, 88
        %v2695 = vpop.permute.xlu0 %2694
        %2696 = vrot.lane.b32.xlu0 %v766, 88
        %v2697 = vpop.permute.xlu0 %2696
        %2698 = vrot.lane.b32.xlu0 %v767, 88
        %v2699 = vpop.permute.xlu0 %2698
        %vm2700 = vcmask 719872
        %v2701 = vsel %vm2700, %v2685, %v2687
        %v2702 = vsel %vm2700, %v2687, %v2689
        %v2703 = vsel %vm2700, %v2689, %v2691
        %v2704 = vsel %vm2700, %v2691, %v2693
        %v2705 = vsel %vm2700, %v2693, %v2695
        %v2706 = vsel %vm2700, %v2695, %v2697
        %v2707 = vsel %vm2700, %v2697, %v2699
        %2708 = vrot.lane.b32.xlu0 %v864, 76
        %v2709 = vpop.permute.xlu0 %2708
        %2710 = vrot.lane.b32.xlu0 %v865, 76
        %v2711 = vpop.permute.xlu0 %2710
        %2712 = vrot.lane.b32.xlu0 %v866, 76
        %v2713 = vpop.permute.xlu0 %2712
        %2714 = vrot.lane.b32.xlu0 %v867, 76
        %v2715 = vpop.permute.xlu0 %2714
        %2716 = vrot.lane.b32.xlu0 %v868, 76
        %v2717 = vpop.permute.xlu0 %2716
        %2718 = vrot.lane.b32.xlu0 %v869, 76
        %v2719 = vpop.permute.xlu0 %2718
        %2720 = vrot.lane.b32.xlu0 %v870, 76
        %v2721 = vpop.permute.xlu0 %2720
        %2722 = vrot.lane.b32.xlu0 %v871, 76
        %v2723 = vpop.permute.xlu0 %2722
        %vm2724 = vcmask 621568
        %v2725 = vsel %vm2724, %v2709, %v2711
        %v2726 = vsel %vm2724, %v2711, %v2713
        %v2727 = vsel %vm2724, %v2713, %v2715
        %v2728 = vsel %vm2724, %v2715, %v2717
        %v2729 = vsel %vm2724, %v2717, %v2719
        %v2730 = vsel %vm2724, %v2719, %v2721
        %v2731 = vsel %vm2724, %v2721, %v2723
        %v2740 = vunpack.c.l.b16 %v2597
        %v2741 = vunpack.c.h.b16 %v2597
        %v2742 = vunpack.c.l.b16 %v2598
        %v2743 = vunpack.c.h.b16 %v2598
        %v2744 = vunpack.c.l.b16 %v2599
        %v2745 = vunpack.c.h.b16 %v2599
        %v2746 = vunpack.c.l.b16 %v2600
        %v2747 = vunpack.c.h.b16 %v2600
        %v2748 = vunpack.c.l.b16 %v2601
        %v2749 = vunpack.c.h.b16 %v2601
        %v2750 = vunpack.c.l.b16 %v2602
        %v2751 = vunpack.c.h.b16 %v2602
        %v2752 = vunpack.c.l.b16 %v2603
        %v2753 = vunpack.c.h.b16 %v2603
        %v2754 = vunpack.c.l.b16 %v2604
        %v2755 = vunpack.c.h.b16 %v2604
        %v2756 = vpack.c.b16 %v2748, %v2740
        %v2757 = vpack.c.b16 %v2749, %v2741
        %v2758 = vpack.c.b16 %v2750, %v2742
        %v2759 = vpack.c.b16 %v2751, %v2743
        %v2760 = vpack.c.b16 %v2752, %v2744
        %v2761 = vpack.c.b16 %v2753, %v2745
        %v2762 = vpack.c.b16 %v2754, %v2746
        %v2763 = vpack.c.b16 %v2755, %v2747
        %2764 = vrot.lane.b32.xlu0 %v2756, 48
        %v2765 = vpop.permute.xlu0 %2764
        %2766 = vrot.lane.b32.xlu0 %v2757, 48
        %v2767 = vpop.permute.xlu0 %2766
        %2768 = vrot.lane.b32.xlu0 %v2758, 48
        %v2769 = vpop.permute.xlu0 %2768
        %2770 = vrot.lane.b32.xlu0 %v2759, 48
        %v2771 = vpop.permute.xlu0 %2770
        %2772 = vrot.lane.b32.xlu0 %v2760, 48
        %v2773 = vpop.permute.xlu0 %2772
        %2774 = vrot.lane.b32.xlu0 %v2761, 48
        %v2775 = vpop.permute.xlu0 %2774
        %2776 = vrot.lane.b32.xlu0 %v2762, 48
        %v2777 = vpop.permute.xlu0 %2776
        %2778 = vrot.lane.b32.xlu0 %v2763, 48
        %v2779 = vpop.permute.xlu0 %2778
        %vm2780 = vcmask 392192
        %v2781 = vsel %vm2780, %v2765, %v2767
        %v2782 = vsel %vm2780, %v2767, %v2769
        %v2783 = vsel %vm2780, %v2769, %v2771
        %v2784 = vsel %vm2780, %v2771, %v2773
        %v2785 = vsel %vm2780, %v2773, %v2775
        %v2786 = vsel %vm2780, %v2775, %v2777
        %v2787 = vsel %vm2780, %v2777, %v2779
        %2788 = vrot.lane.b32.xlu0 %v2756, 42
        %v2789 = vpop.permute.xlu0 %2788
        %2790 = vrot.lane.b32.xlu0 %v2757, 42
        %v2791 = vpop.permute.xlu0 %2790
        %2792 = vrot.lane.b32.xlu0 %v2758, 42
        %v2793 = vpop.permute.xlu0 %2792
        %2794 = vrot.lane.b32.xlu0 %v2759, 42
        %v2795 = vpop.permute.xlu0 %2794
        %2796 = vrot.lane.b32.xlu0 %v2760, 42
        %v2797 = vpop.permute.xlu0 %2796
        %2798 = vrot.lane.b32.xlu0 %v2761, 42
        %v2799 = vpop.permute.xlu0 %2798
        %2800 = vrot.lane.b32.xlu0 %v2762, 42
        %v2801 = vpop.permute.xlu0 %2800
        %2802 = vrot.lane.b32.xlu0 %v2763, 42
        %v2803 = vpop.permute.xlu0 %2802
        %vm2804 = vcmask 343040
        %v2805 = vsel %vm2804, %v2789, %v2791
        %v2806 = vsel %vm2804, %v2791, %v2793
        %v2807 = vsel %vm2804, %v2793, %v2795
        %v2808 = vsel %vm2804, %v2795, %v2797
        %v2809 = vsel %vm2804, %v2797, %v2799
        %v2810 = vsel %vm2804, %v2799, %v2801
        %v2811 = vsel %vm2804, %v2801, %v2803
        %2812 = vrot.lane.b32.xlu0 %v2756, 36
        %v2813 = vpop.permute.xlu0 %2812
        %2814 = vrot.lane.b32.xlu0 %v2757, 36
        %v2815 = vpop.permute.xlu0 %2814
        %2816 = vrot.lane.b32.xlu0 %v2758, 36
        %v2817 = vpop.permute.xlu0 %2816
        %2818 = vrot.lane.b32.xlu0 %v2759, 36
        %v2819 = vpop.permute.xlu0 %2818
        %2820 = vrot.lane.b32.xlu0 %v2760, 36
        %v2821 = vpop.permute.xlu0 %2820
        %2822 = vrot.lane.b32.xlu0 %v2761, 36
        %v2823 = vpop.permute.xlu0 %2822
        %2824 = vrot.lane.b32.xlu0 %v2762, 36
        %v2825 = vpop.permute.xlu0 %2824
        %2826 = vrot.lane.b32.xlu0 %v2763, 36
        %v2827 = vpop.permute.xlu0 %2826
        %vm2828 = vcmask 293888
        %v2829 = vsel %vm2828, %v2813, %v2815
        %v2830 = vsel %vm2828, %v2815, %v2817
        %v2831 = vsel %vm2828, %v2817, %v2819
        %v2832 = vsel %vm2828, %v2819, %v2821
        %v2833 = vsel %vm2828, %v2821, %v2823
        %v2834 = vsel %vm2828, %v2823, %v2825
        %v2835 = vsel %vm2828, %v2825, %v2827
        %v2836 = vld [vmem:[%s4] sm:$0xf]
        %2837 = vrot.lane.b32.xlu0 %v2629, 46
        %v2838 = vpop.permute.xlu0 %2837
        %2839 = vrot.lane.b32.xlu0 %v2630, 46
        %v2840 = vpop.permute.xlu0 %2839
        %2841 = vrot.lane.b32.xlu0 %v2631, 46
        %v2842 = vpop.permute.xlu0 %2841
        %2843 = vrot.lane.b32.xlu0 %v2632, 46
        %v2844 = vpop.permute.xlu0 %2843
        %2845 = vrot.lane.b32.xlu0 %v2633, 46
        %v2846 = vpop.permute.xlu0 %2845
        %2847 = vrot.lane.b32.xlu0 %v2634, 46
        %v2848 = vpop.permute.xlu0 %2847
        %2849 = vrot.lane.b32.xlu0 %v2635, 46
        %v2850 = vpop.permute.xlu0 %2849
        %2851 = vrot.lane.b32.xlu0 %v2636, 46
        %v2852 = vpop.permute.xlu0 %2851
        %2853 = vrot.lane.b32.xlu0 %v2654, 46
        %v2854 = vpop.permute.xlu0 %2853
        %2855 = vrot.lane.b32.xlu0 %v2655, 46
        %v2856 = vpop.permute.xlu0 %2855
        %2857 = vrot.lane.b32.xlu0 %v2656, 46
        %v2858 = vpop.permute.xlu0 %2857
        %2859 = vrot.lane.b32.xlu0 %v2657, 46
        %v2860 = vpop.permute.xlu0 %2859
        %2861 = vrot.lane.b32.xlu0 %v2658, 46
        %v2862 = vpop.permute.xlu0 %2861
        %2863 = vrot.lane.b32.xlu0 %v2659, 46
        %v2864 = vpop.permute.xlu0 %2863
        %2865 = vrot.lane.b32.xlu0 %v2660, 46
        %v2866 = vpop.permute.xlu0 %2865
        %2867 = vrot.lane.b32.xlu0 %v2652, 46
        %v2868 = vpop.permute.xlu0 %2867
        %2869 = vrot.lane.b32.xlu0 %v2677, 46
        %v2870 = vpop.permute.xlu0 %2869
        %2871 = vrot.lane.b32.xlu0 %v2678, 46
        %v2872 = vpop.permute.xlu0 %2871
        %2873 = vrot.lane.b32.xlu0 %v2679, 46
        %v2874 = vpop.permute.xlu0 %2873
        %2875 = vrot.lane.b32.xlu0 %v2680, 46
        %v2876 = vpop.permute.xlu0 %2875
        %2877 = vrot.lane.b32.xlu0 %v2681, 46
        %v2878 = vpop.permute.xlu0 %2877
        %2879 = vrot.lane.b32.xlu0 %v2682, 46
        %v2880 = vpop.permute.xlu0 %2879
        %2881 = vrot.lane.b32.xlu0 %v2683, 46
        %v2882 = vpop.permute.xlu0 %2881
        %2883 = vrot.lane.b32.xlu0 %v2676, 46
        %v2884 = vpop.permute.xlu0 %2883
        %2885 = vrot.lane.b32.xlu0 %v2701, 46
        %v2886 = vpop.permute.xlu0 %2885
        %2887 = vrot.lane.b32.xlu0 %v2702, 46
        %v2888 = vpop.permute.xlu0 %2887
        %2889 = vrot.lane.b32.xlu0 %v2703, 46
        %v2890 = vpop.permute.xlu0 %2889
        %2891 = vrot.lane.b32.xlu0 %v2704, 46
        %v2892 = vpop.permute.xlu0 %2891
        %2893 = vrot.lane.b32.xlu0 %v2705, 46
        %v2894 = vpop.permute.xlu0 %2893
        %2895 = vrot.lane.b32.xlu0 %v2706, 46
        %v2896 = vpop.permute.xlu0 %2895
        %2897 = vrot.lane.b32.xlu0 %v2707, 46
        %v2898 = vpop.permute.xlu0 %2897
        %2899 = vrot.lane.b32.xlu0 %v2699, 46
        %v2900 = vpop.permute.xlu0 %2899
        %2901 = vrot.lane.b32.xlu0 %v2709, 46
        %v2902 = vpop.permute.xlu0 %2901
        %2903 = vrot.lane.b32.xlu0 %v2725, 46
        %v2904 = vpop.permute.xlu0 %2903
        %2905 = vrot.lane.b32.xlu0 %v2726, 46
        %v2906 = vpop.permute.xlu0 %2905
        %2907 = vrot.lane.b32.xlu0 %v2727, 46
        %v2908 = vpop.permute.xlu0 %2907
        %2909 = vrot.lane.b32.xlu0 %v2728, 46
        %v2910 = vpop.permute.xlu0 %2909
        %2911 = vrot.lane.b32.xlu0 %v2729, 46
        %v2912 = vpop.permute.xlu0 %2911
        %2913 = vrot.lane.b32.xlu0 %v2730, 46
        %v2914 = vpop.permute.xlu0 %2913
        %2915 = vrot.lane.b32.xlu0 %v2731, 46
        %v2916 = vpop.permute.xlu0 %2915
        %2917 = vrot.lane.b32.xlu0 %v2765, 46
        %v2918 = vpop.permute.xlu0 %2917
        %2919 = vrot.lane.b32.xlu0 %v2781, 46
        %v2920 = vpop.permute.xlu0 %2919
        %2921 = vrot.lane.b32.xlu0 %v2782, 46
        %v2922 = vpop.permute.xlu0 %2921
        %2923 = vrot.lane.b32.xlu0 %v2783, 46
        %v2924 = vpop.permute.xlu0 %2923
        %2925 = vrot.lane.b32.xlu0 %v2784, 46
        %v2926 = vpop.permute.xlu0 %2925
        %2927 = vrot.lane.b32.xlu0 %v2785, 46
        %v2928 = vpop.permute.xlu0 %2927
        %2929 = vrot.lane.b32.xlu0 %v2786, 46
        %v2930 = vpop.permute.xlu0 %2929
        %2931 = vrot.lane.b32.xlu0 %v2787, 46
        %v2932 = vpop.permute.xlu0 %2931
        %2933 = vrot.lane.b32.xlu0 %v2789, 46
        %v2934 = vpop.permute.xlu0 %2933
        %2935 = vrot.lane.b32.xlu0 %v2805, 46
        %v2936 = vpop.permute.xlu0 %2935
        %2937 = vrot.lane.b32.xlu0 %v2806, 46
        %v2938 = vpop.permute.xlu0 %2937
        %2939 = vrot.lane.b32.xlu0 %v2807, 46
        %v2940 = vpop.permute.xlu0 %2939
        %2941 = vrot.lane.b32.xlu0 %v2808, 46
        %v2942 = vpop.permute.xlu0 %2941
        %2943 = vrot.lane.b32.xlu0 %v2809, 46
        %v2944 = vpop.permute.xlu0 %2943
        %2945 = vrot.lane.b32.xlu0 %v2810, 46
        %v2946 = vpop.permute.xlu0 %2945
        %2947 = vrot.lane.b32.xlu0 %v2811, 46
        %v2948 = vpop.permute.xlu0 %2947
        %2949 = vrot.lane.b32.xlu0 %v2813, 46
        %v2950 = vpop.permute.xlu0 %2949
        %2951 = vrot.lane.b32.xlu0 %v2829, 46
        %v2952 = vpop.permute.xlu0 %2951
        %2953 = vrot.lane.b32.xlu0 %v2830, 46
        %v2954 = vpop.permute.xlu0 %2953
        %2955 = vrot.lane.b32.xlu0 %v2831, 46
        %v2956 = vpop.permute.xlu0 %2955
        %2957 = vrot.lane.b32.xlu0 %v2832, 46
        %v2958 = vpop.permute.xlu0 %2957
        %2959 = vrot.lane.b32.xlu0 %v2833, 46
        %v2960 = vpop.permute.xlu0 %2959
        %2961 = vrot.lane.b32.xlu0 %v2834, 46
        %v2962 = vpop.permute.xlu0 %2961
        %2963 = vrot.lane.b32.xlu0 %v2835, 46
        %v2964 = vpop.permute.xlu0 %2963
        %vm2965 = vcmask 375808
        %v2966 = vsel %vm2965, %v2838, %v2840
        %v2967 = vsel %vm2965, %v2840, %v2842
        %v2968 = vsel %vm2965, %v2842, %v2844
        %v2969 = vsel %vm2965, %v2844, %v2846
        %v2970 = vsel %vm2965, %v2846, %v2848
        %v2971 = vsel %vm2965, %v2848, %v2850
        %v2972 = vsel %vm2965, %v2850, %v2852
        %v2973 = vsel %vm2965, %v2854, %v2856
        %v2974 = vsel %vm2965, %v2856, %v2858
        %v2975 = vsel %vm2965, %v2858, %v2860
        %v2976 = vsel %vm2965, %v2860, %v2862
        %v2977 = vsel %vm2965, %v2862, %v2864
        %v2978 = vsel %vm2965, %v2864, %v2866
        %v2979 = vsel %vm2965, %v2866, %v2868
        %v2980 = vsel %vm2965, %v2870, %v2872
        %v2981 = vsel %vm2965, %v2872, %v2874
        %v2982 = vsel %vm2965, %v2874, %v2876
        %v2983 = vsel %vm2965, %v2876, %v2878
        %v2984 = vsel %vm2965, %v2878, %v2880
        %v2985 = vsel %vm2965, %v2880, %v2882
        %v2986 = vsel %vm2965, %v2882, %v2884
        %v2987 = vsel %vm2965, %v2886, %v2888
        %v2988 = vsel %vm2965, %v2888, %v2890
        %v2989 = vsel %vm2965, %v2890, %v2892
        %v2990 = vsel %vm2965, %v2892, %v2894
        %v2991 = vsel %vm2965, %v2894, %v2896
        %v2992 = vsel %vm2965, %v2896, %v2898
        %v2993 = vsel %vm2965, %v2898, %v2900
        %v2994 = vsel %vm2965, %v2902, %v2904
        %v2995 = vsel %vm2965, %v2904, %v2906
        %v2996 = vsel %vm2965, %v2906, %v2908
        %v2997 = vsel %vm2965, %v2908, %v2910
        %v2998 = vsel %vm2965, %v2910, %v2912
        %v2999 = vsel %vm2965, %v2912, %v2914
        %v3000 = vsel %vm2965, %v2914, %v2916
        %v3001 = vsel %vm2965, %v2918, %v2920
        %v3002 = vsel %vm2965, %v2920, %v2922
        %v3003 = vsel %vm2965, %v2922, %v2924
        %v3004 = vsel %vm2965, %v2924, %v2926
        %v3005 = vsel %vm2965, %v2926, %v2928
        %v3006 = vsel %vm2965, %v2928, %v2930
        %v3007 = vsel %vm2965, %v2930, %v2932
        %v3008 = vsel %vm2965, %v2934, %v2936
        %v3009 = vsel %vm2965, %v2936, %v2938
        %v3010 = vsel %vm2965, %v2938, %v2940
        %v3011 = vsel %vm2965, %v2940, %v2942
        %v3012 = vsel %vm2965, %v2942, %v2944
        %v3013 = vsel %vm2965, %v2944, %v2946
        %v3014 = vsel %vm2965, %v2946, %v2948
        %v3015 = vsel %vm2965, %v2950, %v2952
        %v3016 = vsel %vm2965, %v2952, %v2954
        %v3017 = vsel %vm2965, %v2954, %v2956
        %v3018 = vsel %vm2965, %v2956, %v2958
        %v3019 = vsel %vm2965, %v2958, %v2960
        %v3020 = vsel %vm2965, %v2960, %v2962
        %v3021 = vsel %vm2965, %v2962, %v2964
        %3078 = vmatprep.subr.bf16.mxu0 %v2967
        %3079 = vmatpush1.bf16.msra.mxu0 %v2966
        %3080 = vmatprep.subr.bf16.mxu0 %v2974
        %3081 = vmatpush1.bf16.msra.mxu0 %v2973
        %3082 = vmatprep.subr.bf16.mxu0 %v2981
        %3083 = vmatpush1.bf16.msra.mxu0 %v2980
        %3084 = vmatprep.subr.bf16.mxu0 %v2988
        %3085 = vmatpush1.bf16.msra.mxu0 %v2987
        %3086 = vmatprep.subr.bf16.mxu0 %v2995
        %3087 = vmatpush1.bf16.msra.mxu0 %v2994
        %3088 = vmatprep.subr.bf16.mxu0 %v3002
        %3089 = vmatpush1.bf16.msra.mxu0 %v3001
        %3090 = vmatprep.subr.bf16.mxu0 %v3009
        %3091 = vmatpush1.bf16.msra.mxu0 %v3008
        %3092 = vmatprep.subr.bf16.mxu0 %v3016
        %3093 = vmatpush1.bf16.msra.mxu0 %v3015
        %3094 = vmatprep.subr.bf16.mxu0 0
        %3095 = vmatpush1.bf16.msra.mxu0 0
        %3096 = vmatprep.subr.bf16.mxu0 0
        %3097 = vmatpush1.bf16.msra.mxu0 0
        %3098 = vmatprep.subr.bf16.mxu0 0
        %3099 = vmatpush1.bf16.msra.mxu0 0
        %3100 = vmatprep.subr.bf16.mxu0 0
        %3101 = vmatpush1.bf16.msra.mxu0 0
        %3102 = vmatprep.subr.bf16.mxu0 0
        %3103 = vmatpush1.bf16.msra.mxu0 0
        %3104 = vmatprep.subr.bf16.mxu0 0
        %3105 = vmatpush1.bf16.msra.mxu0 0
        %3106 = vmatprep.subr.bf16.mxu0 0
        %3107 = vmatpush1.bf16.msra.mxu0 0
        %3108 = vmatprep.subr.bf16.mxu0 0
        %3109 = vmatpush1.bf16.msra.mxu0 0
        %3110 = vmatprep.mubr.bf16.mxu0 0
        %3111 = vmatmul.mubr.bf16.gmra.mrb[0].mxu0 %v2836
        %v3112 = vpop.f32.mrb[0].mxu0
        %v3113 = vadd.f32 0.0, %v3112
        %v3114 = vpop.f32.mrb[0].mxu0
        %v3115 = vadd.f32 0.0, %v3114
        %v3116 = vpop.f32.mrb[0].mxu0
        %v3117 = vpop.f32.mrb[0].mxu0
        %3118 = vdwg.mxu0
        %3119 = vmatprep.subr.bf16.mxu0 %v2969
        %3120 = vmatpush1.bf16.msra.mxu0 %v2968
        %3121 = vmatprep.subr.bf16.mxu0 %v2976
        %3122 = vmatpush1.bf16.msra.mxu0 %v2975
        %3123 = vmatprep.subr.bf16.mxu0 %v2983
        %3124 = vmatpush1.bf16.msra.mxu0 %v2982
        %3125 = vmatprep.subr.bf16.mxu0 %v2990
        %3126 = vmatpush1.bf16.msra.mxu0 %v2989
        %3127 = vmatprep.subr.bf16.mxu0 %v2997
        %3128 = vmatpush1.bf16.msra.mxu0 %v2996
        %3129 = vmatprep.subr.bf16.mxu0 %v3004
        %3130 = vmatpush1.bf16.msra.mxu0 %v3003
        %3131 = vmatprep.subr.bf16.mxu0 %v3011
        %3132 = vmatpush1.bf16.msra.mxu0 %v3010
        %3133 = vmatprep.subr.bf16.mxu0 %v3018
        %3134 = vmatpush1.bf16.msra.mxu0 %v3017
        %3135 = vmatprep.subr.bf16.mxu0 0
        %3136 = vmatpush1.bf16.msra.mxu0 0
        %3137 = vmatprep.subr.bf16.mxu0 0
        %3138 = vmatpush1.bf16.msra.mxu0 0
        %3139 = vmatprep.subr.bf16.mxu0 0
        %3140 = vmatpush1.bf16.msra.mxu0 0
        %3141 = vmatprep.subr.bf16.mxu0 0
        %3142 = vmatpush1.bf16.msra.mxu0 0
        %3143 = vmatprep.subr.bf16.mxu0 0
        %3144 = vmatpush1.bf16.msra.mxu0 0
        %3145 = vmatprep.subr.bf16.mxu0 0
        %3146 = vmatpush1.bf16.msra.mxu0 0
        %3147 = vmatprep.subr.bf16.mxu0 0
        %3148 = vmatpush1.bf16.msra.mxu0 0
        %3149 = vmatprep.subr.bf16.mxu0 0
        %3150 = vmatpush1.bf16.msra.mxu0 0
        %3151 = vmatprep.mubr.bf16.mxu0 0
        %3152 = vmatmul.mubr.bf16.gmra.mrb[0].mxu0 %v2836
        %v3153 = vpop.f32.mrb[0].mxu0
        %v3154 = vadd.f32 0.0, %v3153
        %v3155 = vpop.f32.mrb[0].mxu0
        %v3156 = vadd.f32 0.0, %v3155
        %v3157 = vpop.f32.mrb[0].mxu0
        %v3158 = vpop.f32.mrb[0].mxu0
        %3159 = vdwg.mxu0
        %3160 = vmatprep.subr.bf16.mxu0 %v2971
        %3161 = vmatpush1.bf16.msra.mxu0 %v2970
        %3162 = vmatprep.subr.bf16.mxu0 %v2978
        %3163 = vmatpush1.bf16.msra.mxu0 %v2977
        %3164 = vmatprep.subr.bf16.mxu0 %v2985
        %3165 = vmatpush1.bf16.msra.mxu0 %v2984
        %3166 = vmatprep.subr.bf16.mxu0 %v2992
        %3167 = vmatpush1.bf16.msra.mxu0 %v2991
        %3168 = vmatprep.subr.bf16.mxu0 %v2999
        %3169 = vmatpush1.bf16.msra.mxu0 %v2998
        %3170 = vmatprep.subr.bf16.mxu0 %v3006
        %3171 = vmatpush1.bf16.msra.mxu0 %v3005
        %3172 = vmatprep.subr.bf16.mxu0 %v3013
        %3173 = vmatpush1.bf16.msra.mxu0 %v3012
        %3174 = vmatprep.subr.bf16.mxu0 %v3020
        %3175 = vmatpush1.bf16.msra.mxu0 %v3019
        %3176 = vmatprep.subr.bf16.mxu0 0
        %3177 = vmatpush1.bf16.msra.mxu0 0
        %3178 = vmatprep.subr.bf16.mxu0 0
        %3179 = vmatpush1.bf16.msra.mxu0 0
        %3180 = vmatprep.subr.bf16.mxu0 0
        %3181 = vmatpush1.bf16.msra.mxu0 0
        %3182 = vmatprep.subr.bf16.mxu0 0
        %3183 = vmatpush1.bf16.msra.mxu0 0
        %3184 = vmatprep.subr.bf16.mxu0 0
        %3185 = vmatpush1.bf16.msra.mxu0 0
        %3186 = vmatprep.subr.bf16.mxu0 0
        %3187 = vmatpush1.bf16.msra.mxu0 0
        %3188 = vmatprep.subr.bf16.mxu0 0
        %3189 = vmatpush1.bf16.msra.mxu0 0
        %3190 = vmatprep.subr.bf16.mxu0 0
        %3191 = vmatpush1.bf16.msra.mxu0 0
        %3192 = vmatprep.mubr.bf16.mxu0 0
        %3193 = vmatmul.mubr.bf16.gmra.mrb[0].mxu0 %v2836
        %v3194 = vpop.f32.mrb[0].mxu0
        %v3195 = vadd.f32 0.0, %v3194
        %v3196 = vpop.f32.mrb[0].mxu0
        %v3197 = vadd.f32 0.0, %v3196
        %v3198 = vpop.f32.mrb[0].mxu0
        %v3199 = vpop.f32.mrb[0].mxu0
        %3200 = vdwg.mxu0
        %3201 = vmatprep.subr.bf16.mxu0 0
        %3202 = vmatpush1.bf16.msra.mxu0 %v2972
        %3203 = vmatprep.subr.bf16.mxu0 0
        %3204 = vmatpush1.bf16.msra.mxu0 %v2979
        %3205 = vmatprep.subr.bf16.mxu0 0
        %3206 = vmatpush1.bf16.msra.mxu0 %v2986
        %3207 = vmatprep.subr.bf16.mxu0 0
        %3208 = vmatpush1.bf16.msra.mxu0 %v2993
        %3209 = vmatprep.subr.bf16.mxu0 0
        %3210 = vmatpush1.bf16.msra.mxu0 %v3000
        %3211 = vmatprep.subr.bf16.mxu0 0
        %3212 = vmatpush1.bf16.msra.mxu0 %v3007
        %3213 = vmatprep.subr.bf16.mxu0 0
        %3214 = vmatpush1.bf16.msra.mxu0 %v3014
        %3215 = vmatprep.subr.bf16.mxu0 0
        %3216 = vmatpush1.bf16.msra.mxu0 %v3021
        %3217 = vmatprep.subr.bf16.mxu0 0
        %3218 = vmatpush1.bf16.msra.mxu0 0
        %3219 = vmatprep.subr.bf16.mxu0 0
        %3220 = vmatpush1.bf16.msra.mxu0 0
        %3221 = vmatprep.subr.bf16.mxu0 0
        %3222 = vmatpush1.bf16.msra.mxu0 0
        %3223 = vmatprep.subr.bf16.mxu0 0
        %3224 = vmatpush1.bf16.msra.mxu0 0
        %3225 = vmatprep.subr.bf16.mxu0 0
        %3226 = vmatpush1.bf16.msra.mxu0 0
        %3227 = vmatprep.subr.bf16.mxu0 0
        %3228 = vmatpush1.bf16.msra.mxu0 0
        %3229 = vmatprep.subr.bf16.mxu0 0
        %3230 = vmatpush1.bf16.msra.mxu0 0
        %3231 = vmatprep.subr.bf16.mxu0 0
        %3232 = vmatpush1.bf16.msra.mxu0 0
        %3233 = vmatprep.mubr.bf16.mxu0 0
        %3234 = vmatmul.mubr.bf16.gmra.mrb[0].mxu0 %v2836
        %v3235 = vpop.f32.mrb[0].mxu0
        %v3236 = vadd.f32 0.0, %v3235
        %v3237 = vpop.f32.mrb[0].mxu0
        %v3238 = vpop.f32.mrb[0].mxu0
        %v3239 = vpop.f32.mrb[0].mxu0
        %3240 = vdwg.mxu0
        %v3241 = vadd.f32 %v520, %v3113
        %v3242 = vadd.f32 %v522, %v3115
        %v3243 = vadd.f32 %v573, %v3154
        %v3244 = vadd.f32 %v575, %v3156
        %v3245 = vadd.f32 %v626, %v3195
        %v3246 = vadd.f32 %v628, %v3197
        %v3247 = vadd.f32 %v676, %v3236
        %v3248 = vld [vmem:[%s5 + $0x18] sm:$0xff]
        %3250 = vset.pattern.permute.xlu0 0
        %3251 = vperm.xlu0 %3250, %v3248
        %v3252 = vpop.permute.xlu0 %3251
        %v3254 = vmul.f32 %v3241, %v3252
        %v3255 = vmul.f32 %v3242, %v3252
        %v3256 = vmul.f32 %v3243, %v3252
        %v3257 = vmul.f32 %v3244, %v3252
        %v3258 = vmul.f32 %v3245, %v3252
        %v3259 = vmul.f32 %v3246, %v3252
        %v3260 = vmul.f32 %v3247, %v3252
        %v3261 = vld [vmem:[%s6 + $0x18] sm:$0xff]
        %3263 = vset.pattern.permute.xlu0 0
        %3264 = vperm.xlu0 %3263, %v3261
        %v3265 = vpop.permute.xlu0 %3264
        %v3267 = vadd.f32 %v3254, %v3265
        %v3268 = vadd.f32 %v3255, %v3265
        %v3269 = vadd.f32 %v3256, %v3265
        %v3270 = vadd.f32 %v3257, %v3265
        %v3271 = vadd.f32 %v3258, %v3265
        %v3272 = vadd.f32 %v3259, %v3265
        %v3273 = vadd.f32 %v3260, %v3265
        %v3274 = vmax.f32 %v3267, 0.0
        %v3275 = vmax.f32 %v3268, 0.0
        %v3276 = vmax.f32 %v3269, 0.0
        %v3277 = vmax.f32 %v3270, 0.0
        %v3278 = vmax.f32 %v3271, 0.0
        %v3279 = vmax.f32 %v3272, 0.0
        %v3280 = vmax.f32 %v3273, 0.0
        %s3281 = scalar_lea.vmem %s8, 12
        %v3282 = vld [vmem:[%s3281] sm:$0xf]
        %v3283 = vpack.c.bf16 %v3274, %v3274
        %v3284 = vpack.c.bf16 %v3275, %v3275
        %v3285 = vpack.c.bf16 %v3276, %v3276
        %v3286 = vpack.c.bf16 %v3277, %v3277
        %v3287 = vpack.c.bf16 %v3278, %v3278
        %v3288 = vpack.c.bf16 %v3279, %v3279
        %v3289 = vpack.c.bf16 %v3280, %v3280
        %v3291 = vsel %vm1422, %v3282, 0
        %v3294 = vsel %vm1426, %v3283, 0
        %v3297 = vsel %vm1426, %v3284, 0
        %v3300 = vsel %vm1426, %v3285, 0
        %v3303 = vsel %vm1426, %v3286, 0
        %v3306 = vsel %vm1426, %v3287, 0
        %v3309 = vsel %vm1426, %v3288, 0
        %v3312 = vsel %vm1426, %v3289, 0
        %3314 = vmatprep.subr.bf16.mxu0 %v3297
        %3315 = vmatpush1.bf16.msra.mxu0 %v3294
        %3316 = vmatprep.subr.bf16.mxu0 0
        %3317 = vmatpush1.bf16.msra.mxu0 0
        %3318 = vmatprep.subr.bf16.mxu0 0
        %3319 = vmatpush1.bf16.msra.mxu0 0
        %3320 = vmatprep.subr.bf16.mxu0 0
        %3321 = vmatpush1.bf16.msra.mxu0 0
        %3322 = vmatprep.subr.bf16.mxu0 0
        %3323 = vmatpush1.bf16.msra.mxu0 0
        %3324 = vmatprep.subr.bf16.mxu0 0
        %3325 = vmatpush1.bf16.msra.mxu0 0
        %3326 = vmatprep.subr.bf16.mxu0 0
        %3327 = vmatpush1.bf16.msra.mxu0 0
        %3328 = vmatprep.subr.bf16.mxu0 0
        %3329 = vmatpush1.bf16.msra.mxu0 0
        %3330 = vmatprep.subr.bf16.mxu0 0
        %3331 = vmatpush1.bf16.msra.mxu0 0
        %3332 = vmatprep.subr.bf16.mxu0 0
        %3333 = vmatpush1.bf16.msra.mxu0 0
        %3334 = vmatprep.subr.bf16.mxu0 0
        %3335 = vmatpush1.bf16.msra.mxu0 0
        %3336 = vmatprep.subr.bf16.mxu0 0
        %3337 = vmatpush1.bf16.msra.mxu0 0
        %3338 = vmatprep.subr.bf16.mxu0 0
        %3339 = vmatpush1.bf16.msra.mxu0 0
        %3340 = vmatprep.subr.bf16.mxu0 0
        %3341 = vmatpush1.bf16.msra.mxu0 0
        %3342 = vmatprep.subr.bf16.mxu0 0
        %3343 = vmatpush1.bf16.msra.mxu0 0
        %3344 = vmatprep.subr.bf16.mxu0 0
        %3345 = vmatpush1.bf16.msra.mxu0 0
        %3346 = vmatprep.mubr.bf16.mxu0 0
        %3347 = vmatmul.mubr.bf16.gmra.mrb[0].mxu0 %v3291
        %v3348 = vpop.f32.mrb[0].mxu0
        %v3349 = vadd.f32 0.0, %v3348
        %v3350 = vpop.f32.mrb[0].mxu0
        %v3351 = vadd.f32 0.0, %v3350
        %v3352 = vpop.f32.mrb[0].mxu0
        %v3353 = vpop.f32.mrb[0].mxu0
        %3354 = vdwg.mxu0
        %3355 = vmatprep.subr.bf16.mxu0 %v3303
        %3356 = vmatpush1.bf16.msra.mxu0 %v3300
        %3357 = vmatprep.subr.bf16.mxu0 0
        %3358 = vmatpush1.bf16.msra.mxu0 0
        %3359 = vmatprep.subr.bf16.mxu0 0
        %3360 = vmatpush1.bf16.msra.mxu0 0
        %3361 = vmatprep.subr.bf16.mxu0 0
        %3362 = vmatpush1.bf16.msra.mxu0 0
        %3363 = vmatprep.subr.bf16.mxu0 0
        %3364 = vmatpush1.bf16.msra.mxu0 0
        %3365 = vmatprep.subr.bf16.mxu0 0
        %3366 = vmatpush1.bf16.msra.mxu0 0
        %3367 = vmatprep.subr.bf16.mxu0 0
        %3368 = vmatpush1.bf16.msra.mxu0 0
        %3369 = vmatprep.subr.bf16.mxu0 0
        %3370 = vmatpush1.bf16.msra.mxu0 0
        %3371 = vmatprep.subr.bf16.mxu0 0
        %3372 = vmatpush1.bf16.msra.mxu0 0
        %3373 = vmatprep.subr.bf16.mxu0 0
        %3374 = vmatpush1.bf16.msra.mxu0 0
        %3375 = vmatprep.subr.bf16.mxu0 0
        %3376 = vmatpush1.bf16.msra.mxu0 0
        %3377 = vmatprep.subr.bf16.mxu0 0
        %3378 = vmatpush1.bf16.msra.mxu0 0
        %3379 = vmatprep.subr.bf16.mxu0 0
        %3380 = vmatpush1.bf16.msra.mxu0 0
        %3381 = vmatprep.subr.bf16.mxu0 0
        %3382 = vmatpush1.bf16.msra.mxu0 0
        %3383 = vmatprep.subr.bf16.mxu0 0
        %3384 = vmatpush1.bf16.msra.mxu0 0
        %3385 = vmatprep.subr.bf16.mxu0 0
        %3386 = vmatpush1.bf16.msra.mxu0 0
        %3387 = vmatprep.mubr.bf16.mxu0 0
        %3388 = vmatmul.mubr.bf16.gmra.mrb[0].mxu0 %v3291
        %v3389 = vpop.f32.mrb[0].mxu0
        %v3390 = vadd.f32 0.0, %v3389
        %v3391 = vpop.f32.mrb[0].mxu0
        %v3392 = vadd.f32 0.0, %v3391
        %v3393 = vpop.f32.mrb[0].mxu0
        %v3394 = vpop.f32.mrb[0].mxu0
        %3395 = vdwg.mxu0
        %3396 = vmatprep.subr.bf16.mxu0 %v3309
        %3397 = vmatpush1.bf16.msra.mxu0 %v3306
        %3398 = vmatprep.subr.bf16.mxu0 0
        %3399 = vmatpush1.bf16.msra.mxu0 0
        %3400 = vmatprep.subr.bf16.mxu0 0
        %3401 = vmatpush1.bf16.msra.mxu0 0
        %3402 = vmatprep.subr.bf16.mxu0 0
        %3403 = vmatpush1.bf16.msra.mxu0 0
        %3404 = vmatprep.subr.bf16.mxu0 0
        %3405 = vmatpush1.bf16.msra.mxu0 0
        %3406 = vmatprep.subr.bf16.mxu0 0
        %3407 = vmatpush1.bf16.msra.mxu0 0
        %3408 = vmatprep.subr.bf16.mxu0 0
        %3409 = vmatpush1.bf16.msra.mxu0 0
        %3410 = vmatprep.subr.bf16.mxu0 0
        %3411 = vmatpush1.bf16.msra.mxu0 0
        %3412 = vmatprep.subr.bf16.mxu0 0
        %3413 = vmatpush1.bf16.msra.mxu0 0
        %3414 = vmatprep.subr.bf16.mxu0 0
        %3415 = vmatpush1.bf16.msra.mxu0 0
        %3416 = vmatprep.subr.bf16.mxu0 0
        %3417 = vmatpush1.bf16.msra.mxu0 0
        %3418 = vmatprep.subr.bf16.mxu0 0
        %3419 = vmatpush1.bf16.msra.mxu0 0
        %3420 = vmatprep.subr.bf16.mxu0 0
        %3421 = vmatpush1.bf16.msra.mxu0 0
        %3422 = vmatprep.subr.bf16.mxu0 0
        %3423 = vmatpush1.bf16.msra.mxu0 0
        %3424 = vmatprep.subr.bf16.mxu0 0
        %3425 = vmatpush1.bf16.msra.mxu0 0
        %3426 = vmatprep.subr.bf16.mxu0 0
        %3427 = vmatpush1.bf16.msra.mxu0 0
        %3428 = vmatprep.mubr.bf16.mxu0 0
        %3429 = vmatmul.mubr.bf16.gmra.mrb[0].mxu0 %v3291
        %v3430 = vpop.f32.mrb[0].mxu0
        %v3431 = vadd.f32 0.0, %v3430
        %v3432 = vpop.f32.mrb[0].mxu0
        %v3433 = vadd.f32 0.0, %v3432
        %v3434 = vpop.f32.mrb[0].mxu0
        %v3435 = vpop.f32.mrb[0].mxu0
        %3436 = vdwg.mxu0
        %3437 = vmatprep.subr.bf16.mxu0 0
        %3438 = vmatpush1.bf16.msra.mxu0 %v3312
        %3439 = vmatprep.subr.bf16.mxu0 0
        %3440 = vmatpush1.bf16.msra.mxu0 0
        %3441 = vmatprep.subr.bf16.mxu0 0
        %3442 = vmatpush1.bf16.msra.mxu0 0
        %3443 = vmatprep.subr.bf16.mxu0 0
        %3444 = vmatpush1.bf16.msra.mxu0 0
        %3445 = vmatprep.subr.bf16.mxu0 0
        %3446 = vmatpush1.bf16.msra.mxu0 0
        %3447 = vmatprep.subr.bf16.mxu0 0
        %3448 = vmatpush1.bf16.msra.mxu0 0
        %3449 = vmatprep.subr.bf16.mxu0 0
        %3450 = vmatpush1.bf16.msra.mxu0 0
        %3451 = vmatprep.subr.bf16.mxu0 0
        %3452 = vmatpush1.bf16.msra.mxu0 0
        %3453 = vmatprep.subr.bf16.mxu0 0
        %3454 = vmatpush1.bf16.msra.mxu0 0
        %3455 = vmatprep.subr.bf16.mxu0 0
        %3456 = vmatpush1.bf16.msra.mxu0 0
        %3457 = vmatprep.subr.bf16.mxu0 0
        %3458 = vmatpush1.bf16.msra.mxu0 0
        %3459 = vmatprep.subr.bf16.mxu0 0
        %3460 = vmatpush1.bf16.msra.mxu0 0
        %3461 = vmatprep.subr.bf16.mxu0 0
        %3462 = vmatpush1.bf16.msra.mxu0 0
        %3463 = vmatprep.subr.bf16.mxu0 0
        %3464 = vmatpush1.bf16.msra.mxu0 0
        %3465 = vmatprep.subr.bf16.mxu0 0
        %3466 = vmatpush1.bf16.msra.mxu0 0
        %3467 = vmatprep.subr.bf16.mxu0 0
        %3468 = vmatpush1.bf16.msra.mxu0 0
        %3469 = vmatprep.mubr.bf16.mxu0 0
        %3470 = vmatmul.mubr.bf16.gmra.mrb[0].mxu0 %v3291
        %v3471 = vpop.f32.mrb[0].mxu0
        %v3472 = vadd.f32 0.0, %v3471
        %v3473 = vpop.f32.mrb[0].mxu0
        %v3474 = vpop.f32.mrb[0].mxu0
        %v3475 = vpop.f32.mrb[0].mxu0
        %3476 = vdwg.mxu0
        %v3477 = vadd.f32 %v2582, %v3349
        %v3478 = vadd.f32 %v2583, %v3351
        %v3479 = vadd.f32 %v2584, %v3390
        %v3480 = vadd.f32 %v2585, %v3392
        %v3481 = vadd.f32 %v2586, %v3431
        %v3482 = vadd.f32 %v2587, %v3433
        %v3483 = vadd.f32 %v2588, %v3472
        %v3484 = vunpack.c.l.bf16 %v406
        %v3485 = vunpack.c.h.bf16 %v406
        %v3486 = vunpack.c.l.bf16 %v407
        %v3487 = vunpack.c.h.bf16 %v407
        %v3488 = vunpack.c.l.bf16 %v408
        %v3489 = vunpack.c.h.bf16 %v408
        %v3490 = vunpack.c.l.bf16 %v409
        %v3491 = vunpack.c.l.bf16 %v410
        %v3492 = vunpack.c.h.bf16 %v410
        %v3493 = vunpack.c.l.bf16 %v411
        %v3494 = vunpack.c.h.bf16 %v411
        %v3495 = vunpack.c.l.bf16 %v412
        %v3496 = vunpack.c.h.bf16 %v412
        %v3497 = vunpack.c.l.bf16 %v413
        %v3498 = vadd.f32 %v3484, %v3485
        %v3499 = vadd.f32 %v3498, %v3486
        %v3500 = vadd.f32 %v3499, %v3487
        %v3501 = vadd.f32 %v3500, %v3488
        %v3502 = vadd.f32 %v3501, %v3489
        %v3503 = vadd.f32 %v3502, %v3490
        %3504 = vadd.xlane.f32.xlu0 %v3503
        %v3505 = vpop.xlane.xlu0 %3504
        %v3506 = vadd.f32 %v3491, %v3492
        %v3507 = vadd.f32 %v3506, %v3493
        %v3508 = vadd.f32 %v3507, %v3494
        %v3509 = vadd.f32 %v3508, %v3495
        %v3510 = vadd.f32 %v3509, %v3496
        %v3511 = vadd.f32 %v3510, %v3497
        %3512 = vadd.xlane.f32.xlu0 %v3511
        %v3513 = vpop.xlane.xlu0 %3512
        %v3514 = vmul.f32 %v3505, 0.00390625
        %v3515 = vmul.f32 %v3513, 0.00390625
        %v3516 = vld [vmem:[%s7] sm:$0xf]
        %v3517 = vunpack.c.l.bf16 %v3516
        %v3519 = vsel %vm464, %v3517, 0
        %3521 = vmatprep.subr.mxu0 0.0
        %3522 = vmatpush1.msra.mxu0 %v3514
        %3523 = vmatprep.subr.mxu0 0.0
        %3524 = vmatpush1.msra.mxu0 %v3515
        %3525 = vmatprep.subr.mxu0 0.0
        %3526 = vmatpush1.msra.mxu0 0.0
        %3527 = vmatprep.subr.mxu0 0.0
        %3528 = vmatpush1.msra.mxu0 0.0
        %3529 = vmatprep.subr.mxu0 0.0
        %3530 = vmatpush1.msra.mxu0 0.0
        %3531 = vmatprep.subr.mxu0 0.0
        %3532 = vmatpush1.msra.mxu0 0.0
        %3533 = vmatprep.subr.mxu0 0.0
        %3534 = vmatpush1.msra.mxu0 0.0
        %3535 = vmatprep.subr.mxu0 0.0
        %3536 = vmatpush1.msra.mxu0 0.0
        %3537 = vmatprep.subr.mxu0 0.0
        %3538 = vmatpush1.msra.mxu0 0.0
        %3539 = vmatprep.subr.mxu0 0.0
        %3540 = vmatpush1.msra.mxu0 0.0
        %3541 = vmatprep.subr.mxu0 0.0
        %3542 = vmatpush1.msra.mxu0 0.0
        %3543 = vmatprep.subr.mxu0 0.0
        %3544 = vmatpush1.msra.mxu0 0.0
        %3545 = vmatprep.subr.mxu0 0.0
        %3546 = vmatpush1.msra.mxu0 0.0
        %3547 = vmatprep.subr.mxu0 0.0
        %3548 = vmatpush1.msra.mxu0 0.0
        %3549 = vmatprep.subr.mxu0 0.0
        %3550 = vmatpush1.msra.mxu0 0.0
        %3551 = vmatprep.subr.mxu0 0.0
        %3552 = vmatpush1.msra.mxu0 0.0
        %3553 = vmatprep.subr.mxu0 0.0
        %3554 = vmatpush1.msra.mxu0 0.0
        %3555 = vmatprep.subr.mxu0 0.0
        %3556 = vmatpush1.msra.mxu0 0.0
        %3557 = vmatprep.subr.mxu0 0.0
        %3558 = vmatpush1.msra.mxu0 0.0
        %3559 = vmatprep.subr.mxu0 0.0
        %3560 = vmatpush1.msra.mxu0 0.0
        %3561 = vmatprep.subr.mxu0 0.0
        %3562 = vmatpush1.msra.mxu0 0.0
        %3563 = vmatprep.subr.mxu0 0.0
        %3564 = vmatpush1.msra.mxu0 0.0
        %3565 = vmatprep.subr.mxu0 0.0
        %3566 = vmatpush1.msra.mxu0 0.0
        %3567 = vmatprep.subr.mxu0 0.0
        %3568 = vmatpush1.msra.mxu0 0.0
        %3569 = vmatprep.subr.mxu0 0.0
        %3570 = vmatpush1.msra.mxu0 0.0
        %3571 = vmatprep.subr.mxu0 0.0
        %3572 = vmatpush1.msra.mxu0 0.0
        %3573 = vmatprep.subr.mxu0 0.0
        %3574 = vmatpush1.msra.mxu0 0.0
        %3575 = vmatprep.subr.mxu0 0.0
        %3576 = vmatpush1.msra.mxu0 0.0
        %3577 = vmatprep.subr.mxu0 0.0
        %3578 = vmatpush1.msra.mxu0 0.0
        %3579 = vmatprep.subr.mxu0 0.0
        %3580 = vmatpush1.msra.mxu0 0.0
        %3581 = vmatprep.subr.mxu0 0.0
        %3582 = vmatpush1.msra.mxu0 0.0
        %3583 = vmatprep.subr.mxu0 0.0
        %3584 = vmatpush1.msra.mxu0 0.0
        %3585 = vmatprep.mubr.f32.mxu0 0.0
        %3586 = vmatmul.mubr.f32.gmra.mrb[0].mxu0 %v3519
        %v3587 = vpop.f32.mrb[0].mxu0
        %v3588 = vadd.f32 0.0, %v3587
        %v3589 = vpop.f32.mrb[0].mxu0
        %3590 = vdwg.mxu0
        %v3591 = vmax.f32 %v3588, 0.0
        %s3592 = scalar_lea.vmem %s8, 16
        %v3593 = vld [vmem:[%s3592] sm:$0xf]
        %v3594 = vunpack.c.l.bf16 %v3593
        %v3596 = vsel %vm1422, %v3594, 0
        %3598 = vmatprep.subr.mxu0 0.0
        %3599 = vmatpush1.msra.mxu0 %v3591
        %3600 = vmatprep.subr.mxu0 0.0
        %3601 = vmatpush1.msra.mxu0 0.0
        %3602 = vmatprep.subr.mxu0 0.0
        %3603 = vmatpush1.msra.mxu0 0.0
        %3604 = vmatprep.subr.mxu0 0.0
        %3605 = vmatpush1.msra.mxu0 0.0
        %3606 = vmatprep.subr.mxu0 0.0
        %3607 = vmatpush1.msra.mxu0 0.0
        %3608 = vmatprep.subr.mxu0 0.0
        %3609 = vmatpush1.msra.mxu0 0.0
        %3610 = vmatprep.subr.mxu0 0.0
        %3611 = vmatpush1.msra.mxu0 0.0
        %3612 = vmatprep.subr.mxu0 0.0
        %3613 = vmatpush1.msra.mxu0 0.0
        %3614 = vmatprep.subr.mxu0 0.0
        %3615 = vmatpush1.msra.mxu0 0.0
        %3616 = vmatprep.subr.mxu0 0.0
        %3617 = vmatpush1.msra.mxu0 0.0
        %3618 = vmatprep.subr.mxu0 0.0
        %3619 = vmatpush1.msra.mxu0 0.0
        %3620 = vmatprep.subr.mxu0 0.0
        %3621 = vmatpush1.msra.mxu0 0.0
        %3622 = vmatprep.subr.mxu0 0.0
        %3623 = vmatpush1.msra.mxu0 0.0
        %3624 = vmatprep.subr.mxu0 0.0
        %3625 = vmatpush1.msra.mxu0 0.0
        %3626 = vmatprep.subr.mxu0 0.0
        %3627 = vmatpush1.msra.mxu0 0.0
        %3628 = vmatprep.subr.mxu0 0.0
        %3629 = vmatpush1.msra.mxu0 0.0
        %3630 = vmatprep.subr.mxu0 0.0
        %3631 = vmatpush1.msra.mxu0 0.0
        %3632 = vmatprep.subr.mxu0 0.0
        %3633 = vmatpush1.msra.mxu0 0.0
        %3634 = vmatprep.subr.mxu0 0.0
        %3635 = vmatpush1.msra.mxu0 0.0
        %3636 = vmatprep.subr.mxu0 0.0
        %3637 = vmatpush1.msra.mxu0 0.0
        %3638 = vmatprep.subr.mxu0 0.0
        %3639 = vmatpush1.msra.mxu0 0.0
        %3640 = vmatprep.subr.mxu0 0.0
        %3641 = vmatpush1.msra.mxu0 0.0
        %3642 = vmatprep.subr.mxu0 0.0
        %3643 = vmatpush1.msra.mxu0 0.0
        %3644 = vmatprep.subr.mxu0 0.0
        %3645 = vmatpush1.msra.mxu0 0.0
        %3646 = vmatprep.subr.mxu0 0.0
        %3647 = vmatpush1.msra.mxu0 0.0
        %3648 = vmatprep.subr.mxu0 0.0
        %3649 = vmatpush1.msra.mxu0 0.0
        %3650 = vmatprep.subr.mxu0 0.0
        %3651 = vmatpush1.msra.mxu0 0.0
        %3652 = vmatprep.subr.mxu0 0.0
        %3653 = vmatpush1.msra.mxu0 0.0
        %3654 = vmatprep.subr.mxu0 0.0
        %3655 = vmatpush1.msra.mxu0 0.0
        %3656 = vmatprep.subr.mxu0 0.0
        %3657 = vmatpush1.msra.mxu0 0.0
        %3658 = vmatprep.subr.mxu0 0.0
        %3659 = vmatpush1.msra.mxu0 0.0
        %3660 = vmatprep.subr.mxu0 0.0
        %3661 = vmatpush1.msra.mxu0 0.0
        %3662 = vmatprep.mubr.f32.mxu0 0.0
        %3663 = vmatmul.mubr.f32.gmra.mrb[0].mxu0 %v3596
        %v3664 = vpop.f32.mrb[0].mxu0
        %v3665 = vadd.f32 0.0, %v3664
        %v3666 = vpop.f32.mrb[0].mxu0
        %3667 = vdwg.mxu0
        %3669 = vset.pattern.permute.xlu0 0
        %3670 = vperm.xlu0 %3669, %v3665
        %v3671 = vpop.permute.xlu0 %3670
        %v3673 = vadd.f32 %v3477, %v3671
        %v3674 = vadd.f32 %v3478, %v3671
        %v3675 = vadd.f32 %v3479, %v3671
        %v3676 = vadd.f32 %v3480, %v3671
        %v3677 = vadd.f32 %v3481, %v3671
        %v3678 = vadd.f32 %v3482, %v3671
        %v3679 = vadd.f32 %v3483, %v3671
        %v3680 = vld [vmem:[%s9] sm:$0xff]
        %3682 = vset.pattern.permute.xlu0 0
        %3683 = vperm.xlu0 %3682, %v3680
        %v3684 = vpop.permute.xlu0 %3683
        %v3686 = vmul.f32 %v3673, %v3684
        %v3687 = vmul.f32 %v3674, %v3684
        %v3688 = vmul.f32 %v3675, %v3684
        %v3689 = vmul.f32 %v3676, %v3684
        %v3690 = vmul.f32 %v3677, %v3684
        %v3691 = vmul.f32 %v3678, %v3684
        %v3692 = vmul.f32 %v3679, %v3684
        %v3693 = vld [vmem:[%s10] sm:$0xff]
        %3695 = vset.pattern.permute.xlu0 0
        %3696 = vperm.xlu0 %3695, %v3693
        %v3697 = vpop.permute.xlu0 %3696
        %v3699 = vadd.f32 %v3686, %v3697
        %v3700 = vadd.f32 %v3687, %v3697
        %v3701 = vadd.f32 %v3688, %v3697
        %v3702 = vadd.f32 %v3689, %v3697
        %v3703 = vadd.f32 %v3690, %v3697
        %v3704 = vadd.f32 %v3691, %v3697
        %v3705 = vadd.f32 %v3692, %v3697
        %v3706 = vmax.f32 %v3699, 0.0
        %v3707 = vmax.f32 %v3700, 0.0
        %v3708 = vmax.f32 %v3701, 0.0
        %v3709 = vmax.f32 %v3702, 0.0
        %v3710 = vmax.f32 %v3703, 0.0
        %v3711 = vmax.f32 %v3704, 0.0
        %v3712 = vmax.f32 %v3705, 0.0
        %3713 = vst [vmem:[%s404] sm:$0xff] %v3706
        %3714 = vst [vmem:[%s404 + $0x8] sm:$0xff] %v3707
        %3715 = vst [vmem:[%s404 + $0x10] sm:$0xff] %v3708
        %3716 = vst [vmem:[%s404 + $0x18] sm:$0xff] %v3709
        %3717 = vst [vmem:[%s404 + $0x20] sm:$0xff] %v3710
        %3718 = vst [vmem:[%s404 + $0x28] sm:$0xff] %v3711
        %3719 = vst [vmem:[%s404 + $0x30] sm:$0xff] %v3712
        %s3720 = sand.u32 %s272, 1
        %s3721 = scalar_lea.sflag [#allocation4], %s3720
        %s3722 = sand.u32 %s272, 1
        %s3723 = smul.addr %s3722, 56
        %s3724 = scalar_lea.vmem [#allocation5], %s3723
        // Predicated region
        $region69: #{tpu_custom_call.1} parent=63 // pred_check
          %p3725 = pneg %p282
        $region70: #{tpu_custom_call.1} parent=63 // pred_check_branch
          %3727 = sbr.rel (%p3725) target = $region72
        $region71: #{tpu_custom_call.1} parent=63 // pred_region
          %s3729 = ssub.s32 896, 896
          %3730 = vsyncadd %s3721, %s3729
          %s3731 = smul.addr %s28, 7
          %s3732 = smul.addr %s3731, 128
          %s3733 = scalar_lea.hbm %s11, %s3732
          %s3735 = sshll.u32 %s3724, 4
          %s3736 = int_to_ptr.vmem [resolvable:$true] %s3735
          %3738 = dma.vmem_to_hbm [thread:$0]  %s3736, 896, %s3733, %s3721
        $region72: #{tpu_custom_call.1} parent=63 // pred_fallthru
          _
      $region64: #{tpu_custom_call.1} parent=5 // pred_fallthru
        _
      %p3739 = scmp.le.s32.totalorder 2, %s23
      // Predicated region
      $region73: #{tpu_custom_call.1} parent=5 // pred_check
        %p3740 = pneg %p3739
      $region74: #{tpu_custom_call.1} parent=5 // pred_check_branch
        %3742 = sbr.rel (%p3740) target = $region76
      $region75: #{tpu_custom_call.1} parent=5 // pred_region
        %s3743 = ssub.s32 %s23, 2
        // Predicated region
        $region77: #{tpu_custom_call.1} parent=75 // pred_check
          %p3744 = pneg %p288
        $region78: #{tpu_custom_call.1} parent=75 // pred_check_branch
          %3746 = sbr.rel (%p3744) target = $region80
        $region79: #{tpu_custom_call.1} parent=75 // pred_region
          %s3747 = sand.u32 %s273, 1
          %s3748 = scalar_lea.sflag [#allocation4], %s3747
          %s3749 = sand.u32 %s273, 1
          %s3750 = smul.addr %s3749, 56
          %s3751 = scalar_lea.vmem [#allocation5], %s3750
          %3752 = dma.done %s3748, 896
        $region80: #{tpu_custom_call.1} parent=75 // pred_fallthru
          _
      $region76: #{tpu_custom_call.1} parent=5 // pred_fallthru
        _
    $region6: #{tpu_custom_call.1} parent=1 // loop_footer
      %s27 = sadd.s32 1, %s23
    $region7: #{tpu_custom_call.1} parent=1 // loop_footer_branch
      %22 = sbr.rel target = $region3
    $region8: #{tpu_custom_call.1} parent=1 // loop_exit
      _
    %3753 = vsyncpa [#allocation3], 1
    %s3754 = scalar_lea.sflag [#allocation3], 1
    %3755 = vsyncpa %s3754, 1
    %3756 = vsyncpa [#allocation4], 1
    %s3757 = scalar_lea.sflag [#allocation4], 1
    %3758 = vsyncpa %s3757, 1

</llo_original>
